<compile_context>
chip_gen: v7x
topology: tpu7x:2x2x1
jax: 0.10.0
libtpu: 0.0.40
codegen_flags: <defaults>
</compile_context>

<pallas_src>
import functools
import math

import jax
import jax.numpy as jnp
from jax.experimental import pallas as pl
from jax.experimental.pallas import tpu as pltpu


def _gelu_exact(v):
    # nn.GELU() default = exact erf formulation (kept exact to preserve module semantics).
    return 0.5 * v * (1.0 + jax.lax.erf(v * (1.0 / math.sqrt(2.0))))


def multires_kernel(x_ref, wenc_ref, benc_ref, h0_ref, wh1_ref, wtap_ref,
                    wmix_ref, bmix_ref, lng_ref, lnb_ref, wout_ref, bout_ref,
                    pool_ref, o_ref, *, n_layers, depth, ksize, Bt, L, D, gelu_approx):
    BtL = Bt * L
    dt = x_ref.dtype

    # encoder: nn.Conv1d(d_input, d_model, 1) == pointwise matmul + bias over all Bt*L rows
    x = (jnp.dot(x_ref[...], wenc_ref[...], preferred_element_type=jnp.float32)
         + benc_ref[...]).astype(dt)                                   # [BtL, D]

    # ---- hoisted causal-shift machinery (built once, reused by every layer) ------------
    # rows are batch-major (r = b*L + t); tpos is the within-sequence position of each row.
    r_idx = jax.lax.broadcasted_iota(jnp.int32, (BtL, 1), 0)
    if (L & (L - 1)) == 0:
        tpos = jnp.bitwise_and(r_idx, L - 1)
    else:
        tpos = r_idx % L
    needed_shifts = set()
    dil = 1
    for _ in range(depth):
        for j in range(ksize - 1):
            s = (ksize - 1 - j) * dil
            if 0 < s < L:
                needed_shifts.add(s)
        dil *= 2
    # One materialized [BtL, D] keep-mask per distinct shift.  (JAX does not CSE
    # broadcast_in_dim, so building these inside the layer loop would redo the compare +
    # broadcast n_layers*depth times on the VPU, the slot nearest saturation here.)
    keep = {s: jnp.broadcast_to(tpos >= s, (BtL, D)) for s in sorted(needed_shifts)}

    def causal_shift(v, s):
        # out[b, t] = v[b, t - s], zero for t < s.  Rolling the fused (Bt*L) axis plus the
        # keep-mask never exposes rows of a neighbouring sample: those rows are exactly the
        # masked t < s positions.
        if s == 0:
            return v
        if s >= L:
            return jnp.zeros_like(v)
        return jnp.where(keep[s], pltpu.roll(v, shift=s, axis=0), 0.0)

    # TODO(synk): for deep configs (n_layers >= 8, depth >= 10) convert this to
    # lax.fori_loop over l with dynamic ref[l] indexing to bound live ranges / I-stream size.
    for l in range(n_layers):
        x_orig = x
        h0 = h0_ref[l]                                                 # [K, D]
        wh1 = wh1_ref[l]                                               # [depth*K, D], w_res folded in
        wtap = wtap_ref[l]                                             # [2, D]: direct tap, final low tap

        # ---- MultiresLayer (tree_select='fading'): causal dilated depthwise convs ----
        res_lo = x
        y = wtap[0:1, :] * x                                           # direct residual tap
        dilation = 1
        if ksize == 2:
            # specialized 2-tap wavelet step: one nonzero shift per level
            for lev in range(depth):
                r = 2 * lev
                sh = causal_shift(res_lo, dilation)
                y = y + wh1[r:r + 1, :] * sh + wh1[r + 1:r + 2, :] * res_lo
                res_lo = h0[0:1, :] * sh + h0[1:2, :] * res_lo
                dilation *= 2
        else:
            for lev in range(depth):
                r = ksize * lev
                yh = wh1[r + ksize - 1:r + ksize, :] * res_lo          # j = ksize-1 -> shift 0
                lo = h0[ksize - 1:ksize, :] * res_lo
                for j in range(ksize - 1):
                    sh = causal_shift(res_lo, (ksize - 1 - j) * dilation)
                    yh = yh + wh1[r + j:r + j + 1, :] * sh
                    lo = lo + h0[j:j + 1, :] * sh
                y = y + yh
                res_lo = lo
                dilation *= 2
        y = y + wtap[1:2, :] * res_lo

        if gelu_approx:
            y = jax.nn.gelu(y, approximate=True)   # tanh/exp -> EUP slot (idle otherwise)
        else:
            y = _gelu_exact(y)                     # nn.GELU() default (exact erf) semantics
        # dropout / Dropout1d = identity (eval mode)

        # ---- mixing layer: fused Conv1d(D, 2D, 1) -> GLU, single MXU matmul ----
        ab = jnp.dot(y, wmix_ref[l], preferred_element_type=jnp.float32) + bmix_ref[l]
        a = ab[:, :D]                                                  # value half
        g = ab[:, D:]                                                  # gate half
        u = a * jax.nn.sigmoid(g)

        xr = u + x_orig.astype(jnp.float32)                            # residual carry in f32

        # ---- LayerNorm over channels: two-pass variance (numerical parity with PyTorch) ----
        mu = jnp.mean(xr, axis=-1, keepdims=True)
        xc = xr - mu
        var = jnp.mean(xc * xc, axis=-1, keepdims=True)
        scale = jax.lax.rsqrt(var + 1e-5) * lng_ref[l]
        x = (xc * scale + lnb_ref[l]).astype(dt)

    # ---- epilogue: output Linear first at full M ([BtL, D] x [D, DOUT_pad]), then mean-pool
    #      over seq_len via a tiny matmul against the host-precomputed pool matrix ----
    proj = jnp.dot(x.astype(jnp.float32), wout_ref[...].astype(jnp.float32),
                   preferred_element_type=jnp.float32)                 # [BtL, DOUT_pad]
    pooled = jnp.dot(pool_ref[...], proj, preferred_element_type=jnp.float32)  # [Bt, DOUT_pad]
    o_ref[...] = (pooled + bout_ref[...]).astype(o_ref.dtype)          # lane-dense store


def init_params(key, d_input, d_model, d_output, n_layers, depth, ksize, dtype=jnp.float32):
    # dtype=jnp.bfloat16 is supported for v6e/v7x (matmul acc / LN stats stay f32 in-kernel).
    m = depth + 1                                                      # fading-tree memory size
    ks = jax.random.split(key, 16)

    def u(k, shape, scale):
        return (jax.random.uniform(k, shape, jnp.float32, -1.0, 1.0) * scale).astype(dtype)

    filt_scale = math.sqrt(2.0 / (ksize * 2))
    w_scale = math.sqrt(2.0 / (2 * m + 2))
    params = {
        "w_enc": u(ks[0], (d_input, d_model), 1.0 / math.sqrt(d_input)),
        "b_enc": u(ks[1], (1, d_model), 1.0 / math.sqrt(d_input)),
        "h0": u(ks[2], (n_layers, ksize, d_model), filt_scale),
        "h1": u(ks[3], (n_layers, ksize, d_model), filt_scale),
        "w_res": u(ks[4], (n_layers, m + 1, d_model), w_scale),
        # fused GLU mixing conv: columns [0:D) -> value path, [D:2D) -> gate path
        "wmix": u(ks[5], (n_layers, d_model, 2 * d_model), 1.0 / math.sqrt(d_model)),
        "bmix": u(ks[6], (n_layers, 1, 2 * d_model), 1.0 / math.sqrt(d_model)),
        "ln_g": jnp.ones((n_layers, 1, d_model), dtype),
        "ln_b": jnp.zeros((n_layers, 1, d_model), dtype),
        "w_out": u(ks[7], (d_model, d_output), 1.0 / math.sqrt(d_model)),
        "b_out": u(ks[8], (1, d_output), 1.0 / math.sqrt(d_model)),
    }
    return params


def _pick_block_b(B, L, D, depth, target_rows=1024, vmem_budget_bytes=48 << 20):
    """Pick the batch tile Bt.

    Targets BtL = Bt*L ~ 1024 rows (fills the MXU M dim, amortizes the ~0.35us per-grid-step
    overhead) subject to a working-set check of ~10 live [BtL, D] f32 temporaries plus the
    hoisted causal keep-masks.  Returns either Bt == B (grid=1, block == full array dims,
    always layout-legal, zero padded rows) or a multiple of 8 so the [Bt, DOUT_pad] output
    block satisfies the (8, 128) rule.
    """
    bytes_per_row = (10 * 4 + depth * 4) * D
    rows_cap = max(8, vmem_budget_bytes // max(1, bytes_per_row))
    rows = max(L, min(target_rows, rows_cap))
    bt = max(1, min(B, rows // max(1, L)))
    if bt >= B:
        # Split into two balanced tiles for v7x megacore only if both halves still fill the
        # MXU M dimension and stay layout-legal.
        if B % 2 == 0 and (B // 2) % 8 == 0 and (B // 2) * L >= 512:
            return B // 2
        return B
    return min(B, max(8, (bt // 8) * 8))


def multires_net_forward(x_blc, params, *, n_layers, depth, ksize, block_b=None,
                         gelu_approx=False):
    """x_blc: [B, L, d_input] (channels-last).  Returns [B, d_output]."""
    B, L, d_input = x_blc.shape
    D = params["w_enc"].shape[1]
    DOUT = params["w_out"].shape[1]
    DOUT_pad = pl.cdiv(DOUT, 128) * 128                     # lane-dense output store

    Bt = block_b if block_b is not None else _pick_block_b(B, L, D, depth)
    B_pad = pl.cdiv(B, Bt) * Bt
    BtL = Bt * L

    x = x_blc
    if B_pad != B:
        x = jnp.pad(x, ((0, B_pad - B), (0, 0), (0, 0)))
    x_flat = x.reshape(B_pad * L, d_input)                  # rows are batch-major: r = b*L + t

    # ---- host-side parameter folding --------------------------------------------------
    # Fold the per-level w_res scale into the high-pass filters: wh1[l, lev, j] =
    # w_res[l, depth-lev] * h1[l, j]  (drops one [BtL, D] VPU multiply per level per layer).
    w_res = params["w_res"]
    w_levels = w_res[:, 1:depth + 1, :][:, ::-1, :]          # lev 0 -> w_res[:, depth], ...
    wh1 = (w_levels[:, :, None, :] * params["h1"][:, None, :, :]
           ).reshape(n_layers, depth * ksize, D)
    wtap = jnp.stack([w_res[:, depth + 1, :], w_res[:, 0, :]], axis=1)   # [n_layers, 2, D]

    # lane-pad the output head so the per-step store is an unmasked, lane-dense vst
    w_out_p = jnp.pad(params["w_out"], ((0, 0), (0, DOUT_pad - DOUT)))
    b_out_p = jnp.pad(params["b_out"], ((0, 0), (0, DOUT_pad - DOUT)))

    # mean-pool matrix (grid-invariant, depends only on Bt, L): replaces the per-step
    # in-kernel iota/where construction and lets the output projection run at full M first.
    pool = jnp.repeat(jnp.eye(Bt, dtype=jnp.float32), L, axis=1) / float(L)   # [Bt, BtL]

    param_arrays = [params["w_enc"], params["b_enc"], params["h0"], wh1, wtap,
                    params["wmix"], params["bmix"], params["ln_g"], params["ln_b"],
                    w_out_p, b_out_p, pool]

    kernel = functools.partial(multires_kernel, n_layers=n_layers, depth=depth,
                               ksize=ksize, Bt=Bt, L=L, D=D, gelu_approx=gelu_approx)

    in_specs = [pl.BlockSpec((BtL, d_input), lambda b: (b, 0))]
    for arr in param_arrays:
        # grid-invariant blocks: single-buffer them (default double-buffering would only
        # duplicate parameter VMEM for blocks that never change).
        in_specs.append(pl.BlockSpec(arr.shape, lambda b, n=arr.ndim: (0,) * n,
                                     pipeline_mode=pl.Buffered(1)))

    # explicit scoped-VMEM budget: live f32 temporaries + hoisted masks + single-buffered
    # params + double-buffered input/output tiles, with ~1.5x headroom.
    param_bytes = sum(int(a.size) * a.dtype.itemsize for a in param_arrays)
    live_bytes = (10 * 4 + depth * 4) * BtL * D
    io_bytes = 2 * BtL * d_input * x_flat.dtype.itemsize + 2 * Bt * DOUT_pad * 4
    vmem_limit = int(min(128 << 20, max(32 << 20, 1.5 * (param_bytes + live_bytes + io_bytes))))

    # TODO(synk): production L (8k-16k) needs an L-chunked grid axis carrying res_lo / y /
    # LN state in VMEM scratch (whole-sequence residency exceeds v7x's 64 MiB); and for
    # D >= 512 with many layers, stream wmix/h0/wh1 per layer instead of keeping all layers
    # resident.
    out = pl.pallas_call(
        kernel,
        out_shape=jax.ShapeDtypeStruct((B_pad, DOUT_pad), jnp.float32),
        grid=(B_pad // Bt,),
        in_specs=in_specs,
        out_specs=pl.BlockSpec((Bt, DOUT_pad), lambda b: (b, 0)),
        compiler_params=pltpu.CompilerParams(
            dimension_semantics=("parallel",),       # batch tiles shard across v7x's 2 TCs
            vmem_limit_bytes=vmem_limit),
    )(x_flat, *param_arrays)
    return out[:B, :DOUT]


if __name__ == "__main__":
    # Small config consistent with MultiresNet(d_input, d_output=10, ...); d_model chosen
    # 128-aligned for full-width vregs / MXU tiles.
    B, d_input, L = 12, 4, 16
    d_model, d_output, n_layers, ksize = 128, 10, 2, 2
    # depth = max_depth(seq_len) from the reference MultiresLayer
    depth = math.ceil(math.log2((L - 1) / (ksize - 1) + 1))   # = 4 for L=16, k=2

    key = jax.random.PRNGKey(0)
    kx, kp = jax.random.split(key)

    # PyTorch input layout is NCL: [bs, d_input, seq_len]; transpose once at the boundary.
    x_ncl = jax.random.normal(kx, (B, d_input, L), dtype=jnp.float32)
    x_blc = jnp.transpose(x_ncl, (0, 2, 1))                   # -> [B, L, d_input]

    params = init_params(kp, d_input, d_model, d_output, n_layers, depth, ksize)

    # block_b chosen by the heuristic: Bt=12 -> one balanced 192-row tile, no padded rows.
    out = multires_net_forward(x_blc, params, n_layers=n_layers, depth=depth, ksize=ksize,
                               gelu_approx=False)             # exact erf == nn.GELU() default
    out = jax.block_until_ready(out)
    assert out.shape == (B, d_output)
    # TODO(synk): Dropout/Dropout1d are eval-mode identities; training-mode masks not implemented.
    print("KERNEL_OK")
</pallas_src>

<mosaic_0001>
module attributes {stable_mosaic.version = 11 : i64} {
  func.func @multires_kernel(%arg0: i32, %arg1: memref<192x4xf32, #tpu.memory_space<vmem>>, %arg2: memref<4x128xf32, #tpu.memory_space<vmem>>, %arg3: memref<1x128xf32, #tpu.memory_space<vmem>>, %arg4: memref<2x2x128xf32, #tpu.memory_space<vmem>>, %arg5: memref<2x8x128xf32, #tpu.memory_space<vmem>>, %arg6: memref<2x2x128xf32, #tpu.memory_space<vmem>>, %arg7: memref<2x128x256xf32, #tpu.memory_space<vmem>>, %arg8: memref<2x1x256xf32, #tpu.memory_space<vmem>>, %arg9: memref<2x1x128xf32, #tpu.memory_space<vmem>>, %arg10: memref<2x1x128xf32, #tpu.memory_space<vmem>>, %arg11: memref<128x128xf32, #tpu.memory_space<vmem>>, %arg12: memref<1x128xf32, #tpu.memory_space<vmem>>, %arg13: memref<12x192xf32, #tpu.memory_space<vmem>>, %arg14: memref<12x128xf32, #tpu.memory_space<vmem>>) attributes {dimension_semantics = [#tpu.dimension_semantics<parallel>], iteration_bounds = array<i64: 1>, scalar_prefetch = 0 : i64, scratch_operands = 0 : i64, tpu.core_type = #tpu.core_type<tc>, window_params = [{transform_indices = @transform_0, window_bounds = array<i64: 192, 4>}, {pipeline_mode = #tpu.pipeline_mode<synchronous>, transform_indices = @transform_1, window_bounds = array<i64: 4, 128>}, {pipeline_mode = #tpu.pipeline_mode<synchronous>, transform_indices = @transform_2, window_bounds = array<i64: 1, 128>}, {pipeline_mode = #tpu.pipeline_mode<synchronous>, transform_indices = @transform_3, window_bounds = array<i64: 2, 2, 128>}, {pipeline_mode = #tpu.pipeline_mode<synchronous>, transform_indices = @transform_4, window_bounds = array<i64: 2, 8, 128>}, {pipeline_mode = #tpu.pipeline_mode<synchronous>, transform_indices = @transform_5, window_bounds = array<i64: 2, 2, 128>}, {pipeline_mode = #tpu.pipeline_mode<synchronous>, transform_indices = @transform_6, window_bounds = array<i64: 2, 128, 256>}, {pipeline_mode = #tpu.pipeline_mode<synchronous>, transform_indices = @transform_7, window_bounds = array<i64: 2, 1, 256>}, {pipeline_mode = #tpu.pipeline_mode<synchronous>, transform_indices = @transform_8, window_bounds = array<i64: 2, 1, 128>}, {pipeline_mode = #tpu.pipeline_mode<synchronous>, transform_indices = @transform_9, window_bounds = array<i64: 2, 1, 128>}, {pipeline_mode = #tpu.pipeline_mode<synchronous>, transform_indices = @transform_10, window_bounds = array<i64: 128, 128>}, {pipeline_mode = #tpu.pipeline_mode<synchronous>, transform_indices = @transform_11, window_bounds = array<i64: 1, 128>}, {pipeline_mode = #tpu.pipeline_mode<synchronous>, transform_indices = @transform_12, window_bounds = array<i64: 12, 192>}, {transform_indices = @transform_13, window_bounds = array<i64: 12, 128>}]} {
    %c0 = arith.constant 0 : index
    %c0_0 = arith.constant 0 : index
    %0 = vector.load %arg1[%c0, %c0_0] : memref<192x4xf32, #tpu.memory_space<vmem>>, vector<192x4xf32>
    %c0_1 = arith.constant 0 : index
    %c0_2 = arith.constant 0 : index
    %1 = vector.load %arg2[%c0_1, %c0_2] : memref<4x128xf32, #tpu.memory_space<vmem>>, vector<4x128xf32>
    %cst = arith.constant dense<0.000000e+00> : vector<192x128xf32>
    %2 = tpu.matmul %0, %1, %cst {dimension_numbers = #tpu.dot_dimension_numbers<[1], [0], [0], [1], [0, 0, 1, 1], [], []>} : vector<192x4xf32>, vector<4x128xf32>, vector<192x128xf32> -> vector<192x128xf32>
    %c0_3 = arith.constant 0 : index
    %c0_4 = arith.constant 0 : index
    %3 = vector.load %arg3[%c0_3, %c0_4] : memref<1x128xf32, #tpu.memory_space<vmem>>, vector<1x128xf32>
    %4 = vector.broadcast %3 : vector<1x128xf32> to vector<192x128xf32>
    %5 = arith.addf %2, %4 : vector<192x128xf32>
    %6 = tpu.iota {dimensions = array<i32: 0>} : vector<192x1xi32>
    %c15_i32 = arith.constant 15 : i32
    %7 = vector.broadcast %c15_i32 : i32 to vector<192x1xi32>
    %8 = arith.andi %6, %7 : vector<192x1xi32>
    %c1_i32 = arith.constant 1 : i32
    %9 = vector.broadcast %c1_i32 : i32 to vector<192x1xi32>
    %10 = arith.cmpi sge, %8, %9 : vector<192x1xi32>
    %11 = vector.shape_cast %10 : vector<192x1xi1> to vector<192x1xi1>
    %12 = vector.broadcast %11 : vector<192x1xi1> to vector<192x128xi1>
    %c2_i32 = arith.constant 2 : i32
    %13 = vector.broadcast %c2_i32 : i32 to vector<192x1xi32>
    %14 = arith.cmpi sge, %8, %13 : vector<192x1xi32>
    %15 = vector.shape_cast %14 : vector<192x1xi1> to vector<192x1xi1>
    %16 = vector.broadcast %15 : vector<192x1xi1> to vector<192x128xi1>
    %c4_i32 = arith.constant 4 : i32
    %17 = vector.broadcast %c4_i32 : i32 to vector<192x1xi32>
    %18 = arith.cmpi sge, %8, %17 : vector<192x1xi32>
    %19 = vector.shape_cast %18 : vector<192x1xi1> to vector<192x1xi1>
    %20 = vector.broadcast %19 : vector<192x1xi1> to vector<192x128xi1>
    %c8_i32 = arith.constant 8 : i32
    %21 = vector.broadcast %c8_i32 : i32 to vector<192x1xi32>
    %22 = arith.cmpi sge, %8, %21 : vector<192x1xi32>
    %23 = vector.shape_cast %22 : vector<192x1xi1> to vector<192x1xi1>
    %24 = vector.broadcast %23 : vector<192x1xi1> to vector<192x128xi1>
    %c0_5 = arith.constant 0 : index
    %c0_6 = arith.constant 0 : index
    %c0_7 = arith.constant 0 : index
    %25 = vector.load %arg4[%c0_5, %c0_6, %c0_7] : memref<2x2x128xf32, #tpu.memory_space<vmem>>, vector<1x2x128xf32>
    %26 = vector.shape_cast %25 : vector<1x2x128xf32> to vector<2x128xf32>
    %c0_8 = arith.constant 0 : index
    %c0_9 = arith.constant 0 : index
    %c0_10 = arith.constant 0 : index
    %27 = vector.load %arg5[%c0_8, %c0_9, %c0_10] : memref<2x8x128xf32, #tpu.memory_space<vmem>>, vector<1x8x128xf32>
    %28 = vector.shape_cast %27 : vector<1x8x128xf32> to vector<8x128xf32>
    %c0_11 = arith.constant 0 : index
    %c0_12 = arith.constant 0 : index
    %c0_13 = arith.constant 0 : index
    %29 = vector.load %arg6[%c0_11, %c0_12, %c0_13] : memref<2x2x128xf32, #tpu.memory_space<vmem>>, vector<1x2x128xf32>
    %30 = vector.shape_cast %29 : vector<1x2x128xf32> to vector<2x128xf32>
    %31 = vector.extract_strided_slice %30 {offsets = [0, 0], sizes = [1, 128], strides = [1, 1]} : vector<2x128xf32> to vector<1x128xf32>
    %32 = vector.broadcast %31 : vector<1x128xf32> to vector<192x128xf32>
    %33 = arith.mulf %32, %5 : vector<192x128xf32>
    %c1_i32_14 = arith.constant 1 : i32
    %34 = tpu.dynamic_rotate %5 by %c1_i32_14 dim 0 : vector<192x128xf32>, i32 -> vector<192x128xf32>
    %cst_15 = arith.constant 0.000000e+00 : f32
    %35 = vector.broadcast %cst_15 : f32 to vector<192x128xf32>
    %36 = arith.select %12, %34, %35 : vector<192x128xi1>, vector<192x128xf32>
    %37 = vector.extract_strided_slice %28 {offsets = [0, 0], sizes = [1, 128], strides = [1, 1]} : vector<8x128xf32> to vector<1x128xf32>
    %38 = vector.broadcast %37 : vector<1x128xf32> to vector<192x128xf32>
    %39 = arith.mulf %38, %36 : vector<192x128xf32>
    %40 = arith.addf %33, %39 : vector<192x128xf32>
    %41 = vector.extract_strided_slice %28 {offsets = [1, 0], sizes = [1, 128], strides = [1, 1]} : vector<8x128xf32> to vector<1x128xf32>
    %42 = vector.broadcast %41 : vector<1x128xf32> to vector<192x128xf32>
    %43 = arith.mulf %42, %5 : vector<192x128xf32>
    %44 = arith.addf %40, %43 : vector<192x128xf32>
    %45 = vector.extract_strided_slice %26 {offsets = [0, 0], sizes = [1, 128], strides = [1, 1]} : vector<2x128xf32> to vector<1x128xf32>
    %46 = vector.broadcast %45 : vector<1x128xf32> to vector<192x128xf32>
    %47 = arith.mulf %46, %36 : vector<192x128xf32>
    %48 = vector.extract_strided_slice %26 {offsets = [1, 0], sizes = [1, 128], strides = [1, 1]} : vector<2x128xf32> to vector<1x128xf32>
    %49 = vector.broadcast %48 : vector<1x128xf32> to vector<192x128xf32>
    %50 = arith.mulf %49, %5 : vector<192x128xf32>
    %51 = arith.addf %47, %50 : vector<192x128xf32>
    %c2_i32_16 = arith.constant 2 : i32
    %52 = tpu.dynamic_rotate %51 by %c2_i32_16 dim 0 : vector<192x128xf32>, i32 -> vector<192x128xf32>
    %cst_17 = arith.constant 0.000000e+00 : f32
    %53 = vector.broadcast %cst_17 : f32 to vector<192x128xf32>
    %54 = arith.select %16, %52, %53 : vector<192x128xi1>, vector<192x128xf32>
    %55 = vector.extract_strided_slice %28 {offsets = [2, 0], sizes = [1, 128], strides = [1, 1]} : vector<8x128xf32> to vector<1x128xf32>
    %56 = vector.broadcast %55 : vector<1x128xf32> to vector<192x128xf32>
    %57 = arith.mulf %56, %54 : vector<192x128xf32>
    %58 = arith.addf %44, %57 : vector<192x128xf32>
    %59 = vector.extract_strided_slice %28 {offsets = [3, 0], sizes = [1, 128], strides = [1, 1]} : vector<8x128xf32> to vector<1x128xf32>
    %60 = vector.broadcast %59 : vector<1x128xf32> to vector<192x128xf32>
    %61 = arith.mulf %60, %51 : vector<192x128xf32>
    %62 = arith.addf %58, %61 : vector<192x128xf32>
    %63 = vector.extract_strided_slice %26 {offsets = [0, 0], sizes = [1, 128], strides = [1, 1]} : vector<2x128xf32> to vector<1x128xf32>
    %64 = vector.broadcast %63 : vector<1x128xf32> to vector<192x128xf32>
    %65 = arith.mulf %64, %54 : vector<192x128xf32>
    %66 = vector.extract_strided_slice %26 {offsets = [1, 0], sizes = [1, 128], strides = [1, 1]} : vector<2x128xf32> to vector<1x128xf32>
    %67 = vector.broadcast %66 : vector<1x128xf32> to vector<192x128xf32>
    %68 = arith.mulf %67, %51 : vector<192x128xf32>
    %69 = arith.addf %65, %68 : vector<192x128xf32>
    %c4_i32_18 = arith.constant 4 : i32
    %70 = tpu.dynamic_rotate %69 by %c4_i32_18 dim 0 : vector<192x128xf32>, i32 -> vector<192x128xf32>
    %cst_19 = arith.constant 0.000000e+00 : f32
    %71 = vector.broadcast %cst_19 : f32 to vector<192x128xf32>
    %72 = arith.select %20, %70, %71 : vector<192x128xi1>, vector<192x128xf32>
    %73 = vector.extract_strided_slice %28 {offsets = [4, 0], sizes = [1, 128], strides = [1, 1]} : vector<8x128xf32> to vector<1x128xf32>
    %74 = vector.broadcast %73 : vector<1x128xf32> to vector<192x128xf32>
    %75 = arith.mulf %74, %72 : vector<192x128xf32>
    %76 = arith.addf %62, %75 : vector<192x128xf32>
    %77 = vector.extract_strided_slice %28 {offsets = [5, 0], sizes = [1, 128], strides = [1, 1]} : vector<8x128xf32> to vector<1x128xf32>
    %78 = vector.broadcast %77 : vector<1x128xf32> to vector<192x128xf32>
    %79 = arith.mulf %78, %69 : vector<192x128xf32>
    %80 = arith.addf %76, %79 : vector<192x128xf32>
    %81 = vector.extract_strided_slice %26 {offsets = [0, 0], sizes = [1, 128], strides = [1, 1]} : vector<2x128xf32> to vector<1x128xf32>
    %82 = vector.broadcast %81 : vector<1x128xf32> to vector<192x128xf32>
    %83 = arith.mulf %82, %72 : vector<192x128xf32>
    %84 = vector.extract_strided_slice %26 {offsets = [1, 0], sizes = [1, 128], strides = [1, 1]} : vector<2x128xf32> to vector<1x128xf32>
    %85 = vector.broadcast %84 : vector<1x128xf32> to vector<192x128xf32>
    %86 = arith.mulf %85, %69 : vector<192x128xf32>
    %87 = arith.addf %83, %86 : vector<192x128xf32>
    %c8_i32_20 = arith.constant 8 : i32
    %88 = tpu.dynamic_rotate %87 by %c8_i32_20 dim 0 : vector<192x128xf32>, i32 -> vector<192x128xf32>
    %cst_21 = arith.constant 0.000000e+00 : f32
    %89 = vector.broadcast %cst_21 : f32 to vector<192x128xf32>
    %90 = arith.select %24, %88, %89 : vector<192x128xi1>, vector<192x128xf32>
    %91 = vector.extract_strided_slice %28 {offsets = [6, 0], sizes = [1, 128], strides = [1, 1]} : vector<8x128xf32> to vector<1x128xf32>
    %92 = vector.broadcast %91 : vector<1x128xf32> to vector<192x128xf32>
    %93 = arith.mulf %92, %90 : vector<192x128xf32>
    %94 = arith.addf %80, %93 : vector<192x128xf32>
    %95 = vector.extract_strided_slice %28 {offsets = [7, 0], sizes = [1, 128], strides = [1, 1]} : vector<8x128xf32> to vector<1x128xf32>
    %96 = vector.broadcast %95 : vector<1x128xf32> to vector<192x128xf32>
    %97 = arith.mulf %96, %87 : vector<192x128xf32>
    %98 = arith.addf %94, %97 : vector<192x128xf32>
    %99 = vector.extract_strided_slice %26 {offsets = [0, 0], sizes = [1, 128], strides = [1, 1]} : vector<2x128xf32> to vector<1x128xf32>
    %100 = vector.broadcast %99 : vector<1x128xf32> to vector<192x128xf32>
    %101 = arith.mulf %100, %90 : vector<192x128xf32>
    %102 = vector.extract_strided_slice %26 {offsets = [1, 0], sizes = [1, 128], strides = [1, 1]} : vector<2x128xf32> to vector<1x128xf32>
    %103 = vector.broadcast %102 : vector<1x128xf32> to vector<192x128xf32>
    %104 = arith.mulf %103, %87 : vector<192x128xf32>
    %105 = arith.addf %101, %104 : vector<192x128xf32>
    %106 = vector.extract_strided_slice %30 {offsets = [1, 0], sizes = [1, 128], strides = [1, 1]} : vector<2x128xf32> to vector<1x128xf32>
    %107 = vector.broadcast %106 : vector<1x128xf32> to vector<192x128xf32>
    %108 = arith.mulf %107, %105 : vector<192x128xf32>
    %109 = arith.addf %98, %108 : vector<192x128xf32>
    %cst_22 = arith.constant 5.000000e-01 : f32
    %110 = vector.broadcast %cst_22 : f32 to vector<192x128xf32>
    %111 = arith.mulf %110, %109 : vector<192x128xf32>
    %cst_23 = arith.constant 0.707106769 : f32
    %112 = vector.broadcast %cst_23 : f32 to vector<192x128xf32>
    %113 = arith.mulf %109, %112 : vector<192x128xf32>
    %114 = math.erf %113 : vector<192x128xf32>
    %cst_24 = arith.constant 1.000000e+00 : f32
    %115 = vector.broadcast %cst_24 : f32 to vector<192x128xf32>
    %116 = arith.addf %115, %114 : vector<192x128xf32>
    %117 = arith.mulf %111, %116 : vector<192x128xf32>
    %c0_25 = arith.constant 0 : index
    %c0_26 = arith.constant 0 : index
    %c0_27 = arith.constant 0 : index
    %118 = vector.load %arg7[%c0_25, %c0_26, %c0_27] : memref<2x128x256xf32, #tpu.memory_space<vmem>>, vector<1x128x256xf32>
    %119 = vector.shape_cast %118 : vector<1x128x256xf32> to vector<128x256xf32>
    %cst_28 = arith.constant dense<0.000000e+00> : vector<192x256xf32>
    %120 = tpu.matmul %117, %119, %cst_28 {dimension_numbers = #tpu.dot_dimension_numbers<[1], [0], [0], [1], [0, 0, 1, 1], [], []>} : vector<192x128xf32>, vector<128x256xf32>, vector<192x256xf32> -> vector<192x256xf32>
    %c0_29 = arith.constant 0 : index
    %c0_30 = arith.constant 0 : index
    %c0_31 = arith.constant 0 : index
    %121 = vector.load %arg8[%c0_29, %c0_30, %c0_31] : memref<2x1x256xf32, #tpu.memory_space<vmem>>, vector<1x1x256xf32>
    %122 = vector.shape_cast %121 : vector<1x1x256xf32> to vector<1x256xf32>
    %123 = vector.broadcast %122 : vector<1x256xf32> to vector<192x256xf32>
    %124 = arith.addf %120, %123 : vector<192x256xf32>
    %125 = vector.extract_strided_slice %124 {offsets = [0, 0], sizes = [192, 128], strides = [1, 1]} : vector<192x256xf32> to vector<192x128xf32>
    %126 = vector.extract_strided_slice %124 {offsets = [0, 128], sizes = [192, 128], strides = [1, 1]} : vector<192x256xf32> to vector<192x128xf32>
    %127 = arith.negf %126 : vector<192x128xf32>
    %128 = math.exp %127 : vector<192x128xf32>
    %cst_32 = arith.constant 1.000000e+00 : f32
    %129 = vector.broadcast %cst_32 : f32 to vector<192x128xf32>
    %130 = arith.addf %129, %128 : vector<192x128xf32>
    %131 = arith.divf %129, %130 : vector<192x128xf32>
    %132 = arith.mulf %125, %131 : vector<192x128xf32>
    %133 = arith.addf %132, %5 : vector<192x128xf32>
    %cst_33 = arith.constant dense<0.000000e+00> : vector<192xf32>
    %134 = vector.multi_reduction <add>, %133, %cst_33 [1] : vector<192x128xf32> to vector<192xf32>
    %135 = vector.shape_cast %134 : vector<192xf32> to vector<192x1xf32>
    %cst_34 = arith.constant 1.280000e+02 : f32
    %136 = vector.broadcast %cst_34 : f32 to vector<192x1xf32>
    %137 = arith.divf %135, %136 : vector<192x1xf32>
    %138 = vector.broadcast %137 : vector<192x1xf32> to vector<192x128xf32>
    %139 = arith.subf %133, %138 : vector<192x128xf32>
    %140 = arith.mulf %139, %139 : vector<192x128xf32>
    %cst_35 = arith.constant dense<0.000000e+00> : vector<192xf32>
    %141 = vector.multi_reduction <add>, %140, %cst_35 [1] : vector<192x128xf32> to vector<192xf32>
    %142 = vector.shape_cast %141 : vector<192xf32> to vector<192x1xf32>
    %cst_36 = arith.constant 1.280000e+02 : f32
    %143 = vector.broadcast %cst_36 : f32 to vector<192x1xf32>
    %144 = arith.divf %142, %143 : vector<192x1xf32>
    %cst_37 = arith.constant 9.99999974E-6 : f32
    %145 = vector.broadcast %cst_37 : f32 to vector<192x1xf32>
    %146 = arith.addf %144, %145 : vector<192x1xf32>
    %147 = math.rsqrt %146 : vector<192x1xf32>
    %c0_38 = arith.constant 0 : index
    %c0_39 = arith.constant 0 : index
    %c0_40 = arith.constant 0 : index
    %148 = vector.load %arg9[%c0_38, %c0_39, %c0_40] : memref<2x1x128xf32, #tpu.memory_space<vmem>>, vector<1x1x128xf32>
    %149 = vector.shape_cast %148 : vector<1x1x128xf32> to vector<1x128xf32>
    %150 = vector.broadcast %147 : vector<192x1xf32> to vector<192x128xf32>
    %151 = vector.broadcast %149 : vector<1x128xf32> to vector<192x128xf32>
    %152 = arith.mulf %150, %151 : vector<192x128xf32>
    %153 = arith.mulf %139, %152 : vector<192x128xf32>
    %c0_41 = arith.constant 0 : index
    %c0_42 = arith.constant 0 : index
    %c0_43 = arith.constant 0 : index
    %154 = vector.load %arg10[%c0_41, %c0_42, %c0_43] : memref<2x1x128xf32, #tpu.memory_space<vmem>>, vector<1x1x128xf32>
    %155 = vector.shape_cast %154 : vector<1x1x128xf32> to vector<1x128xf32>
    %156 = vector.broadcast %155 : vector<1x128xf32> to vector<192x128xf32>
    %157 = arith.addf %153, %156 : vector<192x128xf32>
    %c1 = arith.constant 1 : index
    %c0_44 = arith.constant 0 : index
    %c0_45 = arith.constant 0 : index
    %158 = vector.load %arg4[%c1, %c0_44, %c0_45] : memref<2x2x128xf32, #tpu.memory_space<vmem>>, vector<1x2x128xf32>
    %159 = vector.shape_cast %158 : vector<1x2x128xf32> to vector<2x128xf32>
    %c1_46 = arith.constant 1 : index
    %c0_47 = arith.constant 0 : index
    %c0_48 = arith.constant 0 : index
    %160 = vector.load %arg5[%c1_46, %c0_47, %c0_48] : memref<2x8x128xf32, #tpu.memory_space<vmem>>, vector<1x8x128xf32>
    %161 = vector.shape_cast %160 : vector<1x8x128xf32> to vector<8x128xf32>
    %c1_49 = arith.constant 1 : index
    %c0_50 = arith.constant 0 : index
    %c0_51 = arith.constant 0 : index
    %162 = vector.load %arg6[%c1_49, %c0_50, %c0_51] : memref<2x2x128xf32, #tpu.memory_space<vmem>>, vector<1x2x128xf32>
    %163 = vector.shape_cast %162 : vector<1x2x128xf32> to vector<2x128xf32>
    %164 = vector.extract_strided_slice %163 {offsets = [0, 0], sizes = [1, 128], strides = [1, 1]} : vector<2x128xf32> to vector<1x128xf32>
    %165 = vector.broadcast %164 : vector<1x128xf32> to vector<192x128xf32>
    %166 = arith.mulf %165, %157 : vector<192x128xf32>
    %c1_i32_52 = arith.constant 1 : i32
    %167 = tpu.dynamic_rotate %157 by %c1_i32_52 dim 0 : vector<192x128xf32>, i32 -> vector<192x128xf32>
    %cst_53 = arith.constant 0.000000e+00 : f32
    %168 = vector.broadcast %cst_53 : f32 to vector<192x128xf32>
    %169 = arith.select %12, %167, %168 : vector<192x128xi1>, vector<192x128xf32>
    %170 = vector.extract_strided_slice %161 {offsets = [0, 0], sizes = [1, 128], strides = [1, 1]} : vector<8x128xf32> to vector<1x128xf32>
    %171 = vector.broadcast %170 : vector<1x128xf32> to vector<192x128xf32>
    %172 = arith.mulf %171, %169 : vector<192x128xf32>
    %173 = arith.addf %166, %172 : vector<192x128xf32>
    %174 = vector.extract_strided_slice %161 {offsets = [1, 0], sizes = [1, 128], strides = [1, 1]} : vector<8x128xf32> to vector<1x128xf32>
    %175 = vector.broadcast %174 : vector<1x128xf32> to vector<192x128xf32>
    %176 = arith.mulf %175, %157 : vector<192x128xf32>
    %177 = arith.addf %173, %176 : vector<192x128xf32>
    %178 = vector.extract_strided_slice %159 {offsets = [0, 0], sizes = [1, 128], strides = [1, 1]} : vector<2x128xf32> to vector<1x128xf32>
    %179 = vector.broadcast %178 : vector<1x128xf32> to vector<192x128xf32>
    %180 = arith.mulf %179, %169 : vector<192x128xf32>
    %181 = vector.extract_strided_slice %159 {offsets = [1, 0], sizes = [1, 128], strides = [1, 1]} : vector<2x128xf32> to vector<1x128xf32>
    %182 = vector.broadcast %181 : vector<1x128xf32> to vector<192x128xf32>
    %183 = arith.mulf %182, %157 : vector<192x128xf32>
    %184 = arith.addf %180, %183 : vector<192x128xf32>
    %c2_i32_54 = arith.constant 2 : i32
    %185 = tpu.dynamic_rotate %184 by %c2_i32_54 dim 0 : vector<192x128xf32>, i32 -> vector<192x128xf32>
    %cst_55 = arith.constant 0.000000e+00 : f32
    %186 = vector.broadcast %cst_55 : f32 to vector<192x128xf32>
    %187 = arith.select %16, %185, %186 : vector<192x128xi1>, vector<192x128xf32>
    %188 = vector.extract_strided_slice %161 {offsets = [2, 0], sizes = [1, 128], strides = [1, 1]} : vector<8x128xf32> to vector<1x128xf32>
    %189 = vector.broadcast %188 : vector<1x128xf32> to vector<192x128xf32>
    %190 = arith.mulf %189, %187 : vector<192x128xf32>
    %191 = arith.addf %177, %190 : vector<192x128xf32>
    %192 = vector.extract_strided_slice %161 {offsets = [3, 0], sizes = [1, 128], strides = [1, 1]} : vector<8x128xf32> to vector<1x128xf32>
    %193 = vector.broadcast %192 : vector<1x128xf32> to vector<192x128xf32>
    %194 = arith.mulf %193, %184 : vector<192x128xf32>
    %195 = arith.addf %191, %194 : vector<192x128xf32>
    %196 = vector.extract_strided_slice %159 {offsets = [0, 0], sizes = [1, 128], strides = [1, 1]} : vector<2x128xf32> to vector<1x128xf32>
    %197 = vector.broadcast %196 : vector<1x128xf32> to vector<192x128xf32>
    %198 = arith.mulf %197, %187 : vector<192x128xf32>
    %199 = vector.extract_strided_slice %159 {offsets = [1, 0], sizes = [1, 128], strides = [1, 1]} : vector<2x128xf32> to vector<1x128xf32>
    %200 = vector.broadcast %199 : vector<1x128xf32> to vector<192x128xf32>
    %201 = arith.mulf %200, %184 : vector<192x128xf32>
    %202 = arith.addf %198, %201 : vector<192x128xf32>
    %c4_i32_56 = arith.constant 4 : i32
    %203 = tpu.dynamic_rotate %202 by %c4_i32_56 dim 0 : vector<192x128xf32>, i32 -> vector<192x128xf32>
    %cst_57 = arith.constant 0.000000e+00 : f32
    %204 = vector.broadcast %cst_57 : f32 to vector<192x128xf32>
    %205 = arith.select %20, %203, %204 : vector<192x128xi1>, vector<192x128xf32>
    %206 = vector.extract_strided_slice %161 {offsets = [4, 0], sizes = [1, 128], strides = [1, 1]} : vector<8x128xf32> to vector<1x128xf32>
    %207 = vector.broadcast %206 : vector<1x128xf32> to vector<192x128xf32>
    %208 = arith.mulf %207, %205 : vector<192x128xf32>
    %209 = arith.addf %195, %208 : vector<192x128xf32>
    %210 = vector.extract_strided_slice %161 {offsets = [5, 0], sizes = [1, 128], strides = [1, 1]} : vector<8x128xf32> to vector<1x128xf32>
    %211 = vector.broadcast %210 : vector<1x128xf32> to vector<192x128xf32>
    %212 = arith.mulf %211, %202 : vector<192x128xf32>
    %213 = arith.addf %209, %212 : vector<192x128xf32>
    %214 = vector.extract_strided_slice %159 {offsets = [0, 0], sizes = [1, 128], strides = [1, 1]} : vector<2x128xf32> to vector<1x128xf32>
    %215 = vector.broadcast %214 : vector<1x128xf32> to vector<192x128xf32>
    %216 = arith.mulf %215, %205 : vector<192x128xf32>
    %217 = vector.extract_strided_slice %159 {offsets = [1, 0], sizes = [1, 128], strides = [1, 1]} : vector<2x128xf32> to vector<1x128xf32>
    %218 = vector.broadcast %217 : vector<1x128xf32> to vector<192x128xf32>
    %219 = arith.mulf %218, %202 : vector<192x128xf32>
    %220 = arith.addf %216, %219 : vector<192x128xf32>
    %c8_i32_58 = arith.constant 8 : i32
    %221 = tpu.dynamic_rotate %220 by %c8_i32_58 dim 0 : vector<192x128xf32>, i32 -> vector<192x128xf32>
    %cst_59 = arith.constant 0.000000e+00 : f32
    %222 = vector.broadcast %cst_59 : f32 to vector<192x128xf32>
    %223 = arith.select %24, %221, %222 : vector<192x128xi1>, vector<192x128xf32>
    %224 = vector.extract_strided_slice %161 {offsets = [6, 0], sizes = [1, 128], strides = [1, 1]} : vector<8x128xf32> to vector<1x128xf32>
    %225 = vector.broadcast %224 : vector<1x128xf32> to vector<192x128xf32>
    %226 = arith.mulf %225, %223 : vector<192x128xf32>
    %227 = arith.addf %213, %226 : vector<192x128xf32>
    %228 = vector.extract_strided_slice %161 {offsets = [7, 0], sizes = [1, 128], strides = [1, 1]} : vector<8x128xf32> to vector<1x128xf32>
    %229 = vector.broadcast %228 : vector<1x128xf32> to vector<192x128xf32>
    %230 = arith.mulf %229, %220 : vector<192x128xf32>
    %231 = arith.addf %227, %230 : vector<192x128xf32>
    %232 = vector.extract_strided_slice %159 {offsets = [0, 0], sizes = [1, 128], strides = [1, 1]} : vector<2x128xf32> to vector<1x128xf32>
    %233 = vector.broadcast %232 : vector<1x128xf32> to vector<192x128xf32>
    %234 = arith.mulf %233, %223 : vector<192x128xf32>
    %235 = vector.extract_strided_slice %159 {offsets = [1, 0], sizes = [1, 128], strides = [1, 1]} : vector<2x128xf32> to vector<1x128xf32>
    %236 = vector.broadcast %235 : vector<1x128xf32> to vector<192x128xf32>
    %237 = arith.mulf %236, %220 : vector<192x128xf32>
    %238 = arith.addf %234, %237 : vector<192x128xf32>
    %239 = vector.extract_strided_slice %163 {offsets = [1, 0], sizes = [1, 128], strides = [1, 1]} : vector<2x128xf32> to vector<1x128xf32>
    %240 = vector.broadcast %239 : vector<1x128xf32> to vector<192x128xf32>
    %241 = arith.mulf %240, %238 : vector<192x128xf32>
    %242 = arith.addf %231, %241 : vector<192x128xf32>
    %cst_60 = arith.constant 5.000000e-01 : f32
    %243 = vector.broadcast %cst_60 : f32 to vector<192x128xf32>
    %244 = arith.mulf %243, %242 : vector<192x128xf32>
    %cst_61 = arith.constant 0.707106769 : f32
    %245 = vector.broadcast %cst_61 : f32 to vector<192x128xf32>
    %246 = arith.mulf %242, %245 : vector<192x128xf32>
    %247 = math.erf %246 : vector<192x128xf32>
    %cst_62 = arith.constant 1.000000e+00 : f32
    %248 = vector.broadcast %cst_62 : f32 to vector<192x128xf32>
    %249 = arith.addf %248, %247 : vector<192x128xf32>
    %250 = arith.mulf %244, %249 : vector<192x128xf32>
    %c1_63 = arith.constant 1 : index
    %c0_64 = arith.constant 0 : index
    %c0_65 = arith.constant 0 : index
    %251 = vector.load %arg7[%c1_63, %c0_64, %c0_65] : memref<2x128x256xf32, #tpu.memory_space<vmem>>, vector<1x128x256xf32>
    %252 = vector.shape_cast %251 : vector<1x128x256xf32> to vector<128x256xf32>
    %cst_66 = arith.constant dense<0.000000e+00> : vector<192x256xf32>
    %253 = tpu.matmul %250, %252, %cst_66 {dimension_numbers = #tpu.dot_dimension_numbers<[1], [0], [0], [1], [0, 0, 1, 1], [], []>} : vector<192x128xf32>, vector<128x256xf32>, vector<192x256xf32> -> vector<192x256xf32>
    %c1_67 = arith.constant 1 : index
    %c0_68 = arith.constant 0 : index
    %c0_69 = arith.constant 0 : index
    %254 = vector.load %arg8[%c1_67, %c0_68, %c0_69] : memref<2x1x256xf32, #tpu.memory_space<vmem>>, vector<1x1x256xf32>
    %255 = vector.shape_cast %254 : vector<1x1x256xf32> to vector<1x256xf32>
    %256 = vector.broadcast %255 : vector<1x256xf32> to vector<192x256xf32>
    %257 = arith.addf %253, %256 : vector<192x256xf32>
    %258 = vector.extract_strided_slice %257 {offsets = [0, 0], sizes = [192, 128], strides = [1, 1]} : vector<192x256xf32> to vector<192x128xf32>
    %259 = vector.extract_strided_slice %257 {offsets = [0, 128], sizes = [192, 128], strides = [1, 1]} : vector<192x256xf32> to vector<192x128xf32>
    %260 = arith.negf %259 : vector<192x128xf32>
    %261 = math.exp %260 : vector<192x128xf32>
    %cst_70 = arith.constant 1.000000e+00 : f32
    %262 = vector.broadcast %cst_70 : f32 to vector<192x128xf32>
    %263 = arith.addf %262, %261 : vector<192x128xf32>
    %264 = arith.divf %262, %263 : vector<192x128xf32>
    %265 = arith.mulf %258, %264 : vector<192x128xf32>
    %266 = arith.addf %265, %157 : vector<192x128xf32>
    %cst_71 = arith.constant dense<0.000000e+00> : vector<192xf32>
    %267 = vector.multi_reduction <add>, %266, %cst_71 [1] : vector<192x128xf32> to vector<192xf32>
    %268 = vector.shape_cast %267 : vector<192xf32> to vector<192x1xf32>
    %cst_72 = arith.constant 1.280000e+02 : f32
    %269 = vector.broadcast %cst_72 : f32 to vector<192x1xf32>
    %270 = arith.divf %268, %269 : vector<192x1xf32>
    %271 = vector.broadcast %270 : vector<192x1xf32> to vector<192x128xf32>
    %272 = arith.subf %266, %271 : vector<192x128xf32>
    %273 = arith.mulf %272, %272 : vector<192x128xf32>
    %cst_73 = arith.constant dense<0.000000e+00> : vector<192xf32>
    %274 = vector.multi_reduction <add>, %273, %cst_73 [1] : vector<192x128xf32> to vector<192xf32>
    %275 = vector.shape_cast %274 : vector<192xf32> to vector<192x1xf32>
    %cst_74 = arith.constant 1.280000e+02 : f32
    %276 = vector.broadcast %cst_74 : f32 to vector<192x1xf32>
    %277 = arith.divf %275, %276 : vector<192x1xf32>
    %cst_75 = arith.constant 9.99999974E-6 : f32
    %278 = vector.broadcast %cst_75 : f32 to vector<192x1xf32>
    %279 = arith.addf %277, %278 : vector<192x1xf32>
    %280 = math.rsqrt %279 : vector<192x1xf32>
    %c1_76 = arith.constant 1 : index
    %c0_77 = arith.constant 0 : index
    %c0_78 = arith.constant 0 : index
    %281 = vector.load %arg9[%c1_76, %c0_77, %c0_78] : memref<2x1x128xf32, #tpu.memory_space<vmem>>, vector<1x1x128xf32>
    %282 = vector.shape_cast %281 : vector<1x1x128xf32> to vector<1x128xf32>
    %283 = vector.broadcast %280 : vector<192x1xf32> to vector<192x128xf32>
    %284 = vector.broadcast %282 : vector<1x128xf32> to vector<192x128xf32>
    %285 = arith.mulf %283, %284 : vector<192x128xf32>
    %286 = arith.mulf %272, %285 : vector<192x128xf32>
    %c1_79 = arith.constant 1 : index
    %c0_80 = arith.constant 0 : index
    %c0_81 = arith.constant 0 : index
    %287 = vector.load %arg10[%c1_79, %c0_80, %c0_81] : memref<2x1x128xf32, #tpu.memory_space<vmem>>, vector<1x1x128xf32>
    %288 = vector.shape_cast %287 : vector<1x1x128xf32> to vector<1x128xf32>
    %289 = vector.broadcast %288 : vector<1x128xf32> to vector<192x128xf32>
    %290 = arith.addf %286, %289 : vector<192x128xf32>
    %c0_82 = arith.constant 0 : index
    %c0_83 = arith.constant 0 : index
    %291 = vector.load %arg11[%c0_82, %c0_83] : memref<128x128xf32, #tpu.memory_space<vmem>>, vector<128x128xf32>
    %cst_84 = arith.constant dense<0.000000e+00> : vector<192x128xf32>
    %292 = tpu.matmul %290, %291, %cst_84 {dimension_numbers = #tpu.dot_dimension_numbers<[1], [0], [0], [1], [0, 0, 1, 1], [], []>} : vector<192x128xf32>, vector<128x128xf32>, vector<192x128xf32> -> vector<192x128xf32>
    %c0_85 = arith.constant 0 : index
    %c0_86 = arith.constant 0 : index
    %293 = vector.load %arg13[%c0_85, %c0_86] : memref<12x192xf32, #tpu.memory_space<vmem>>, vector<12x192xf32>
    %cst_87 = arith.constant dense<0.000000e+00> : vector<12x128xf32>
    %294 = tpu.matmul %293, %292, %cst_87 {dimension_numbers = #tpu.dot_dimension_numbers<[1], [0], [0], [1], [0, 0, 1, 1], [], []>} : vector<12x192xf32>, vector<192x128xf32>, vector<12x128xf32> -> vector<12x128xf32>
    %c0_88 = arith.constant 0 : index
    %c0_89 = arith.constant 0 : index
    %295 = vector.load %arg12[%c0_88, %c0_89] : memref<1x128xf32, #tpu.memory_space<vmem>>, vector<1x128xf32>
    %296 = vector.broadcast %295 : vector<1x128xf32> to vector<12x128xf32>
    %297 = arith.addf %294, %296 : vector<12x128xf32>
    %c0_90 = arith.constant 0 : index
    %c0_91 = arith.constant 0 : index
    %298 = vector.load %arg14[%c0_90, %c0_91] : memref<12x128xf32, #tpu.memory_space<vmem>>, vector<12x128xf32>
    tpu.vector_store %arg14[%c0_90, %c0_91], %297 {strides = array<i32>} : memref<12x128xf32, #tpu.memory_space<vmem>>, vector<12x128xf32>,
    return
  }
  func.func @transform_0(%arg0: i32) -> (i32, i32) {
    %c0_i32 = arith.constant 0 : i32
    %c0_i32_0 = arith.constant 0 : i32
    return %arg0, %c0_i32 : i32, i32
  }
  func.func @transform_1(%arg0: i32) -> (i32, i32) {
    %c0_i32 = arith.constant 0 : i32
    %c0_i32_0 = arith.constant 0 : i32
    %c0_i32_1 = arith.constant 0 : i32
    return %c0_i32, %c0_i32_0 : i32, i32
  }
  func.func @transform_2(%arg0: i32) -> (i32, i32) {
    %c0_i32 = arith.constant 0 : i32
    %c0_i32_0 = arith.constant 0 : i32
    %c0_i32_1 = arith.constant 0 : i32
    return %c0_i32, %c0_i32_0 : i32, i32
  }
  func.func @transform_3(%arg0: i32) -> (i32, i32, i32) {
    %c0_i32 = arith.constant 0 : i32
    %c0_i32_0 = arith.constant 0 : i32
    %c0_i32_1 = arith.constant 0 : i32
    %c0_i32_2 = arith.constant 0 : i32
    return %c0_i32, %c0_i32_0, %c0_i32_1 : i32, i32, i32
  }
  func.func @transform_4(%arg0: i32) -> (i32, i32, i32) {
    %c0_i32 = arith.constant 0 : i32
    %c0_i32_0 = arith.constant 0 : i32
    %c0_i32_1 = arith.constant 0 : i32
    %c0_i32_2 = arith.constant 0 : i32
    return %c0_i32, %c0_i32_0, %c0_i32_1 : i32, i32, i32
  }
  func.func @transform_5(%arg0: i32) -> (i32, i32, i32) {
    %c0_i32 = arith.constant 0 : i32
    %c0_i32_0 = arith.constant 0 : i32
    %c0_i32_1 = arith.constant 0 : i32
    %c0_i32_2 = arith.constant 0 : i32
    return %c0_i32, %c0_i32_0, %c0_i32_1 : i32, i32, i32
  }
  func.func @transform_6(%arg0: i32) -> (i32, i32, i32) {
    %c0_i32 = arith.constant 0 : i32
    %c0_i32_0 = arith.constant 0 : i32
    %c0_i32_1 = arith.constant 0 : i32
    %c0_i32_2 = arith.constant 0 : i32
    return %c0_i32, %c0_i32_0, %c0_i32_1 : i32, i32, i32
  }
  func.func @transform_7(%arg0: i32) -> (i32, i32, i32) {
    %c0_i32 = arith.constant 0 : i32
    %c0_i32_0 = arith.constant 0 : i32
    %c0_i32_1 = arith.constant 0 : i32
    %c0_i32_2 = arith.constant 0 : i32
    return %c0_i32, %c0_i32_0, %c0_i32_1 : i32, i32, i32
  }
  func.func @transform_8(%arg0: i32) -> (i32, i32, i32) {
    %c0_i32 = arith.constant 0 : i32
    %c0_i32_0 = arith.constant 0 : i32
    %c0_i32_1 = arith.constant 0 : i32
    %c0_i32_2 = arith.constant 0 : i32
    return %c0_i32, %c0_i32_0, %c0_i32_1 : i32, i32, i32
  }
  func.func @transform_9(%arg0: i32) -> (i32, i32, i32) {
    %c0_i32 = arith.constant 0 : i32
    %c0_i32_0 = arith.constant 0 : i32
    %c0_i32_1 = arith.constant 0 : i32
    %c0_i32_2 = arith.constant 0 : i32
    return %c0_i32, %c0_i32_0, %c0_i32_1 : i32, i32, i32
  }
  func.func @transform_10(%arg0: i32) -> (i32, i32) {
    %c0_i32 = arith.constant 0 : i32
    %c0_i32_0 = arith.constant 0 : i32
    %c0_i32_1 = arith.constant 0 : i32
    return %c0_i32, %c0_i32_0 : i32, i32
  }
  func.func @transform_11(%arg0: i32) -> (i32, i32) {
    %c0_i32 = arith.constant 0 : i32
    %c0_i32_0 = arith.constant 0 : i32
    %c0_i32_1 = arith.constant 0 : i32
    return %c0_i32, %c0_i32_0 : i32, i32
  }
  func.func @transform_12(%arg0: i32) -> (i32, i32) {
    %c0_i32 = arith.constant 0 : i32
    %c0_i32_0 = arith.constant 0 : i32
    %c0_i32_1 = arith.constant 0 : i32
    return %c0_i32, %c0_i32_0 : i32, i32
  }
  func.func @transform_13(%arg0: i32) -> (i32, i32) {
    %c0_i32 = arith.constant 0 : i32
    %c0_i32_0 = arith.constant 0 : i32
    return %arg0, %c0_i32 : i32, i32
  }
}

</mosaic_0001>

<llo_original>
// kernel: tpu_custom_call.1
$region0: #{tpu_custom_call.1}
  #allocation0 [shape = 'u32[]', space=smem, size = 0x4, offset = 0x4, fixed_abs, tag = 'smem constant byte address 0x4 - core index']
  #allocation1 [shape = 'u32[144,128]{1,0:T(1,128)}', space=vmem, size = 0x12000, scoped, tag = 'internal scratch']
  %s0 = inlined_call_operand.vmem [shape: f32[192,4], index: 0, kind: input, shape index: {}]
  %s1 = inlined_call_operand.vmem [shape: f32[4,128], index: 1, kind: input, shape index: {}]
  %s2 = inlined_call_operand.vmem [shape: f32[1,128], index: 2, kind: input, shape index: {}]
  %s3 = inlined_call_operand.vmem [shape: f32[2,2,128], index: 3, kind: input, shape index: {}]
  %s4 = inlined_call_operand.vmem [shape: f32[2,8,128], index: 4, kind: input, shape index: {}]
  %s5 = inlined_call_operand.vmem [shape: f32[2,2,128], index: 5, kind: input, shape index: {}]
  %s6 = inlined_call_operand.hbm [shape: f32[2,128,256], index: 6, kind: input, shape index: {}]
  %s7 = inlined_call_operand.vmem [shape: f32[2,1,256], index: 7, kind: input, shape index: {}]
  %s8 = inlined_call_operand.vmem [shape: f32[2,1,128], index: 8, kind: input, shape index: {}]
  %s9 = inlined_call_operand.vmem [shape: f32[2,1,128], index: 9, kind: input, shape index: {}]
  %s10 = inlined_call_operand.vmem [shape: f32[128,128], index: 10, kind: input, shape index: {}]
  %s11 = inlined_call_operand.vmem [shape: f32[1,128], index: 11, kind: input, shape index: {}]
  %s12 = inlined_call_operand.vmem [shape: f32[12,192], index: 12, kind: input, shape index: {}]
  %s13 = inlined_call_operand.hbm [shape: f32[12,128], index: 13, kind: output, shape index: {}]
  %s14 = sld [smem:[#allocation0]]
  $region66: #{tpu_custom_call.1} parent=0
    _
  %s16 = ssub.s32 1, %s14
  %s17 = scalar_select 0, %s16, %s14
  $region1: #{tpu_custom_call.1} parent=0
    #allocation2 [shape = 'u8[262144]{0}', space=vmem, size = 0x40000, scoped, tag = 'input window, operand 6, single buffered']
    #allocation3 [shape = 's32[1]{0}', space=sflag, size = 0x4, scoped, tag = 'scoped memory for tpu_custom_call.1']
    #allocation4 [shape = 's32[1]{0}', space=sflag, size = 0x4, scoped, tag = 'scoped memory for tpu_custom_call.1']
    #allocation5 [shape = 'u8[8192]{0}', space=vmem, size = 0x2000, scoped, tag = 'output window, operand 0, single buffered']
    %18 = vsyncpa [#allocation3], 0
    %19 = vsyncpa [#allocation4], 0
    // Predicated region
    $region2: #{tpu_custom_call.1} parent=1 // pred_check
      _
    $region3: #{tpu_custom_call.1} parent=1 // pred_check_branch
      %21 = sbr.rel (0) target = $region5
    $region4: #{tpu_custom_call.1} parent=1 // pred_region
      _
    $region5: #{tpu_custom_call.1} parent=1 // pred_fallthru
      _
    // Predicated region
    $region6: #{tpu_custom_call.1} parent=1 // pred_check
      _
    $region7: #{tpu_custom_call.1} parent=1 // pred_check_branch
      %23 = sbr.rel (0) target = $region9
    $region8: #{tpu_custom_call.1} parent=1 // pred_region
      _
    $region9: #{tpu_custom_call.1} parent=1 // pred_fallthru
      _
    // Predicated region
    $region10: #{tpu_custom_call.1} parent=1 // pred_check
      _
    $region11: #{tpu_custom_call.1} parent=1 // pred_check_branch
      %25 = sbr.rel (0) target = $region13
    $region12: #{tpu_custom_call.1} parent=1 // pred_region
      _
    $region13: #{tpu_custom_call.1} parent=1 // pred_fallthru
      _
    // Predicated region
    $region14: #{tpu_custom_call.1} parent=1 // pred_check
      _
    $region15: #{tpu_custom_call.1} parent=1 // pred_check_branch
      %27 = sbr.rel (0) target = $region17
    $region16: #{tpu_custom_call.1} parent=1 // pred_region
      _
    $region17: #{tpu_custom_call.1} parent=1 // pred_fallthru
      _
    // Predicated region
    $region18: #{tpu_custom_call.1} parent=1 // pred_check
      _
    $region19: #{tpu_custom_call.1} parent=1 // pred_check_branch
      %29 = sbr.rel (0) target = $region21
    $region20: #{tpu_custom_call.1} parent=1 // pred_region
      _
    $region21: #{tpu_custom_call.1} parent=1 // pred_fallthru
      _
    // Predicated region
    $region22: #{tpu_custom_call.1} parent=1 // pred_check
      _
    $region23: #{tpu_custom_call.1} parent=1 // pred_check_branch
      %31 = sbr.rel (0) target = $region25
    $region24: #{tpu_custom_call.1} parent=1 // pred_region
      _
    $region25: #{tpu_custom_call.1} parent=1 // pred_fallthru
      _
    // Predicated region
    $region26: #{tpu_custom_call.1} parent=1 // pred_check
      _
    $region27: #{tpu_custom_call.1} parent=1 // pred_check_branch
      %33 = sbr.rel (0) target = $region29
    $region28: #{tpu_custom_call.1} parent=1 // pred_region
      %s35 = ssub.s32 8192, 8192
      %36 = vsyncadd [#allocation3], %s35
      %s37 = sshll.u32 [#allocation2], 4
      %s38 = int_to_ptr.vmem [resolvable:$true] %s37
      %43 = dma.hbm_to_vmem [thread:$0]  %s6, 8192, %s38, [#allocation3], 256, 256, 16
    $region29: #{tpu_custom_call.1} parent=1 // pred_fallthru
      _
    // Predicated region
    $region30: #{tpu_custom_call.1} parent=1 // pred_check
      _
    $region31: #{tpu_custom_call.1} parent=1 // pred_check_branch
      %45 = sbr.rel (0) target = $region33
    $region32: #{tpu_custom_call.1} parent=1 // pred_region
      _
    $region33: #{tpu_custom_call.1} parent=1 // pred_fallthru
      _
    // Predicated region
    $region34: #{tpu_custom_call.1} parent=1 // pred_check
      _
    $region35: #{tpu_custom_call.1} parent=1 // pred_check_branch
      %47 = sbr.rel (0) target = $region37
    $region36: #{tpu_custom_call.1} parent=1 // pred_region
      _
    $region37: #{tpu_custom_call.1} parent=1 // pred_fallthru
      _
    // Predicated region
    $region38: #{tpu_custom_call.1} parent=1 // pred_check
      _
    $region39: #{tpu_custom_call.1} parent=1 // pred_check_branch
      %49 = sbr.rel (0) target = $region41
    $region40: #{tpu_custom_call.1} parent=1 // pred_region
      _
    $region41: #{tpu_custom_call.1} parent=1 // pred_fallthru
      _
    // Predicated region
    $region42: #{tpu_custom_call.1} parent=1 // pred_check
      _
    $region43: #{tpu_custom_call.1} parent=1 // pred_check_branch
      %51 = sbr.rel (0) target = $region45
    $region44: #{tpu_custom_call.1} parent=1 // pred_region
      _
    $region45: #{tpu_custom_call.1} parent=1 // pred_fallthru
      _
    // Predicated region
    $region46: #{tpu_custom_call.1} parent=1 // pred_check
      _
    $region47: #{tpu_custom_call.1} parent=1 // pred_check_branch
      %53 = sbr.rel (0) target = $region49
    $region48: #{tpu_custom_call.1} parent=1 // pred_region
      _
    $region49: #{tpu_custom_call.1} parent=1 // pred_fallthru
      _
    // Predicated region
    $region50: #{tpu_custom_call.1} parent=1 // pred_check
      _
    $region51: #{tpu_custom_call.1} parent=1 // pred_check_branch
      %55 = sbr.rel (0) target = $region53
    $region52: #{tpu_custom_call.1} parent=1 // pred_region
      _
    $region53: #{tpu_custom_call.1} parent=1 // pred_fallthru
      _
    // Predicated region
    $region54: #{tpu_custom_call.1} parent=1 // pred_check
      _
    $region55: #{tpu_custom_call.1} parent=1 // pred_check_branch
      %57 = sbr.rel (0) target = $region57
    $region56: #{tpu_custom_call.1} parent=1 // pred_region
      %58 = dma.done [#allocation3], 8192
    $region57: #{tpu_custom_call.1} parent=1 // pred_fallthru
      _
    %v59 = vld [vmem:[%s0] sm:$0xff]
    %v60 = vld [vmem:[%s0 + $0x8] sm:$0xff]
    %v61 = vld [vmem:[%s0 + $0x10] sm:$0xff]
    %v62 = vld [vmem:[%s0 + $0x18] sm:$0xff]
    %v63 = vld [vmem:[%s0 + $0x20] sm:$0xff]
    %v64 = vld [vmem:[%s0 + $0x28] sm:$0xff]
    %v65 = vld [vmem:[%s0 + $0x30] sm:$0xff]
    %v66 = vld [vmem:[%s0 + $0x38] sm:$0xff]
    %v67 = vld [vmem:[%s0 + $0x40] sm:$0xff]
    %v68 = vld [vmem:[%s0 + $0x48] sm:$0xff]
    %v69 = vld [vmem:[%s0 + $0x50] sm:$0xff]
    %v70 = vld [vmem:[%s0 + $0x58] sm:$0xff]
    %v71 = vld [vmem:[%s0 + $0x60] sm:$0xff]
    %v72 = vld [vmem:[%s0 + $0x68] sm:$0xff]
    %v73 = vld [vmem:[%s0 + $0x70] sm:$0xff]
    %v74 = vld [vmem:[%s0 + $0x78] sm:$0xff]
    %v75 = vld [vmem:[%s0 + $0x80] sm:$0xff]
    %v76 = vld [vmem:[%s0 + $0x88] sm:$0xff]
    %v77 = vld [vmem:[%s0 + $0x90] sm:$0xff]
    %v78 = vld [vmem:[%s0 + $0x98] sm:$0xff]
    %v79 = vld [vmem:[%s0 + $0xa0] sm:$0xff]
    %v80 = vld [vmem:[%s0 + $0xa8] sm:$0xff]
    %v81 = vld [vmem:[%s0 + $0xb0] sm:$0xff]
    %v82 = vld [vmem:[%s0 + $0xb8] sm:$0xff]
    %v83 = vld [vmem:[%s1] sm:$0xf]
    %v84 = vld [vmem:[%s2] sm:$0x1]
    %v86 = vlaneseq
    %v87 = vshrl.u32 %v86, 7
    %v88 = vsub.s32 0, %v87
    %v89 = vrot.slane %v84, %v88
    %vm91 = vcmask 31744
    %v93 = vsel %vm91, %v59, 0
    %v96 = vsel %vm91, %v60, 0
    %v99 = vsel %vm91, %v61, 0
    %v102 = vsel %vm91, %v62, 0
    %v105 = vsel %vm91, %v63, 0
    %v108 = vsel %vm91, %v64, 0
    %v111 = vsel %vm91, %v65, 0
    %v114 = vsel %vm91, %v66, 0
    %v117 = vsel %vm91, %v67, 0
    %v120 = vsel %vm91, %v68, 0
    %v123 = vsel %vm91, %v69, 0
    %v126 = vsel %vm91, %v70, 0
    %v129 = vsel %vm91, %v71, 0
    %v132 = vsel %vm91, %v72, 0
    %v135 = vsel %vm91, %v73, 0
    %v138 = vsel %vm91, %v74, 0
    %v141 = vsel %vm91, %v75, 0
    %v144 = vsel %vm91, %v76, 0
    %v147 = vsel %vm91, %v77, 0
    %v150 = vsel %vm91, %v78, 0
    %v153 = vsel %vm91, %v79, 0
    %v156 = vsel %vm91, %v80, 0
    %v159 = vsel %vm91, %v81, 0
    %v162 = vsel %vm91, %v82, 0
    %vm164 = vcmask 1043456
    %v166 = vsel %vm164, %v83, 0
    %168 = vmatprep.subr.mxu0 0.0
    %169 = vmatpush1.msra.mxu0 %v166
    %170 = vmatprep.subr.mxu0 0.0
    %171 = vmatpush1.msra.mxu0 0.0
    %172 = vmatprep.subr.mxu0 0.0
    %173 = vmatpush1.msra.mxu0 0.0
    %174 = vmatprep.subr.mxu0 0.0
    %175 = vmatpush1.msra.mxu0 0.0
    %176 = vmatprep.subr.mxu0 0.0
    %177 = vmatpush1.msra.mxu0 0.0
    %178 = vmatprep.subr.mxu0 0.0
    %179 = vmatpush1.msra.mxu0 0.0
    %180 = vmatprep.subr.mxu0 0.0
    %181 = vmatpush1.msra.mxu0 0.0
    %182 = vmatprep.subr.mxu0 0.0
    %183 = vmatpush1.msra.mxu0 0.0
    %184 = vmatprep.subr.mxu0 0.0
    %185 = vmatpush1.msra.mxu0 0.0
    %186 = vmatprep.subr.mxu0 0.0
    %187 = vmatpush1.msra.mxu0 0.0
    %188 = vmatprep.subr.mxu0 0.0
    %189 = vmatpush1.msra.mxu0 0.0
    %190 = vmatprep.subr.mxu0 0.0
    %191 = vmatpush1.msra.mxu0 0.0
    %192 = vmatprep.subr.mxu0 0.0
    %193 = vmatpush1.msra.mxu0 0.0
    %194 = vmatprep.subr.mxu0 0.0
    %195 = vmatpush1.msra.mxu0 0.0
    %196 = vmatprep.subr.mxu0 0.0
    %197 = vmatpush1.msra.mxu0 0.0
    %198 = vmatprep.subr.mxu0 0.0
    %199 = vmatpush1.msra.mxu0 0.0
    %200 = vmatprep.subr.mxu0 0.0
    %201 = vmatpush1.msra.mxu0 0.0
    %202 = vmatprep.subr.mxu0 0.0
    %203 = vmatpush1.msra.mxu0 0.0
    %204 = vmatprep.subr.mxu0 0.0
    %205 = vmatpush1.msra.mxu0 0.0
    %206 = vmatprep.subr.mxu0 0.0
    %207 = vmatpush1.msra.mxu0 0.0
    %208 = vmatprep.subr.mxu0 0.0
    %209 = vmatpush1.msra.mxu0 0.0
    %210 = vmatprep.subr.mxu0 0.0
    %211 = vmatpush1.msra.mxu0 0.0
    %212 = vmatprep.subr.mxu0 0.0
    %213 = vmatpush1.msra.mxu0 0.0
    %214 = vmatprep.subr.mxu0 0.0
    %215 = vmatpush1.msra.mxu0 0.0
    %216 = vmatprep.subr.mxu0 0.0
    %217 = vmatpush1.msra.mxu0 0.0
    %218 = vmatprep.subr.mxu0 0.0
    %219 = vmatpush1.msra.mxu0 0.0
    %220 = vmatprep.subr.mxu0 0.0
    %221 = vmatpush1.msra.mxu0 0.0
    %222 = vmatprep.subr.mxu0 0.0
    %223 = vmatpush1.msra.mxu0 0.0
    %224 = vmatprep.subr.mxu0 0.0
    %225 = vmatpush1.msra.mxu0 0.0
    %226 = vmatprep.subr.mxu0 0.0
    %227 = vmatpush1.msra.mxu0 0.0
    %228 = vmatprep.subr.mxu0 0.0
    %229 = vmatpush1.msra.mxu0 0.0
    %230 = vmatprep.subr.mxu0 0.0
    %231 = vmatpush1.msra.mxu0 0.0
    %232 = vmatprep.mubr.f32.mxu0 0.0
    %233 = vmatmul.mubr.f32.gmra.mrb[0].mxu0 %v93
    %v234 = vpop.f32.mrb[0].mxu0
    %v235 = vadd.f32 %v89, %v234
    %v236 = vpop.f32.mrb[0].mxu0
    %237 = vmatprep.mubr.f32.mxu0 0.0
    %238 = vmatmul.mubr.f32.gmra.mrb[0].mxu0 %v96
    %v239 = vpop.f32.mrb[0].mxu0
    %v240 = vadd.f32 %v89, %v239
    %v241 = vpop.f32.mrb[0].mxu0
    %242 = vmatprep.mubr.f32.mxu0 0.0
    %243 = vmatmul.mubr.f32.gmra.mrb[0].mxu0 %v99
    %v244 = vpop.f32.mrb[0].mxu0
    %v245 = vadd.f32 %v89, %v244
    %v246 = vpop.f32.mrb[0].mxu0
    %247 = vmatprep.mubr.f32.mxu0 0.0
    %248 = vmatmul.mubr.f32.gmra.mrb[0].mxu0 %v102
    %v249 = vpop.f32.mrb[0].mxu0
    %v250 = vadd.f32 %v89, %v249
    %v251 = vpop.f32.mrb[0].mxu0
    %252 = vmatprep.mubr.f32.mxu0 0.0
    %253 = vmatmul.mubr.f32.gmra.mrb[0].mxu0 %v105
    %v254 = vpop.f32.mrb[0].mxu0
    %v255 = vadd.f32 %v89, %v254
    %v256 = vpop.f32.mrb[0].mxu0
    %257 = vmatprep.mubr.f32.mxu0 0.0
    %258 = vmatmul.mubr.f32.gmra.mrb[0].mxu0 %v108
    %v259 = vpop.f32.mrb[0].mxu0
    %v260 = vadd.f32 %v89, %v259
    %v261 = vpop.f32.mrb[0].mxu0
    %262 = vmatprep.mubr.f32.mxu0 0.0
    %263 = vmatmul.mubr.f32.gmra.mrb[0].mxu0 %v111
    %v264 = vpop.f32.mrb[0].mxu0
    %v265 = vadd.f32 %v89, %v264
    %v266 = vpop.f32.mrb[0].mxu0
    %267 = vmatprep.mubr.f32.mxu0 0.0
    %268 = vmatmul.mubr.f32.gmra.mrb[0].mxu0 %v114
    %v269 = vpop.f32.mrb[0].mxu0
    %v270 = vadd.f32 %v89, %v269
    %v271 = vpop.f32.mrb[0].mxu0
    %272 = vmatprep.mubr.f32.mxu0 0.0
    %273 = vmatmul.mubr.f32.gmra.mrb[0].mxu0 %v117
    %v274 = vpop.f32.mrb[0].mxu0
    %v275 = vadd.f32 %v89, %v274
    %v276 = vpop.f32.mrb[0].mxu0
    %277 = vmatprep.mubr.f32.mxu0 0.0
    %278 = vmatmul.mubr.f32.gmra.mrb[0].mxu0 %v120
    %v279 = vpop.f32.mrb[0].mxu0
    %v280 = vadd.f32 %v89, %v279
    %v281 = vpop.f32.mrb[0].mxu0
    %282 = vmatprep.mubr.f32.mxu0 0.0
    %283 = vmatmul.mubr.f32.gmra.mrb[0].mxu0 %v123
    %v284 = vpop.f32.mrb[0].mxu0
    %v285 = vadd.f32 %v89, %v284
    %v286 = vpop.f32.mrb[0].mxu0
    %287 = vmatprep.mubr.f32.mxu0 0.0
    %288 = vmatmul.mubr.f32.gmra.mrb[0].mxu0 %v126
    %v289 = vpop.f32.mrb[0].mxu0
    %v290 = vadd.f32 %v89, %v289
    %v291 = vpop.f32.mrb[0].mxu0
    %292 = vmatprep.mubr.f32.mxu0 0.0
    %293 = vmatmul.mubr.f32.gmra.mrb[0].mxu0 %v129
    %v294 = vpop.f32.mrb[0].mxu0
    %v295 = vadd.f32 %v89, %v294
    %v296 = vpop.f32.mrb[0].mxu0
    %297 = vmatprep.mubr.f32.mxu0 0.0
    %298 = vmatmul.mubr.f32.gmra.mrb[0].mxu0 %v132
    %v299 = vpop.f32.mrb[0].mxu0
    %v300 = vadd.f32 %v89, %v299
    %v301 = vpop.f32.mrb[0].mxu0
    %302 = vmatprep.mubr.f32.mxu0 0.0
    %303 = vmatmul.mubr.f32.gmra.mrb[0].mxu0 %v135
    %v304 = vpop.f32.mrb[0].mxu0
    %v305 = vadd.f32 %v89, %v304
    %v306 = vpop.f32.mrb[0].mxu0
    %307 = vmatprep.mubr.f32.mxu0 0.0
    %308 = vmatmul.mubr.f32.gmra.mrb[0].mxu0 %v138
    %v309 = vpop.f32.mrb[0].mxu0
    %v310 = vadd.f32 %v89, %v309
    %v311 = vpop.f32.mrb[0].mxu0
    %312 = vmatprep.mubr.f32.mxu0 0.0
    %313 = vmatmul.mubr.f32.gmra.mrb[0].mxu0 %v141
    %v314 = vpop.f32.mrb[0].mxu0
    %v315 = vadd.f32 %v89, %v314
    %v316 = vpop.f32.mrb[0].mxu0
    %317 = vmatprep.mubr.f32.mxu0 0.0
    %318 = vmatmul.mubr.f32.gmra.mrb[0].mxu0 %v144
    %v319 = vpop.f32.mrb[0].mxu0
    %v320 = vadd.f32 %v89, %v319
    %v321 = vpop.f32.mrb[0].mxu0
    %322 = vmatprep.mubr.f32.mxu0 0.0
    %323 = vmatmul.mubr.f32.gmra.mrb[0].mxu0 %v147
    %v324 = vpop.f32.mrb[0].mxu0
    %v325 = vadd.f32 %v89, %v324
    %v326 = vpop.f32.mrb[0].mxu0
    %327 = vmatprep.mubr.f32.mxu0 0.0
    %328 = vmatmul.mubr.f32.gmra.mrb[0].mxu0 %v150
    %v329 = vpop.f32.mrb[0].mxu0
    %v330 = vadd.f32 %v89, %v329
    %v331 = vpop.f32.mrb[0].mxu0
    %332 = vmatprep.mubr.f32.mxu0 0.0
    %333 = vmatmul.mubr.f32.gmra.mrb[0].mxu0 %v153
    %v334 = vpop.f32.mrb[0].mxu0
    %v335 = vadd.f32 %v89, %v334
    %v336 = vpop.f32.mrb[0].mxu0
    %337 = vmatprep.mubr.f32.mxu0 0.0
    %338 = vmatmul.mubr.f32.gmra.mrb[0].mxu0 %v156
    %v339 = vpop.f32.mrb[0].mxu0
    %v340 = vadd.f32 %v89, %v339
    %v341 = vpop.f32.mrb[0].mxu0
    %342 = vmatprep.mubr.f32.mxu0 0.0
    %343 = vmatmul.mubr.f32.gmra.mrb[0].mxu0 %v159
    %v344 = vpop.f32.mrb[0].mxu0
    %v345 = vadd.f32 %v89, %v344
    %v346 = vpop.f32.mrb[0].mxu0
    %347 = vmatprep.mubr.f32.mxu0 0.0
    %348 = vmatmul.mubr.f32.gmra.mrb[0].mxu0 %v162
    %v349 = vpop.f32.mrb[0].mxu0
    %v350 = vadd.f32 %v89, %v349
    %v351 = vpop.f32.mrb[0].mxu0
    %352 = vdwg.mxu0
    %v353 = vlaneseq
    %v354 = vshrl.u32 %v353, 7
    %v355 = vadd.s32 %v354, 8
    %v356 = vadd.s32 %v354, 16
    %v357 = vadd.s32 %v354, 24
    %v358 = vadd.s32 %v354, 32
    %v359 = vadd.s32 %v354, 40
    %v360 = vadd.s32 %v354, 48
    %v361 = vadd.s32 %v354, 56
    %v362 = vadd.s32 %v354, 64
    %v363 = vadd.s32 %v354, 72
    %v364 = vadd.s32 %v354, 80
    %v365 = vadd.s32 %v354, 88
    %v366 = vadd.s32 %v354, 96
    %v367 = vadd.s32 %v354, 104
    %v368 = vadd.s32 %v354, 112
    %v369 = vadd.s32 %v354, 120
    %v370 = vadd.s32 %v354, 128
    %v371 = vadd.s32 %v354, 136
    %v372 = vadd.s32 %v354, 144
    %v373 = vadd.s32 %v354, 152
    %v374 = vadd.s32 %v354, 160
    %v375 = vadd.s32 %v354, 168
    %v376 = vadd.s32 %v354, 176
    %v377 = vadd.s32 %v354, 184
    %v378 = vand.u32 %v354, 15
    %v379 = vand.u32 %v355, 15
    %v380 = vand.u32 %v356, 15
    %v381 = vand.u32 %v357, 15
    %v382 = vand.u32 %v358, 15
    %v383 = vand.u32 %v359, 15
    %v384 = vand.u32 %v360, 15
    %v385 = vand.u32 %v361, 15
    %v386 = vand.u32 %v362, 15
    %v387 = vand.u32 %v363, 15
    %v388 = vand.u32 %v364, 15
    %v389 = vand.u32 %v365, 15
    %v390 = vand.u32 %v366, 15
    %v391 = vand.u32 %v367, 15
    %v392 = vand.u32 %v368, 15
    %v393 = vand.u32 %v369, 15
    %v394 = vand.u32 %v370, 15
    %v395 = vand.u32 %v371, 15
    %v396 = vand.u32 %v372, 15
    %v397 = vand.u32 %v373, 15
    %v398 = vand.u32 %v374, 15
    %v399 = vand.u32 %v375, 15
    %v400 = vand.u32 %v376, 15
    %v401 = vand.u32 %v377, 15
    %vm402 = vcmp.ge.s32.totalorder %v378, 1
    %vm403 = vcmp.ge.s32.totalorder %v379, 1
    %vm404 = vcmp.ge.s32.totalorder %v380, 1
    %vm405 = vcmp.ge.s32.totalorder %v381, 1
    %vm406 = vcmp.ge.s32.totalorder %v382, 1
    %vm407 = vcmp.ge.s32.totalorder %v383, 1
    %vm408 = vcmp.ge.s32.totalorder %v384, 1
    %vm409 = vcmp.ge.s32.totalorder %v385, 1
    %vm410 = vcmp.ge.s32.totalorder %v386, 1
    %vm411 = vcmp.ge.s32.totalorder %v387, 1
    %vm412 = vcmp.ge.s32.totalorder %v388, 1
    %vm413 = vcmp.ge.s32.totalorder %v389, 1
    %vm414 = vcmp.ge.s32.totalorder %v390, 1
    %vm415 = vcmp.ge.s32.totalorder %v391, 1
    %vm416 = vcmp.ge.s32.totalorder %v392, 1
    %vm417 = vcmp.ge.s32.totalorder %v393, 1
    %vm418 = vcmp.ge.s32.totalorder %v394, 1
    %vm419 = vcmp.ge.s32.totalorder %v395, 1
    %vm420 = vcmp.ge.s32.totalorder %v396, 1
    %vm421 = vcmp.ge.s32.totalorder %v397, 1
    %vm422 = vcmp.ge.s32.totalorder %v398, 1
    %vm423 = vcmp.ge.s32.totalorder %v399, 1
    %vm424 = vcmp.ge.s32.totalorder %v400, 1
    %vm425 = vcmp.ge.s32.totalorder %v401, 1
    %v426 = vsel %vm402, 1, 0
    %v427 = vsel %vm403, 1, 0
    %v428 = vsel %vm404, 1, 0
    %v429 = vsel %vm405, 1, 0
    %v430 = vsel %vm406, 1, 0
    %v431 = vsel %vm407, 1, 0
    %v432 = vsel %vm408, 1, 0
    %v433 = vsel %vm409, 1, 0
    %v434 = vsel %vm410, 1, 0
    %v435 = vsel %vm411, 1, 0
    %v436 = vsel %vm412, 1, 0
    %v437 = vsel %vm413, 1, 0
    %v438 = vsel %vm414, 1, 0
    %v439 = vsel %vm415, 1, 0
    %v440 = vsel %vm416, 1, 0
    %v441 = vsel %vm417, 1, 0
    %v442 = vsel %vm418, 1, 0
    %v443 = vsel %vm419, 1, 0
    %v444 = vsel %vm420, 1, 0
    %v445 = vsel %vm421, 1, 0
    %v446 = vsel %vm422, 1, 0
    %v447 = vsel %vm423, 1, 0
    %v448 = vsel %vm424, 1, 0
    %v449 = vsel %vm425, 1, 0
    %vm450 = vcmp.eq.s32.totalorder %v426, 1
    %vm451 = vcmp.eq.s32.totalorder %v427, 1
    %vm452 = vcmp.eq.s32.totalorder %v428, 1
    %vm453 = vcmp.eq.s32.totalorder %v429, 1
    %vm454 = vcmp.eq.s32.totalorder %v430, 1
    %vm455 = vcmp.eq.s32.totalorder %v431, 1
    %vm456 = vcmp.eq.s32.totalorder %v432, 1
    %vm457 = vcmp.eq.s32.totalorder %v433, 1
    %vm458 = vcmp.eq.s32.totalorder %v434, 1
    %vm459 = vcmp.eq.s32.totalorder %v435, 1
    %vm460 = vcmp.eq.s32.totalorder %v436, 1
    %vm461 = vcmp.eq.s32.totalorder %v437, 1
    %vm462 = vcmp.eq.s32.totalorder %v438, 1
    %vm463 = vcmp.eq.s32.totalorder %v439, 1
    %vm464 = vcmp.eq.s32.totalorder %v440, 1
    %vm465 = vcmp.eq.s32.totalorder %v441, 1
    %vm466 = vcmp.eq.s32.totalorder %v442, 1
    %vm467 = vcmp.eq.s32.totalorder %v443, 1
    %vm468 = vcmp.eq.s32.totalorder %v444, 1
    %vm469 = vcmp.eq.s32.totalorder %v445, 1
    %vm470 = vcmp.eq.s32.totalorder %v446, 1
    %vm471 = vcmp.eq.s32.totalorder %v447, 1
    %vm472 = vcmp.eq.s32.totalorder %v448, 1
    %vm473 = vcmp.eq.s32.totalorder %v449, 1
    %vm474 = vcmp.ge.s32.totalorder %v378, 2
    %vm475 = vcmp.ge.s32.totalorder %v379, 2
    %vm476 = vcmp.ge.s32.totalorder %v380, 2
    %vm477 = vcmp.ge.s32.totalorder %v381, 2
    %vm478 = vcmp.ge.s32.totalorder %v382, 2
    %vm479 = vcmp.ge.s32.totalorder %v383, 2
    %vm480 = vcmp.ge.s32.totalorder %v384, 2
    %vm481 = vcmp.ge.s32.totalorder %v385, 2
    %vm482 = vcmp.ge.s32.totalorder %v386, 2
    %vm483 = vcmp.ge.s32.totalorder %v387, 2
    %vm484 = vcmp.ge.s32.totalorder %v388, 2
    %vm485 = vcmp.ge.s32.totalorder %v389, 2
    %vm486 = vcmp.ge.s32.totalorder %v390, 2
    %vm487 = vcmp.ge.s32.totalorder %v391, 2
    %vm488 = vcmp.ge.s32.totalorder %v392, 2
    %vm489 = vcmp.ge.s32.totalorder %v393, 2
    %vm490 = vcmp.ge.s32.totalorder %v394, 2
    %vm491 = vcmp.ge.s32.totalorder %v395, 2
    %vm492 = vcmp.ge.s32.totalorder %v396, 2
    %vm493 = vcmp.ge.s32.totalorder %v397, 2
    %vm494 = vcmp.ge.s32.totalorder %v398, 2
    %vm495 = vcmp.ge.s32.totalorder %v399, 2
    %vm496 = vcmp.ge.s32.totalorder %v400, 2
    %vm497 = vcmp.ge.s32.totalorder %v401, 2
    %v498 = vsel %vm474, 1, 0
    %v499 = vsel %vm475, 1, 0
    %v500 = vsel %vm476, 1, 0
    %v501 = vsel %vm477, 1, 0
    %v502 = vsel %vm478, 1, 0
    %v503 = vsel %vm479, 1, 0
    %v504 = vsel %vm480, 1, 0
    %v505 = vsel %vm481, 1, 0
    %v506 = vsel %vm482, 1, 0
    %v507 = vsel %vm483, 1, 0
    %v508 = vsel %vm484, 1, 0
    %v509 = vsel %vm485, 1, 0
    %v510 = vsel %vm486, 1, 0
    %v511 = vsel %vm487, 1, 0
    %v512 = vsel %vm488, 1, 0
    %v513 = vsel %vm489, 1, 0
    %v514 = vsel %vm490, 1, 0
    %v515 = vsel %vm491, 1, 0
    %v516 = vsel %vm492, 1, 0
    %v517 = vsel %vm493, 1, 0
    %v518 = vsel %vm494, 1, 0
    %v519 = vsel %vm495, 1, 0
    %v520 = vsel %vm496, 1, 0
    %v521 = vsel %vm497, 1, 0
    %vm522 = vcmp.eq.s32.totalorder %v498, 1
    %vm523 = vcmp.eq.s32.totalorder %v499, 1
    %vm524 = vcmp.eq.s32.totalorder %v500, 1
    %vm525 = vcmp.eq.s32.totalorder %v501, 1
    %vm526 = vcmp.eq.s32.totalorder %v502, 1
    %vm527 = vcmp.eq.s32.totalorder %v503, 1
    %vm528 = vcmp.eq.s32.totalorder %v504, 1
    %vm529 = vcmp.eq.s32.totalorder %v505, 1
    %vm530 = vcmp.eq.s32.totalorder %v506, 1
    %vm531 = vcmp.eq.s32.totalorder %v507, 1
    %vm532 = vcmp.eq.s32.totalorder %v508, 1
    %vm533 = vcmp.eq.s32.totalorder %v509, 1
    %vm534 = vcmp.eq.s32.totalorder %v510, 1
    %vm535 = vcmp.eq.s32.totalorder %v511, 1
    %vm536 = vcmp.eq.s32.totalorder %v512, 1
    %vm537 = vcmp.eq.s32.totalorder %v513, 1
    %vm538 = vcmp.eq.s32.totalorder %v514, 1
    %vm539 = vcmp.eq.s32.totalorder %v515, 1
    %vm540 = vcmp.eq.s32.totalorder %v516, 1
    %vm541 = vcmp.eq.s32.totalorder %v517, 1
    %vm542 = vcmp.eq.s32.totalorder %v518, 1
    %vm543 = vcmp.eq.s32.totalorder %v519, 1
    %vm544 = vcmp.eq.s32.totalorder %v520, 1
    %vm545 = vcmp.eq.s32.totalorder %v521, 1
    %vm546 = vcmp.ge.s32.totalorder %v378, 4
    %vm547 = vcmp.ge.s32.totalorder %v379, 4
    %vm548 = vcmp.ge.s32.totalorder %v380, 4
    %vm549 = vcmp.ge.s32.totalorder %v381, 4
    %vm550 = vcmp.ge.s32.totalorder %v382, 4
    %vm551 = vcmp.ge.s32.totalorder %v383, 4
    %vm552 = vcmp.ge.s32.totalorder %v384, 4
    %vm553 = vcmp.ge.s32.totalorder %v385, 4
    %vm554 = vcmp.ge.s32.totalorder %v386, 4
    %vm555 = vcmp.ge.s32.totalorder %v387, 4
    %vm556 = vcmp.ge.s32.totalorder %v388, 4
    %vm557 = vcmp.ge.s32.totalorder %v389, 4
    %vm558 = vcmp.ge.s32.totalorder %v390, 4
    %vm559 = vcmp.ge.s32.totalorder %v391, 4
    %vm560 = vcmp.ge.s32.totalorder %v392, 4
    %vm561 = vcmp.ge.s32.totalorder %v393, 4
    %vm562 = vcmp.ge.s32.totalorder %v394, 4
    %vm563 = vcmp.ge.s32.totalorder %v395, 4
    %vm564 = vcmp.ge.s32.totalorder %v396, 4
    %vm565 = vcmp.ge.s32.totalorder %v397, 4
    %vm566 = vcmp.ge.s32.totalorder %v398, 4
    %vm567 = vcmp.ge.s32.totalorder %v399, 4
    %vm568 = vcmp.ge.s32.totalorder %v400, 4
    %vm569 = vcmp.ge.s32.totalorder %v401, 4
    %v570 = vsel %vm546, 1, 0
    %v571 = vsel %vm547, 1, 0
    %v572 = vsel %vm548, 1, 0
    %v573 = vsel %vm549, 1, 0
    %v574 = vsel %vm550, 1, 0
    %v575 = vsel %vm551, 1, 0
    %v576 = vsel %vm552, 1, 0
    %v577 = vsel %vm553, 1, 0
    %v578 = vsel %vm554, 1, 0
    %v579 = vsel %vm555, 1, 0
    %v580 = vsel %vm556, 1, 0
    %v581 = vsel %vm557, 1, 0
    %v582 = vsel %vm558, 1, 0
    %v583 = vsel %vm559, 1, 0
    %v584 = vsel %vm560, 1, 0
    %v585 = vsel %vm561, 1, 0
    %v586 = vsel %vm562, 1, 0
    %v587 = vsel %vm563, 1, 0
    %v588 = vsel %vm564, 1, 0
    %v589 = vsel %vm565, 1, 0
    %v590 = vsel %vm566, 1, 0
    %v591 = vsel %vm567, 1, 0
    %v592 = vsel %vm568, 1, 0
    %v593 = vsel %vm569, 1, 0
    %vm594 = vcmp.eq.s32.totalorder %v570, 1
    %vm595 = vcmp.eq.s32.totalorder %v571, 1
    %vm596 = vcmp.eq.s32.totalorder %v572, 1
    %vm597 = vcmp.eq.s32.totalorder %v573, 1
    %vm598 = vcmp.eq.s32.totalorder %v574, 1
    %vm599 = vcmp.eq.s32.totalorder %v575, 1
    %vm600 = vcmp.eq.s32.totalorder %v576, 1
    %vm601 = vcmp.eq.s32.totalorder %v577, 1
    %vm602 = vcmp.eq.s32.totalorder %v578, 1
    %vm603 = vcmp.eq.s32.totalorder %v579, 1
    %vm604 = vcmp.eq.s32.totalorder %v580, 1
    %vm605 = vcmp.eq.s32.totalorder %v581, 1
    %vm606 = vcmp.eq.s32.totalorder %v582, 1
    %vm607 = vcmp.eq.s32.totalorder %v583, 1
    %vm608 = vcmp.eq.s32.totalorder %v584, 1
    %vm609 = vcmp.eq.s32.totalorder %v585, 1
    %vm610 = vcmp.eq.s32.totalorder %v586, 1
    %vm611 = vcmp.eq.s32.totalorder %v587, 1
    %vm612 = vcmp.eq.s32.totalorder %v588, 1
    %vm613 = vcmp.eq.s32.totalorder %v589, 1
    %vm614 = vcmp.eq.s32.totalorder %v590, 1
    %vm615 = vcmp.eq.s32.totalorder %v591, 1
    %vm616 = vcmp.eq.s32.totalorder %v592, 1
    %vm617 = vcmp.eq.s32.totalorder %v593, 1
    %vm618 = vcmp.ge.s32.totalorder %v378, 8
    %vm619 = vcmp.ge.s32.totalorder %v379, 8
    %vm620 = vcmp.ge.s32.totalorder %v380, 8
    %vm621 = vcmp.ge.s32.totalorder %v381, 8
    %vm622 = vcmp.ge.s32.totalorder %v382, 8
    %vm623 = vcmp.ge.s32.totalorder %v383, 8
    %vm624 = vcmp.ge.s32.totalorder %v384, 8
    %vm625 = vcmp.ge.s32.totalorder %v385, 8
    %vm626 = vcmp.ge.s32.totalorder %v386, 8
    %vm627 = vcmp.ge.s32.totalorder %v387, 8
    %vm628 = vcmp.ge.s32.totalorder %v388, 8
    %vm629 = vcmp.ge.s32.totalorder %v389, 8
    %vm630 = vcmp.ge.s32.totalorder %v390, 8
    %vm631 = vcmp.ge.s32.totalorder %v391, 8
    %vm632 = vcmp.ge.s32.totalorder %v392, 8
    %vm633 = vcmp.ge.s32.totalorder %v393, 8
    %vm634 = vcmp.ge.s32.totalorder %v394, 8
    %vm635 = vcmp.ge.s32.totalorder %v395, 8
    %vm636 = vcmp.ge.s32.totalorder %v396, 8
    %vm637 = vcmp.ge.s32.totalorder %v397, 8
    %vm638 = vcmp.ge.s32.totalorder %v398, 8
    %vm639 = vcmp.ge.s32.totalorder %v399, 8
    %vm640 = vcmp.ge.s32.totalorder %v400, 8
    %vm641 = vcmp.ge.s32.totalorder %v401, 8
    %v642 = vsel %vm618, 1, 0
    %v643 = vsel %vm619, 1, 0
    %v644 = vsel %vm620, 1, 0
    %v645 = vsel %vm621, 1, 0
    %v646 = vsel %vm622, 1, 0
    %v647 = vsel %vm623, 1, 0
    %v648 = vsel %vm624, 1, 0
    %v649 = vsel %vm625, 1, 0
    %v650 = vsel %vm626, 1, 0
    %v651 = vsel %vm627, 1, 0
    %v652 = vsel %vm628, 1, 0
    %v653 = vsel %vm629, 1, 0
    %v654 = vsel %vm630, 1, 0
    %v655 = vsel %vm631, 1, 0
    %v656 = vsel %vm632, 1, 0
    %v657 = vsel %vm633, 1, 0
    %v658 = vsel %vm634, 1, 0
    %v659 = vsel %vm635, 1, 0
    %v660 = vsel %vm636, 1, 0
    %v661 = vsel %vm637, 1, 0
    %v662 = vsel %vm638, 1, 0
    %v663 = vsel %vm639, 1, 0
    %v664 = vsel %vm640, 1, 0
    %v665 = vsel %vm641, 1, 0
    %vm666 = vcmp.eq.s32.totalorder %v642, 1
    %vm667 = vcmp.eq.s32.totalorder %v643, 1
    %vm668 = vcmp.eq.s32.totalorder %v644, 1
    %vm669 = vcmp.eq.s32.totalorder %v645, 1
    %vm670 = vcmp.eq.s32.totalorder %v646, 1
    %vm671 = vcmp.eq.s32.totalorder %v647, 1
    %vm672 = vcmp.eq.s32.totalorder %v648, 1
    %vm673 = vcmp.eq.s32.totalorder %v649, 1
    %vm674 = vcmp.eq.s32.totalorder %v650, 1
    %vm675 = vcmp.eq.s32.totalorder %v651, 1
    %vm676 = vcmp.eq.s32.totalorder %v652, 1
    %vm677 = vcmp.eq.s32.totalorder %v653, 1
    %vm678 = vcmp.eq.s32.totalorder %v654, 1
    %vm679 = vcmp.eq.s32.totalorder %v655, 1
    %vm680 = vcmp.eq.s32.totalorder %v656, 1
    %vm681 = vcmp.eq.s32.totalorder %v657, 1
    %vm682 = vcmp.eq.s32.totalorder %v658, 1
    %vm683 = vcmp.eq.s32.totalorder %v659, 1
    %vm684 = vcmp.eq.s32.totalorder %v660, 1
    %vm685 = vcmp.eq.s32.totalorder %v661, 1
    %vm686 = vcmp.eq.s32.totalorder %v662, 1
    %vm687 = vcmp.eq.s32.totalorder %v663, 1
    %vm688 = vcmp.eq.s32.totalorder %v664, 1
    %vm689 = vcmp.eq.s32.totalorder %v665, 1
    %v690 = vld [vmem:[%s3] sm:$0x3]
    %v691 = vld [vmem:[%s4] sm:$0xff]
    %v692 = vld [vmem:[%s5] sm:$0x3]
    %v693 = vlaneseq
    %v694 = vshrl.u32 %v693, 7
    %v695 = vsub.s32 0, %v694
    %v696 = vrot.slane %v692, %v695
    %v697 = vmul.f32 %v696, %v235
    %v698 = vmul.f32 %v696, %v240
    %v699 = vmul.f32 %v696, %v245
    %v700 = vmul.f32 %v696, %v250
    %v701 = vmul.f32 %v696, %v255
    %v702 = vmul.f32 %v696, %v260
    %v703 = vmul.f32 %v696, %v265
    %v704 = vmul.f32 %v696, %v270
    %v705 = vmul.f32 %v696, %v275
    %v706 = vmul.f32 %v696, %v280
    %v707 = vmul.f32 %v696, %v285
    %v708 = vmul.f32 %v696, %v290
    %v709 = vmul.f32 %v696, %v295
    %v710 = vmul.f32 %v696, %v300
    %v711 = vmul.f32 %v696, %v305
    %v712 = vmul.f32 %v696, %v310
    %v713 = vmul.f32 %v696, %v315
    %v714 = vmul.f32 %v696, %v320
    %v715 = vmul.f32 %v696, %v325
    %v716 = vmul.f32 %v696, %v330
    %v717 = vmul.f32 %v696, %v335
    %v718 = vmul.f32 %v696, %v340
    %v719 = vmul.f32 %v696, %v345
    %v720 = vmul.f32 %v696, %v350
    %v721 = vrot.slane %v235, 7
    %v722 = vrot.slane %v240, 7
    %v723 = vrot.slane %v245, 7
    %v724 = vrot.slane %v250, 7
    %v725 = vrot.slane %v255, 7
    %v726 = vrot.slane %v260, 7
    %v727 = vrot.slane %v265, 7
    %v728 = vrot.slane %v270, 7
    %v729 = vrot.slane %v275, 7
    %v730 = vrot.slane %v280, 7
    %v731 = vrot.slane %v285, 7
    %v732 = vrot.slane %v290, 7
    %v733 = vrot.slane %v295, 7
    %v734 = vrot.slane %v300, 7
    %v735 = vrot.slane %v305, 7
    %v736 = vrot.slane %v310, 7
    %v737 = vrot.slane %v315, 7
    %v738 = vrot.slane %v320, 7
    %v739 = vrot.slane %v325, 7
    %v740 = vrot.slane %v330, 7
    %v741 = vrot.slane %v335, 7
    %v742 = vrot.slane %v340, 7
    %v743 = vrot.slane %v345, 7
    %v744 = vrot.slane %v350, 7
    %vm745 = vcmp.lt.s32.totalorder %v354, 1
    %v746 = vsel %vm745, %v743, %v744
    %v747 = vsel %vm745, %v742, %v743
    %v748 = vsel %vm745, %v741, %v742
    %v749 = vsel %vm745, %v740, %v741
    %v750 = vsel %vm745, %v739, %v740
    %v751 = vsel %vm745, %v738, %v739
    %v752 = vsel %vm745, %v737, %v738
    %v753 = vsel %vm745, %v736, %v737
    %v754 = vsel %vm745, %v735, %v736
    %v755 = vsel %vm745, %v734, %v735
    %v756 = vsel %vm745, %v733, %v734
    %v757 = vsel %vm745, %v732, %v733
    %v758 = vsel %vm745, %v731, %v732
    %v759 = vsel %vm745, %v730, %v731
    %v760 = vsel %vm745, %v729, %v730
    %v761 = vsel %vm745, %v728, %v729
    %v762 = vsel %vm745, %v727, %v728
    %v763 = vsel %vm745, %v726, %v727
    %v764 = vsel %vm745, %v725, %v726
    %v765 = vsel %vm745, %v724, %v725
    %v766 = vsel %vm745, %v723, %v724
    %v767 = vsel %vm745, %v722, %v723
    %v768 = vsel %vm745, %v721, %v722
    %v769 = vsel %vm745, %v744, %v721
    %v770 = vsel %vm450, %v769, 0.0
    %v771 = vsel %vm451, %v768, 0.0
    %v772 = vsel %vm452, %v767, 0.0
    %v773 = vsel %vm453, %v766, 0.0
    %v774 = vsel %vm454, %v765, 0.0
    %v775 = vsel %vm455, %v764, 0.0
    %v776 = vsel %vm456, %v763, 0.0
    %v777 = vsel %vm457, %v762, 0.0
    %v778 = vsel %vm458, %v761, 0.0
    %v779 = vsel %vm459, %v760, 0.0
    %v780 = vsel %vm460, %v759, 0.0
    %v781 = vsel %vm461, %v758, 0.0
    %v782 = vsel %vm462, %v757, 0.0
    %v783 = vsel %vm463, %v756, 0.0
    %v784 = vsel %vm464, %v755, 0.0
    %v785 = vsel %vm465, %v754, 0.0
    %v786 = vsel %vm466, %v753, 0.0
    %v787 = vsel %vm467, %v752, 0.0
    %v788 = vsel %vm468, %v751, 0.0
    %v789 = vsel %vm469, %v750, 0.0
    %v790 = vsel %vm470, %v749, 0.0
    %v791 = vsel %vm471, %v748, 0.0
    %v792 = vsel %vm472, %v747, 0.0
    %v793 = vsel %vm473, %v746, 0.0
    %v794 = vlaneseq
    %v795 = vshrl.u32 %v794, 7
    %v796 = vsub.s32 0, %v795
    %v797 = vrot.slane %v691, %v796
    %v798 = vmul.f32 %v797, %v770
    %v799 = vmul.f32 %v797, %v771
    %v800 = vmul.f32 %v797, %v772
    %v801 = vmul.f32 %v797, %v773
    %v802 = vmul.f32 %v797, %v774
    %v803 = vmul.f32 %v797, %v775
    %v804 = vmul.f32 %v797, %v776
    %v805 = vmul.f32 %v797, %v777
    %v806 = vmul.f32 %v797, %v778
    %v807 = vmul.f32 %v797, %v779
    %v808 = vmul.f32 %v797, %v780
    %v809 = vmul.f32 %v797, %v781
    %v810 = vmul.f32 %v797, %v782
    %v811 = vmul.f32 %v797, %v783
    %v812 = vmul.f32 %v797, %v784
    %v813 = vmul.f32 %v797, %v785
    %v814 = vmul.f32 %v797, %v786
    %v815 = vmul.f32 %v797, %v787
    %v816 = vmul.f32 %v797, %v788
    %v817 = vmul.f32 %v797, %v789
    %v818 = vmul.f32 %v797, %v790
    %v819 = vmul.f32 %v797, %v791
    %v820 = vmul.f32 %v797, %v792
    %v821 = vmul.f32 %v797, %v793
    %v822 = vadd.f32 %v697, %v798
    %v823 = vadd.f32 %v698, %v799
    %v824 = vadd.f32 %v699, %v800
    %v825 = vadd.f32 %v700, %v801
    %v826 = vadd.f32 %v701, %v802
    %v827 = vadd.f32 %v702, %v803
    %v828 = vadd.f32 %v703, %v804
    %v829 = vadd.f32 %v704, %v805
    %v830 = vadd.f32 %v705, %v806
    %v831 = vadd.f32 %v706, %v807
    %v832 = vadd.f32 %v707, %v808
    %v833 = vadd.f32 %v708, %v809
    %v834 = vadd.f32 %v709, %v810
    %v835 = vadd.f32 %v710, %v811
    %v836 = vadd.f32 %v711, %v812
    %v837 = vadd.f32 %v712, %v813
    %v838 = vadd.f32 %v713, %v814
    %v839 = vadd.f32 %v714, %v815
    %v840 = vadd.f32 %v715, %v816
    %v841 = vadd.f32 %v716, %v817
    %v842 = vadd.f32 %v717, %v818
    %v843 = vadd.f32 %v718, %v819
    %v844 = vadd.f32 %v719, %v820
    %v845 = vadd.f32 %v720, %v821
    %v846 = vlaneseq
    %v847 = vshrl.u32 %v846, 7
    %v848 = vsub.s32 1, %v847
    %v849 = vrot.slane %v691, %v848
    %v850 = vmul.f32 %v849, %v235
    %v851 = vmul.f32 %v849, %v240
    %v852 = vmul.f32 %v849, %v245
    %v853 = vmul.f32 %v849, %v250
    %v854 = vmul.f32 %v849, %v255
    %v855 = vmul.f32 %v849, %v260
    %v856 = vmul.f32 %v849, %v265
    %v857 = vmul.f32 %v849, %v270
    %v858 = vmul.f32 %v849, %v275
    %v859 = vmul.f32 %v849, %v280
    %v860 = vmul.f32 %v849, %v285
    %v861 = vmul.f32 %v849, %v290
    %v862 = vmul.f32 %v849, %v295
    %v863 = vmul.f32 %v849, %v300
    %v864 = vmul.f32 %v849, %v305
    %v865 = vmul.f32 %v849, %v310
    %v866 = vmul.f32 %v849, %v315
    %v867 = vmul.f32 %v849, %v320
    %v868 = vmul.f32 %v849, %v325
    %v869 = vmul.f32 %v849, %v330
    %v870 = vmul.f32 %v849, %v335
    %v871 = vmul.f32 %v849, %v340
    %v872 = vmul.f32 %v849, %v345
    %v873 = vmul.f32 %v849, %v350
    %v874 = vadd.f32 %v822, %v850
    %v875 = vadd.f32 %v823, %v851
    %v876 = vadd.f32 %v824, %v852
    %v877 = vadd.f32 %v825, %v853
    %v878 = vadd.f32 %v826, %v854
    %v879 = vadd.f32 %v827, %v855
    %v880 = vadd.f32 %v828, %v856
    %v881 = vadd.f32 %v829, %v857
    %v882 = vadd.f32 %v830, %v858
    %v883 = vadd.f32 %v831, %v859
    %v884 = vadd.f32 %v832, %v860
    %v885 = vadd.f32 %v833, %v861
    %v886 = vadd.f32 %v834, %v862
    %v887 = vadd.f32 %v835, %v863
    %v888 = vadd.f32 %v836, %v864
    %v889 = vadd.f32 %v837, %v865
    %v890 = vadd.f32 %v838, %v866
    %v891 = vadd.f32 %v839, %v867
    %v892 = vadd.f32 %v840, %v868
    %v893 = vadd.f32 %v841, %v869
    %v894 = vadd.f32 %v842, %v870
    %v895 = vadd.f32 %v843, %v871
    %v896 = vadd.f32 %v844, %v872
    %v897 = vadd.f32 %v845, %v873
    %v898 = vlaneseq
    %v899 = vshrl.u32 %v898, 7
    %v900 = vsub.s32 0, %v899
    %v901 = vrot.slane %v690, %v900
    %v902 = vmul.f32 %v901, %v770
    %v903 = vmul.f32 %v901, %v771
    %v904 = vmul.f32 %v901, %v772
    %v905 = vmul.f32 %v901, %v773
    %v906 = vmul.f32 %v901, %v774
    %v907 = vmul.f32 %v901, %v775
    %v908 = vmul.f32 %v901, %v776
    %v909 = vmul.f32 %v901, %v777
    %v910 = vmul.f32 %v901, %v778
    %v911 = vmul.f32 %v901, %v779
    %v912 = vmul.f32 %v901, %v780
    %v913 = vmul.f32 %v901, %v781
    %v914 = vmul.f32 %v901, %v782
    %v915 = vmul.f32 %v901, %v783
    %v916 = vmul.f32 %v901, %v784
    %v917 = vmul.f32 %v901, %v785
    %v918 = vmul.f32 %v901, %v786
    %v919 = vmul.f32 %v901, %v787
    %v920 = vmul.f32 %v901, %v788
    %v921 = vmul.f32 %v901, %v789
    %v922 = vmul.f32 %v901, %v790
    %v923 = vmul.f32 %v901, %v791
    %v924 = vmul.f32 %v901, %v792
    %v925 = vmul.f32 %v901, %v793
    %v926 = vlaneseq
    %v927 = vshrl.u32 %v926, 7
    %v928 = vsub.s32 1, %v927
    %v929 = vrot.slane %v690, %v928
    %v930 = vmul.f32 %v929, %v235
    %v931 = vmul.f32 %v929, %v240
    %v932 = vmul.f32 %v929, %v245
    %v933 = vmul.f32 %v929, %v250
    %v934 = vmul.f32 %v929, %v255
    %v935 = vmul.f32 %v929, %v260
    %v936 = vmul.f32 %v929, %v265
    %v937 = vmul.f32 %v929, %v270
    %v938 = vmul.f32 %v929, %v275
    %v939 = vmul.f32 %v929, %v280
    %v940 = vmul.f32 %v929, %v285
    %v941 = vmul.f32 %v929, %v290
    %v942 = vmul.f32 %v929, %v295
    %v943 = vmul.f32 %v929, %v300
    %v944 = vmul.f32 %v929, %v305
    %v945 = vmul.f32 %v929, %v310
    %v946 = vmul.f32 %v929, %v315
    %v947 = vmul.f32 %v929, %v320
    %v948 = vmul.f32 %v929, %v325
    %v949 = vmul.f32 %v929, %v330
    %v950 = vmul.f32 %v929, %v335
    %v951 = vmul.f32 %v929, %v340
    %v952 = vmul.f32 %v929, %v345
    %v953 = vmul.f32 %v929, %v350
    %v954 = vadd.f32 %v902, %v930
    %v955 = vadd.f32 %v903, %v931
    %v956 = vadd.f32 %v904, %v932
    %v957 = vadd.f32 %v905, %v933
    %v958 = vadd.f32 %v906, %v934
    %v959 = vadd.f32 %v907, %v935
    %v960 = vadd.f32 %v908, %v936
    %v961 = vadd.f32 %v909, %v937
    %v962 = vadd.f32 %v910, %v938
    %v963 = vadd.f32 %v911, %v939
    %v964 = vadd.f32 %v912, %v940
    %v965 = vadd.f32 %v913, %v941
    %v966 = vadd.f32 %v914, %v942
    %v967 = vadd.f32 %v915, %v943
    %v968 = vadd.f32 %v916, %v944
    %v969 = vadd.f32 %v917, %v945
    %v970 = vadd.f32 %v918, %v946
    %v971 = vadd.f32 %v919, %v947
    %v972 = vadd.f32 %v920, %v948
    %v973 = vadd.f32 %v921, %v949
    %v974 = vadd.f32 %v922, %v950
    %v975 = vadd.f32 %v923, %v951
    %v976 = vadd.f32 %v924, %v952
    %v977 = vadd.f32 %v925, %v953
    %v978 = vrot.slane %v954, 6
    %v979 = vrot.slane %v955, 6
    %v980 = vrot.slane %v956, 6
    %v981 = vrot.slane %v957, 6
    %v982 = vrot.slane %v958, 6
    %v983 = vrot.slane %v959, 6
    %v984 = vrot.slane %v960, 6
    %v985 = vrot.slane %v961, 6
    %v986 = vrot.slane %v962, 6
    %v987 = vrot.slane %v963, 6
    %v988 = vrot.slane %v964, 6
    %v989 = vrot.slane %v965, 6
    %v990 = vrot.slane %v966, 6
    %v991 = vrot.slane %v967, 6
    %v992 = vrot.slane %v968, 6
    %v993 = vrot.slane %v969, 6
    %v994 = vrot.slane %v970, 6
    %v995 = vrot.slane %v971, 6
    %v996 = vrot.slane %v972, 6
    %v997 = vrot.slane %v973, 6
    %v998 = vrot.slane %v974, 6
    %v999 = vrot.slane %v975, 6
    %v1000 = vrot.slane %v976, 6
    %v1001 = vrot.slane %v977, 6
    %vm1002 = vcmp.lt.s32.totalorder %v354, 2
    %v1003 = vsel %vm1002, %v1000, %v1001
    %v1004 = vsel %vm1002, %v999, %v1000
    %v1005 = vsel %vm1002, %v998, %v999
    %v1006 = vsel %vm1002, %v997, %v998
    %v1007 = vsel %vm1002, %v996, %v997
    %v1008 = vsel %vm1002, %v995, %v996
    %v1009 = vsel %vm1002, %v994, %v995
    %v1010 = vsel %vm1002, %v993, %v994
    %v1011 = vsel %vm1002, %v992, %v993
    %v1012 = vsel %vm1002, %v991, %v992
    %v1013 = vsel %vm1002, %v990, %v991
    %v1014 = vsel %vm1002, %v989, %v990
    %v1015 = vsel %vm1002, %v988, %v989
    %v1016 = vsel %vm1002, %v987, %v988
    %v1017 = vsel %vm1002, %v986, %v987
    %v1018 = vsel %vm1002, %v985, %v986
    %v1019 = vsel %vm1002, %v984, %v985
    %v1020 = vsel %vm1002, %v983, %v984
    %v1021 = vsel %vm1002, %v982, %v983
    %v1022 = vsel %vm1002, %v981, %v982
    %v1023 = vsel %vm1002, %v980, %v981
    %v1024 = vsel %vm1002, %v979, %v980
    %v1025 = vsel %vm1002, %v978, %v979
    %v1026 = vsel %vm1002, %v1001, %v978
    %v1027 = vsel %vm522, %v1026, 0.0
    %v1028 = vsel %vm523, %v1025, 0.0
    %v1029 = vsel %vm524, %v1024, 0.0
    %v1030 = vsel %vm525, %v1023, 0.0
    %v1031 = vsel %vm526, %v1022, 0.0
    %v1032 = vsel %vm527, %v1021, 0.0
    %v1033 = vsel %vm528, %v1020, 0.0
    %v1034 = vsel %vm529, %v1019, 0.0
    %v1035 = vsel %vm530, %v1018, 0.0
    %v1036 = vsel %vm531, %v1017, 0.0
    %v1037 = vsel %vm532, %v1016, 0.0
    %v1038 = vsel %vm533, %v1015, 0.0
    %v1039 = vsel %vm534, %v1014, 0.0
    %v1040 = vsel %vm535, %v1013, 0.0
    %v1041 = vsel %vm536, %v1012, 0.0
    %v1042 = vsel %vm537, %v1011, 0.0
    %v1043 = vsel %vm538, %v1010, 0.0
    %v1044 = vsel %vm539, %v1009, 0.0
    %v1045 = vsel %vm540, %v1008, 0.0
    %v1046 = vsel %vm541, %v1007, 0.0
    %v1047 = vsel %vm542, %v1006, 0.0
    %v1048 = vsel %vm543, %v1005, 0.0
    %v1049 = vsel %vm544, %v1004, 0.0
    %v1050 = vsel %vm545, %v1003, 0.0
    %v1051 = vlaneseq
    %v1052 = vshrl.u32 %v1051, 7
    %v1053 = vsub.s32 2, %v1052
    %v1054 = vrot.slane %v691, %v1053
    %v1055 = vmul.f32 %v1054, %v1027
    %v1056 = vmul.f32 %v1054, %v1028
    %v1057 = vmul.f32 %v1054, %v1029
    %v1058 = vmul.f32 %v1054, %v1030
    %v1059 = vmul.f32 %v1054, %v1031
    %v1060 = vmul.f32 %v1054, %v1032
    %v1061 = vmul.f32 %v1054, %v1033
    %v1062 = vmul.f32 %v1054, %v1034
    %v1063 = vmul.f32 %v1054, %v1035
    %v1064 = vmul.f32 %v1054, %v1036
    %v1065 = vmul.f32 %v1054, %v1037
    %v1066 = vmul.f32 %v1054, %v1038
    %v1067 = vmul.f32 %v1054, %v1039
    %v1068 = vmul.f32 %v1054, %v1040
    %v1069 = vmul.f32 %v1054, %v1041
    %v1070 = vmul.f32 %v1054, %v1042
    %v1071 = vmul.f32 %v1054, %v1043
    %v1072 = vmul.f32 %v1054, %v1044
    %v1073 = vmul.f32 %v1054, %v1045
    %v1074 = vmul.f32 %v1054, %v1046
    %v1075 = vmul.f32 %v1054, %v1047
    %v1076 = vmul.f32 %v1054, %v1048
    %v1077 = vmul.f32 %v1054, %v1049
    %v1078 = vmul.f32 %v1054, %v1050
    %v1079 = vadd.f32 %v874, %v1055
    %v1080 = vadd.f32 %v875, %v1056
    %v1081 = vadd.f32 %v876, %v1057
    %v1082 = vadd.f32 %v877, %v1058
    %v1083 = vadd.f32 %v878, %v1059
    %v1084 = vadd.f32 %v879, %v1060
    %v1085 = vadd.f32 %v880, %v1061
    %v1086 = vadd.f32 %v881, %v1062
    %v1087 = vadd.f32 %v882, %v1063
    %v1088 = vadd.f32 %v883, %v1064
    %v1089 = vadd.f32 %v884, %v1065
    %v1090 = vadd.f32 %v885, %v1066
    %v1091 = vadd.f32 %v886, %v1067
    %v1092 = vadd.f32 %v887, %v1068
    %v1093 = vadd.f32 %v888, %v1069
    %v1094 = vadd.f32 %v889, %v1070
    %v1095 = vadd.f32 %v890, %v1071
    %v1096 = vadd.f32 %v891, %v1072
    %v1097 = vadd.f32 %v892, %v1073
    %v1098 = vadd.f32 %v893, %v1074
    %v1099 = vadd.f32 %v894, %v1075
    %v1100 = vadd.f32 %v895, %v1076
    %v1101 = vadd.f32 %v896, %v1077
    %v1102 = vadd.f32 %v897, %v1078
    %v1103 = vlaneseq
    %v1104 = vshrl.u32 %v1103, 7
    %v1105 = vsub.s32 3, %v1104
    %v1106 = vrot.slane %v691, %v1105
    %v1107 = vmul.f32 %v1106, %v954
    %v1108 = vmul.f32 %v1106, %v955
    %v1109 = vmul.f32 %v1106, %v956
    %v1110 = vmul.f32 %v1106, %v957
    %v1111 = vmul.f32 %v1106, %v958
    %v1112 = vmul.f32 %v1106, %v959
    %v1113 = vmul.f32 %v1106, %v960
    %v1114 = vmul.f32 %v1106, %v961
    %v1115 = vmul.f32 %v1106, %v962
    %v1116 = vmul.f32 %v1106, %v963
    %v1117 = vmul.f32 %v1106, %v964
    %v1118 = vmul.f32 %v1106, %v965
    %v1119 = vmul.f32 %v1106, %v966
    %v1120 = vmul.f32 %v1106, %v967
    %v1121 = vmul.f32 %v1106, %v968
    %v1122 = vmul.f32 %v1106, %v969
    %v1123 = vmul.f32 %v1106, %v970
    %v1124 = vmul.f32 %v1106, %v971
    %v1125 = vmul.f32 %v1106, %v972
    %v1126 = vmul.f32 %v1106, %v973
    %v1127 = vmul.f32 %v1106, %v974
    %v1128 = vmul.f32 %v1106, %v975
    %v1129 = vmul.f32 %v1106, %v976
    %v1130 = vmul.f32 %v1106, %v977
    %v1131 = vadd.f32 %v1079, %v1107
    %v1132 = vadd.f32 %v1080, %v1108
    %v1133 = vadd.f32 %v1081, %v1109
    %v1134 = vadd.f32 %v1082, %v1110
    %v1135 = vadd.f32 %v1083, %v1111
    %v1136 = vadd.f32 %v1084, %v1112
    %v1137 = vadd.f32 %v1085, %v1113
    %v1138 = vadd.f32 %v1086, %v1114
    %v1139 = vadd.f32 %v1087, %v1115
    %v1140 = vadd.f32 %v1088, %v1116
    %v1141 = vadd.f32 %v1089, %v1117
    %v1142 = vadd.f32 %v1090, %v1118
    %v1143 = vadd.f32 %v1091, %v1119
    %v1144 = vadd.f32 %v1092, %v1120
    %v1145 = vadd.f32 %v1093, %v1121
    %v1146 = vadd.f32 %v1094, %v1122
    %v1147 = vadd.f32 %v1095, %v1123
    %v1148 = vadd.f32 %v1096, %v1124
    %v1149 = vadd.f32 %v1097, %v1125
    %v1150 = vadd.f32 %v1098, %v1126
    %v1151 = vadd.f32 %v1099, %v1127
    %v1152 = vadd.f32 %v1100, %v1128
    %v1153 = vadd.f32 %v1101, %v1129
    %v1154 = vadd.f32 %v1102, %v1130
    %v1155 = vmul.f32 %v901, %v1027
    %v1156 = vmul.f32 %v901, %v1028
    %v1157 = vmul.f32 %v901, %v1029
    %v1158 = vmul.f32 %v901, %v1030
    %v1159 = vmul.f32 %v901, %v1031
    %v1160 = vmul.f32 %v901, %v1032
    %v1161 = vmul.f32 %v901, %v1033
    %v1162 = vmul.f32 %v901, %v1034
    %v1163 = vmul.f32 %v901, %v1035
    %v1164 = vmul.f32 %v901, %v1036
    %v1165 = vmul.f32 %v901, %v1037
    %v1166 = vmul.f32 %v901, %v1038
    %v1167 = vmul.f32 %v901, %v1039
    %v1168 = vmul.f32 %v901, %v1040
    %v1169 = vmul.f32 %v901, %v1041
    %v1170 = vmul.f32 %v901, %v1042
    %v1171 = vmul.f32 %v901, %v1043
    %v1172 = vmul.f32 %v901, %v1044
    %v1173 = vmul.f32 %v901, %v1045
    %v1174 = vmul.f32 %v901, %v1046
    %v1175 = vmul.f32 %v901, %v1047
    %v1176 = vmul.f32 %v901, %v1048
    %v1177 = vmul.f32 %v901, %v1049
    %v1178 = vmul.f32 %v901, %v1050
    %v1179 = vmul.f32 %v929, %v954
    %v1180 = vmul.f32 %v929, %v955
    %v1181 = vmul.f32 %v929, %v956
    %v1182 = vmul.f32 %v929, %v957
    %v1183 = vmul.f32 %v929, %v958
    %v1184 = vmul.f32 %v929, %v959
    %v1185 = vmul.f32 %v929, %v960
    %v1186 = vmul.f32 %v929, %v961
    %v1187 = vmul.f32 %v929, %v962
    %v1188 = vmul.f32 %v929, %v963
    %v1189 = vmul.f32 %v929, %v964
    %v1190 = vmul.f32 %v929, %v965
    %v1191 = vmul.f32 %v929, %v966
    %v1192 = vmul.f32 %v929, %v967
    %v1193 = vmul.f32 %v929, %v968
    %v1194 = vmul.f32 %v929, %v969
    %v1195 = vmul.f32 %v929, %v970
    %v1196 = vmul.f32 %v929, %v971
    %v1197 = vmul.f32 %v929, %v972
    %v1198 = vmul.f32 %v929, %v973
    %v1199 = vmul.f32 %v929, %v974
    %v1200 = vmul.f32 %v929, %v975
    %v1201 = vmul.f32 %v929, %v976
    %v1202 = vmul.f32 %v929, %v977
    %v1203 = vadd.f32 %v1155, %v1179
    %v1204 = vadd.f32 %v1156, %v1180
    %v1205 = vadd.f32 %v1157, %v1181
    %v1206 = vadd.f32 %v1158, %v1182
    %v1207 = vadd.f32 %v1159, %v1183
    %v1208 = vadd.f32 %v1160, %v1184
    %v1209 = vadd.f32 %v1161, %v1185
    %v1210 = vadd.f32 %v1162, %v1186
    %v1211 = vadd.f32 %v1163, %v1187
    %v1212 = vadd.f32 %v1164, %v1188
    %v1213 = vadd.f32 %v1165, %v1189
    %v1214 = vadd.f32 %v1166, %v1190
    %v1215 = vadd.f32 %v1167, %v1191
    %v1216 = vadd.f32 %v1168, %v1192
    %v1217 = vadd.f32 %v1169, %v1193
    %v1218 = vadd.f32 %v1170, %v1194
    %v1219 = vadd.f32 %v1171, %v1195
    %v1220 = vadd.f32 %v1172, %v1196
    %v1221 = vadd.f32 %v1173, %v1197
    %v1222 = vadd.f32 %v1174, %v1198
    %v1223 = vadd.f32 %v1175, %v1199
    %v1224 = vadd.f32 %v1176, %v1200
    %v1225 = vadd.f32 %v1177, %v1201
    %v1226 = vadd.f32 %v1178, %v1202
    %v1227 = vrot.slane %v1203, 4
    %v1228 = vrot.slane %v1204, 4
    %v1229 = vrot.slane %v1205, 4
    %v1230 = vrot.slane %v1206, 4
    %v1231 = vrot.slane %v1207, 4
    %v1232 = vrot.slane %v1208, 4
    %v1233 = vrot.slane %v1209, 4
    %v1234 = vrot.slane %v1210, 4
    %v1235 = vrot.slane %v1211, 4
    %v1236 = vrot.slane %v1212, 4
    %v1237 = vrot.slane %v1213, 4
    %v1238 = vrot.slane %v1214, 4
    %v1239 = vrot.slane %v1215, 4
    %v1240 = vrot.slane %v1216, 4
    %v1241 = vrot.slane %v1217, 4
    %v1242 = vrot.slane %v1218, 4
    %v1243 = vrot.slane %v1219, 4
    %v1244 = vrot.slane %v1220, 4
    %v1245 = vrot.slane %v1221, 4
    %v1246 = vrot.slane %v1222, 4
    %v1247 = vrot.slane %v1223, 4
    %v1248 = vrot.slane %v1224, 4
    %v1249 = vrot.slane %v1225, 4
    %v1250 = vrot.slane %v1226, 4
    %vm1251 = vcmp.lt.s32.totalorder %v354, 4
    %v1252 = vsel %vm1251, %v1249, %v1250
    %v1253 = vsel %vm1251, %v1248, %v1249
    %v1254 = vsel %vm1251, %v1247, %v1248
    %v1255 = vsel %vm1251, %v1246, %v1247
    %v1256 = vsel %vm1251, %v1245, %v1246
    %v1257 = vsel %vm1251, %v1244, %v1245
    %v1258 = vsel %vm1251, %v1243, %v1244
    %v1259 = vsel %vm1251, %v1242, %v1243
    %v1260 = vsel %vm1251, %v1241, %v1242
    %v1261 = vsel %vm1251, %v1240, %v1241
    %v1262 = vsel %vm1251, %v1239, %v1240
    %v1263 = vsel %vm1251, %v1238, %v1239
    %v1264 = vsel %vm1251, %v1237, %v1238
    %v1265 = vsel %vm1251, %v1236, %v1237
    %v1266 = vsel %vm1251, %v1235, %v1236
    %v1267 = vsel %vm1251, %v1234, %v1235
    %v1268 = vsel %vm1251, %v1233, %v1234
    %v1269 = vsel %vm1251, %v1232, %v1233
    %v1270 = vsel %vm1251, %v1231, %v1232
    %v1271 = vsel %vm1251, %v1230, %v1231
    %v1272 = vsel %vm1251, %v1229, %v1230
    %v1273 = vsel %vm1251, %v1228, %v1229
    %v1274 = vsel %vm1251, %v1227, %v1228
    %v1275 = vsel %vm1251, %v1250, %v1227
    %v1276 = vsel %vm594, %v1275, 0.0
    %v1277 = vsel %vm595, %v1274, 0.0
    %v1278 = vsel %vm596, %v1273, 0.0
    %v1279 = vsel %vm597, %v1272, 0.0
    %v1280 = vsel %vm598, %v1271, 0.0
    %v1281 = vsel %vm599, %v1270, 0.0
    %v1282 = vsel %vm600, %v1269, 0.0
    %v1283 = vsel %vm601, %v1268, 0.0
    %v1284 = vsel %vm602, %v1267, 0.0
    %v1285 = vsel %vm603, %v1266, 0.0
    %v1286 = vsel %vm604, %v1265, 0.0
    %v1287 = vsel %vm605, %v1264, 0.0
    %v1288 = vsel %vm606, %v1263, 0.0
    %v1289 = vsel %vm607, %v1262, 0.0
    %v1290 = vsel %vm608, %v1261, 0.0
    %v1291 = vsel %vm609, %v1260, 0.0
    %v1292 = vsel %vm610, %v1259, 0.0
    %v1293 = vsel %vm611, %v1258, 0.0
    %v1294 = vsel %vm612, %v1257, 0.0
    %v1295 = vsel %vm613, %v1256, 0.0
    %v1296 = vsel %vm614, %v1255, 0.0
    %v1297 = vsel %vm615, %v1254, 0.0
    %v1298 = vsel %vm616, %v1253, 0.0
    %v1299 = vsel %vm617, %v1252, 0.0
    %v1300 = vlaneseq
    %v1301 = vshrl.u32 %v1300, 7
    %v1302 = vsub.s32 4, %v1301
    %v1303 = vrot.slane %v691, %v1302
    %v1304 = vmul.f32 %v1303, %v1276
    %v1305 = vmul.f32 %v1303, %v1277
    %v1306 = vmul.f32 %v1303, %v1278
    %v1307 = vmul.f32 %v1303, %v1279
    %v1308 = vmul.f32 %v1303, %v1280
    %v1309 = vmul.f32 %v1303, %v1281
    %v1310 = vmul.f32 %v1303, %v1282
    %v1311 = vmul.f32 %v1303, %v1283
    %v1312 = vmul.f32 %v1303, %v1284
    %v1313 = vmul.f32 %v1303, %v1285
    %v1314 = vmul.f32 %v1303, %v1286
    %v1315 = vmul.f32 %v1303, %v1287
    %v1316 = vmul.f32 %v1303, %v1288
    %v1317 = vmul.f32 %v1303, %v1289
    %v1318 = vmul.f32 %v1303, %v1290
    %v1319 = vmul.f32 %v1303, %v1291
    %v1320 = vmul.f32 %v1303, %v1292
    %v1321 = vmul.f32 %v1303, %v1293
    %v1322 = vmul.f32 %v1303, %v1294
    %v1323 = vmul.f32 %v1303, %v1295
    %v1324 = vmul.f32 %v1303, %v1296
    %v1325 = vmul.f32 %v1303, %v1297
    %v1326 = vmul.f32 %v1303, %v1298
    %v1327 = vmul.f32 %v1303, %v1299
    %v1328 = vadd.f32 %v1131, %v1304
    %v1329 = vadd.f32 %v1132, %v1305
    %v1330 = vadd.f32 %v1133, %v1306
    %v1331 = vadd.f32 %v1134, %v1307
    %v1332 = vadd.f32 %v1135, %v1308
    %v1333 = vadd.f32 %v1136, %v1309
    %v1334 = vadd.f32 %v1137, %v1310
    %v1335 = vadd.f32 %v1138, %v1311
    %v1336 = vadd.f32 %v1139, %v1312
    %v1337 = vadd.f32 %v1140, %v1313
    %v1338 = vadd.f32 %v1141, %v1314
    %v1339 = vadd.f32 %v1142, %v1315
    %v1340 = vadd.f32 %v1143, %v1316
    %v1341 = vadd.f32 %v1144, %v1317
    %v1342 = vadd.f32 %v1145, %v1318
    %v1343 = vadd.f32 %v1146, %v1319
    %v1344 = vadd.f32 %v1147, %v1320
    %v1345 = vadd.f32 %v1148, %v1321
    %v1346 = vadd.f32 %v1149, %v1322
    %v1347 = vadd.f32 %v1150, %v1323
    %v1348 = vadd.f32 %v1151, %v1324
    %v1349 = vadd.f32 %v1152, %v1325
    %v1350 = vadd.f32 %v1153, %v1326
    %v1351 = vadd.f32 %v1154, %v1327
    %v1352 = vlaneseq
    %v1353 = vshrl.u32 %v1352, 7
    %v1354 = vsub.s32 5, %v1353
    %v1355 = vrot.slane %v691, %v1354
    %v1356 = vmul.f32 %v1355, %v1203
    %v1357 = vmul.f32 %v1355, %v1204
    %v1358 = vmul.f32 %v1355, %v1205
    %v1359 = vmul.f32 %v1355, %v1206
    %v1360 = vmul.f32 %v1355, %v1207
    %v1361 = vmul.f32 %v1355, %v1208
    %v1362 = vmul.f32 %v1355, %v1209
    %v1363 = vmul.f32 %v1355, %v1210
    %v1364 = vmul.f32 %v1355, %v1211
    %v1365 = vmul.f32 %v1355, %v1212
    %v1366 = vmul.f32 %v1355, %v1213
    %v1367 = vmul.f32 %v1355, %v1214
    %v1368 = vmul.f32 %v1355, %v1215
    %v1369 = vmul.f32 %v1355, %v1216
    %v1370 = vmul.f32 %v1355, %v1217
    %v1371 = vmul.f32 %v1355, %v1218
    %v1372 = vmul.f32 %v1355, %v1219
    %v1373 = vmul.f32 %v1355, %v1220
    %v1374 = vmul.f32 %v1355, %v1221
    %v1375 = vmul.f32 %v1355, %v1222
    %v1376 = vmul.f32 %v1355, %v1223
    %v1377 = vmul.f32 %v1355, %v1224
    %v1378 = vmul.f32 %v1355, %v1225
    %v1379 = vmul.f32 %v1355, %v1226
    %v1380 = vadd.f32 %v1328, %v1356
    %v1381 = vadd.f32 %v1329, %v1357
    %v1382 = vadd.f32 %v1330, %v1358
    %v1383 = vadd.f32 %v1331, %v1359
    %v1384 = vadd.f32 %v1332, %v1360
    %v1385 = vadd.f32 %v1333, %v1361
    %v1386 = vadd.f32 %v1334, %v1362
    %v1387 = vadd.f32 %v1335, %v1363
    %v1388 = vadd.f32 %v1336, %v1364
    %v1389 = vadd.f32 %v1337, %v1365
    %v1390 = vadd.f32 %v1338, %v1366
    %v1391 = vadd.f32 %v1339, %v1367
    %v1392 = vadd.f32 %v1340, %v1368
    %v1393 = vadd.f32 %v1341, %v1369
    %v1394 = vadd.f32 %v1342, %v1370
    %v1395 = vadd.f32 %v1343, %v1371
    %v1396 = vadd.f32 %v1344, %v1372
    %v1397 = vadd.f32 %v1345, %v1373
    %v1398 = vadd.f32 %v1346, %v1374
    %v1399 = vadd.f32 %v1347, %v1375
    %v1400 = vadd.f32 %v1348, %v1376
    %v1401 = vadd.f32 %v1349, %v1377
    %v1402 = vadd.f32 %v1350, %v1378
    %v1403 = vadd.f32 %v1351, %v1379
    %v1404 = vmul.f32 %v901, %v1276
    %v1405 = vmul.f32 %v901, %v1277
    %v1406 = vmul.f32 %v901, %v1278
    %v1407 = vmul.f32 %v901, %v1279
    %v1408 = vmul.f32 %v901, %v1280
    %v1409 = vmul.f32 %v901, %v1281
    %v1410 = vmul.f32 %v901, %v1282
    %v1411 = vmul.f32 %v901, %v1283
    %v1412 = vmul.f32 %v901, %v1284
    %v1413 = vmul.f32 %v901, %v1285
    %v1414 = vmul.f32 %v901, %v1286
    %v1415 = vmul.f32 %v901, %v1287
    %v1416 = vmul.f32 %v901, %v1288
    %v1417 = vmul.f32 %v901, %v1289
    %v1418 = vmul.f32 %v901, %v1290
    %v1419 = vmul.f32 %v901, %v1291
    %v1420 = vmul.f32 %v901, %v1292
    %v1421 = vmul.f32 %v901, %v1293
    %v1422 = vmul.f32 %v901, %v1294
    %v1423 = vmul.f32 %v901, %v1295
    %v1424 = vmul.f32 %v901, %v1296
    %v1425 = vmul.f32 %v901, %v1297
    %v1426 = vmul.f32 %v901, %v1298
    %v1427 = vmul.f32 %v901, %v1299
    %v1428 = vmul.f32 %v929, %v1203
    %v1429 = vmul.f32 %v929, %v1204
    %v1430 = vmul.f32 %v929, %v1205
    %v1431 = vmul.f32 %v929, %v1206
    %v1432 = vmul.f32 %v929, %v1207
    %v1433 = vmul.f32 %v929, %v1208
    %v1434 = vmul.f32 %v929, %v1209
    %v1435 = vmul.f32 %v929, %v1210
    %v1436 = vmul.f32 %v929, %v1211
    %v1437 = vmul.f32 %v929, %v1212
    %v1438 = vmul.f32 %v929, %v1213
    %v1439 = vmul.f32 %v929, %v1214
    %v1440 = vmul.f32 %v929, %v1215
    %v1441 = vmul.f32 %v929, %v1216
    %v1442 = vmul.f32 %v929, %v1217
    %v1443 = vmul.f32 %v929, %v1218
    %v1444 = vmul.f32 %v929, %v1219
    %v1445 = vmul.f32 %v929, %v1220
    %v1446 = vmul.f32 %v929, %v1221
    %v1447 = vmul.f32 %v929, %v1222
    %v1448 = vmul.f32 %v929, %v1223
    %v1449 = vmul.f32 %v929, %v1224
    %v1450 = vmul.f32 %v929, %v1225
    %v1451 = vmul.f32 %v929, %v1226
    %v1452 = vadd.f32 %v1404, %v1428
    %v1453 = vadd.f32 %v1405, %v1429
    %v1454 = vadd.f32 %v1406, %v1430
    %v1455 = vadd.f32 %v1407, %v1431
    %v1456 = vadd.f32 %v1408, %v1432
    %v1457 = vadd.f32 %v1409, %v1433
    %v1458 = vadd.f32 %v1410, %v1434
    %v1459 = vadd.f32 %v1411, %v1435
    %v1460 = vadd.f32 %v1412, %v1436
    %v1461 = vadd.f32 %v1413, %v1437
    %v1462 = vadd.f32 %v1414, %v1438
    %v1463 = vadd.f32 %v1415, %v1439
    %v1464 = vadd.f32 %v1416, %v1440
    %v1465 = vadd.f32 %v1417, %v1441
    %v1466 = vadd.f32 %v1418, %v1442
    %v1467 = vadd.f32 %v1419, %v1443
    %v1468 = vadd.f32 %v1420, %v1444
    %v1469 = vadd.f32 %v1421, %v1445
    %v1470 = vadd.f32 %v1422, %v1446
    %v1471 = vadd.f32 %v1423, %v1447
    %v1472 = vadd.f32 %v1424, %v1448
    %v1473 = vadd.f32 %v1425, %v1449
    %v1474 = vadd.f32 %v1426, %v1450
    %v1475 = vadd.f32 %v1427, %v1451
    %v1476 = vsel %vm666, %v1475, 0.0
    %v1477 = vsel %vm667, %v1452, 0.0
    %v1478 = vsel %vm668, %v1453, 0.0
    %v1479 = vsel %vm669, %v1454, 0.0
    %v1480 = vsel %vm670, %v1455, 0.0
    %v1481 = vsel %vm671, %v1456, 0.0
    %v1482 = vsel %vm672, %v1457, 0.0
    %v1483 = vsel %vm673, %v1458, 0.0
    %v1484 = vsel %vm674, %v1459, 0.0
    %v1485 = vsel %vm675, %v1460, 0.0
    %v1486 = vsel %vm676, %v1461, 0.0
    %v1487 = vsel %vm677, %v1462, 0.0
    %v1488 = vsel %vm678, %v1463, 0.0
    %v1489 = vsel %vm679, %v1464, 0.0
    %v1490 = vsel %vm680, %v1465, 0.0
    %v1491 = vsel %vm681, %v1466, 0.0
    %v1492 = vsel %vm682, %v1467, 0.0
    %v1493 = vsel %vm683, %v1468, 0.0
    %v1494 = vsel %vm684, %v1469, 0.0
    %v1495 = vsel %vm685, %v1470, 0.0
    %v1496 = vsel %vm686, %v1471, 0.0
    %v1497 = vsel %vm687, %v1472, 0.0
    %v1498 = vsel %vm688, %v1473, 0.0
    %v1499 = vsel %vm689, %v1474, 0.0
    %v1500 = vlaneseq
    %v1501 = vshrl.u32 %v1500, 7
    %v1502 = vsub.s32 6, %v1501
    %v1503 = vrot.slane %v691, %v1502
    %v1504 = vmul.f32 %v1503, %v1476
    %v1505 = vmul.f32 %v1503, %v1477
    %v1506 = vmul.f32 %v1503, %v1478
    %v1507 = vmul.f32 %v1503, %v1479
    %v1508 = vmul.f32 %v1503, %v1480
    %v1509 = vmul.f32 %v1503, %v1481
    %v1510 = vmul.f32 %v1503, %v1482
    %v1511 = vmul.f32 %v1503, %v1483
    %v1512 = vmul.f32 %v1503, %v1484
    %v1513 = vmul.f32 %v1503, %v1485
    %v1514 = vmul.f32 %v1503, %v1486
    %v1515 = vmul.f32 %v1503, %v1487
    %v1516 = vmul.f32 %v1503, %v1488
    %v1517 = vmul.f32 %v1503, %v1489
    %v1518 = vmul.f32 %v1503, %v1490
    %v1519 = vmul.f32 %v1503, %v1491
    %v1520 = vmul.f32 %v1503, %v1492
    %v1521 = vmul.f32 %v1503, %v1493
    %v1522 = vmul.f32 %v1503, %v1494
    %v1523 = vmul.f32 %v1503, %v1495
    %v1524 = vmul.f32 %v1503, %v1496
    %v1525 = vmul.f32 %v1503, %v1497
    %v1526 = vmul.f32 %v1503, %v1498
    %v1527 = vmul.f32 %v1503, %v1499
    %v1528 = vadd.f32 %v1380, %v1504
    %v1529 = vadd.f32 %v1381, %v1505
    %v1530 = vadd.f32 %v1382, %v1506
    %v1531 = vadd.f32 %v1383, %v1507
    %v1532 = vadd.f32 %v1384, %v1508
    %v1533 = vadd.f32 %v1385, %v1509
    %v1534 = vadd.f32 %v1386, %v1510
    %v1535 = vadd.f32 %v1387, %v1511
    %v1536 = vadd.f32 %v1388, %v1512
    %v1537 = vadd.f32 %v1389, %v1513
    %v1538 = vadd.f32 %v1390, %v1514
    %v1539 = vadd.f32 %v1391, %v1515
    %v1540 = vadd.f32 %v1392, %v1516
    %v1541 = vadd.f32 %v1393, %v1517
    %v1542 = vadd.f32 %v1394, %v1518
    %v1543 = vadd.f32 %v1395, %v1519
    %v1544 = vadd.f32 %v1396, %v1520
    %v1545 = vadd.f32 %v1397, %v1521
    %v1546 = vadd.f32 %v1398, %v1522
    %v1547 = vadd.f32 %v1399, %v1523
    %v1548 = vadd.f32 %v1400, %v1524
    %v1549 = vadd.f32 %v1401, %v1525
    %v1550 = vadd.f32 %v1402, %v1526
    %v1551 = vadd.f32 %v1403, %v1527
    %v1552 = vlaneseq
    %v1553 = vshrl.u32 %v1552, 7
    %v1554 = vsub.s32 7, %v1553
    %v1555 = vrot.slane %v691, %v1554
    %v1556 = vmul.f32 %v1555, %v1452
    %v1557 = vmul.f32 %v1555, %v1453
    %v1558 = vmul.f32 %v1555, %v1454
    %v1559 = vmul.f32 %v1555, %v1455
    %v1560 = vmul.f32 %v1555, %v1456
    %v1561 = vmul.f32 %v1555, %v1457
    %v1562 = vmul.f32 %v1555, %v1458
    %v1563 = vmul.f32 %v1555, %v1459
    %v1564 = vmul.f32 %v1555, %v1460
    %v1565 = vmul.f32 %v1555, %v1461
    %v1566 = vmul.f32 %v1555, %v1462
    %v1567 = vmul.f32 %v1555, %v1463
    %v1568 = vmul.f32 %v1555, %v1464
    %v1569 = vmul.f32 %v1555, %v1465
    %v1570 = vmul.f32 %v1555, %v1466
    %v1571 = vmul.f32 %v1555, %v1467
    %v1572 = vmul.f32 %v1555, %v1468
    %v1573 = vmul.f32 %v1555, %v1469
    %v1574 = vmul.f32 %v1555, %v1470
    %v1575 = vmul.f32 %v1555, %v1471
    %v1576 = vmul.f32 %v1555, %v1472
    %v1577 = vmul.f32 %v1555, %v1473
    %v1578 = vmul.f32 %v1555, %v1474
    %v1579 = vmul.f32 %v1555, %v1475
    %v1580 = vadd.f32 %v1528, %v1556
    %v1581 = vadd.f32 %v1529, %v1557
    %v1582 = vadd.f32 %v1530, %v1558
    %v1583 = vadd.f32 %v1531, %v1559
    %v1584 = vadd.f32 %v1532, %v1560
    %v1585 = vadd.f32 %v1533, %v1561
    %v1586 = vadd.f32 %v1534, %v1562
    %v1587 = vadd.f32 %v1535, %v1563
    %v1588 = vadd.f32 %v1536, %v1564
    %v1589 = vadd.f32 %v1537, %v1565
    %v1590 = vadd.f32 %v1538, %v1566
    %v1591 = vadd.f32 %v1539, %v1567
    %v1592 = vadd.f32 %v1540, %v1568
    %v1593 = vadd.f32 %v1541, %v1569
    %v1594 = vadd.f32 %v1542, %v1570
    %v1595 = vadd.f32 %v1543, %v1571
    %v1596 = vadd.f32 %v1544, %v1572
    %v1597 = vadd.f32 %v1545, %v1573
    %v1598 = vadd.f32 %v1546, %v1574
    %v1599 = vadd.f32 %v1547, %v1575
    %v1600 = vadd.f32 %v1548, %v1576
    %v1601 = vadd.f32 %v1549, %v1577
    %v1602 = vadd.f32 %v1550, %v1578
    %v1603 = vadd.f32 %v1551, %v1579
    %v1604 = vmul.f32 %v901, %v1476
    %v1605 = vmul.f32 %v901, %v1477
    %v1606 = vmul.f32 %v901, %v1478
    %v1607 = vmul.f32 %v901, %v1479
    %v1608 = vmul.f32 %v901, %v1480
    %v1609 = vmul.f32 %v901, %v1481
    %v1610 = vmul.f32 %v901, %v1482
    %v1611 = vmul.f32 %v901, %v1483
    %v1612 = vmul.f32 %v901, %v1484
    %v1613 = vmul.f32 %v901, %v1485
    %v1614 = vmul.f32 %v901, %v1486
    %v1615 = vmul.f32 %v901, %v1487
    %v1616 = vmul.f32 %v901, %v1488
    %v1617 = vmul.f32 %v901, %v1489
    %v1618 = vmul.f32 %v901, %v1490
    %v1619 = vmul.f32 %v901, %v1491
    %v1620 = vmul.f32 %v901, %v1492
    %v1621 = vmul.f32 %v901, %v1493
    %v1622 = vmul.f32 %v901, %v1494
    %v1623 = vmul.f32 %v901, %v1495
    %v1624 = vmul.f32 %v901, %v1496
    %v1625 = vmul.f32 %v901, %v1497
    %v1626 = vmul.f32 %v901, %v1498
    %v1627 = vmul.f32 %v901, %v1499
    %v1628 = vmul.f32 %v929, %v1452
    %v1629 = vmul.f32 %v929, %v1453
    %v1630 = vmul.f32 %v929, %v1454
    %v1631 = vmul.f32 %v929, %v1455
    %v1632 = vmul.f32 %v929, %v1456
    %v1633 = vmul.f32 %v929, %v1457
    %v1634 = vmul.f32 %v929, %v1458
    %v1635 = vmul.f32 %v929, %v1459
    %v1636 = vmul.f32 %v929, %v1460
    %v1637 = vmul.f32 %v929, %v1461
    %v1638 = vmul.f32 %v929, %v1462
    %v1639 = vmul.f32 %v929, %v1463
    %v1640 = vmul.f32 %v929, %v1464
    %v1641 = vmul.f32 %v929, %v1465
    %v1642 = vmul.f32 %v929, %v1466
    %v1643 = vmul.f32 %v929, %v1467
    %v1644 = vmul.f32 %v929, %v1468
    %v1645 = vmul.f32 %v929, %v1469
    %v1646 = vmul.f32 %v929, %v1470
    %v1647 = vmul.f32 %v929, %v1471
    %v1648 = vmul.f32 %v929, %v1472
    %v1649 = vmul.f32 %v929, %v1473
    %v1650 = vmul.f32 %v929, %v1474
    %v1651 = vmul.f32 %v929, %v1475
    %v1652 = vadd.f32 %v1604, %v1628
    %v1653 = vadd.f32 %v1605, %v1629
    %v1654 = vadd.f32 %v1606, %v1630
    %v1655 = vadd.f32 %v1607, %v1631
    %v1656 = vadd.f32 %v1608, %v1632
    %v1657 = vadd.f32 %v1609, %v1633
    %v1658 = vadd.f32 %v1610, %v1634
    %v1659 = vadd.f32 %v1611, %v1635
    %v1660 = vadd.f32 %v1612, %v1636
    %v1661 = vadd.f32 %v1613, %v1637
    %v1662 = vadd.f32 %v1614, %v1638
    %v1663 = vadd.f32 %v1615, %v1639
    %v1664 = vadd.f32 %v1616, %v1640
    %v1665 = vadd.f32 %v1617, %v1641
    %v1666 = vadd.f32 %v1618, %v1642
    %v1667 = vadd.f32 %v1619, %v1643
    %v1668 = vadd.f32 %v1620, %v1644
    %v1669 = vadd.f32 %v1621, %v1645
    %v1670 = vadd.f32 %v1622, %v1646
    %v1671 = vadd.f32 %v1623, %v1647
    %v1672 = vadd.f32 %v1624, %v1648
    %v1673 = vadd.f32 %v1625, %v1649
    %v1674 = vadd.f32 %v1626, %v1650
    %v1675 = vadd.f32 %v1627, %v1651
    %v1676 = vlaneseq
    %v1677 = vshrl.u32 %v1676, 7
    %v1678 = vsub.s32 1, %v1677
    %v1679 = vrot.slane %v692, %v1678
    %v1680 = vmul.f32 %v1679, %v1652
    %v1681 = vmul.f32 %v1679, %v1653
    %v1682 = vmul.f32 %v1679, %v1654
    %v1683 = vmul.f32 %v1679, %v1655
    %v1684 = vmul.f32 %v1679, %v1656
    %v1685 = vmul.f32 %v1679, %v1657
    %v1686 = vmul.f32 %v1679, %v1658
    %v1687 = vmul.f32 %v1679, %v1659
    %v1688 = vmul.f32 %v1679, %v1660
    %v1689 = vmul.f32 %v1679, %v1661
    %v1690 = vmul.f32 %v1679, %v1662
    %v1691 = vmul.f32 %v1679, %v1663
    %v1692 = vmul.f32 %v1679, %v1664
    %v1693 = vmul.f32 %v1679, %v1665
    %v1694 = vmul.f32 %v1679, %v1666
    %v1695 = vmul.f32 %v1679, %v1667
    %v1696 = vmul.f32 %v1679, %v1668
    %v1697 = vmul.f32 %v1679, %v1669
    %v1698 = vmul.f32 %v1679, %v1670
    %v1699 = vmul.f32 %v1679, %v1671
    %v1700 = vmul.f32 %v1679, %v1672
    %v1701 = vmul.f32 %v1679, %v1673
    %v1702 = vmul.f32 %v1679, %v1674
    %v1703 = vmul.f32 %v1679, %v1675
    %v1704 = vadd.f32 %v1580, %v1680
    %v1705 = vadd.f32 %v1581, %v1681
    %v1706 = vadd.f32 %v1582, %v1682
    %v1707 = vadd.f32 %v1583, %v1683
    %v1708 = vadd.f32 %v1584, %v1684
    %v1709 = vadd.f32 %v1585, %v1685
    %v1710 = vadd.f32 %v1586, %v1686
    %v1711 = vadd.f32 %v1587, %v1687
    %v1712 = vadd.f32 %v1588, %v1688
    %v1713 = vadd.f32 %v1589, %v1689
    %v1714 = vadd.f32 %v1590, %v1690
    %v1715 = vadd.f32 %v1591, %v1691
    %v1716 = vadd.f32 %v1592, %v1692
    %v1717 = vadd.f32 %v1593, %v1693
    %v1718 = vadd.f32 %v1594, %v1694
    %v1719 = vadd.f32 %v1595, %v1695
    %v1720 = vadd.f32 %v1596, %v1696
    %v1721 = vadd.f32 %v1597, %v1697
    %v1722 = vadd.f32 %v1598, %v1698
    %v1723 = vadd.f32 %v1599, %v1699
    %v1724 = vadd.f32 %v1600, %v1700
    %v1725 = vadd.f32 %v1601, %v1701
    %v1726 = vadd.f32 %v1602, %v1702
    %v1727 = vadd.f32 %v1603, %v1703
    %v1728 = vmul.f32 %v1704, 0.5
    %v1729 = vmul.f32 %v1705, 0.5
    %v1730 = vmul.f32 %v1706, 0.5
    %v1731 = vmul.f32 %v1707, 0.5
    %v1732 = vmul.f32 %v1708, 0.5
    %v1733 = vmul.f32 %v1709, 0.5
    %v1734 = vmul.f32 %v1710, 0.5
    %v1735 = vmul.f32 %v1711, 0.5
    %v1736 = vmul.f32 %v1712, 0.5
    %v1737 = vmul.f32 %v1713, 0.5
    %v1738 = vmul.f32 %v1714, 0.5
    %v1739 = vmul.f32 %v1715, 0.5
    %v1740 = vmul.f32 %v1716, 0.5
    %v1741 = vmul.f32 %v1717, 0.5
    %v1742 = vmul.f32 %v1718, 0.5
    %v1743 = vmul.f32 %v1719, 0.5
    %v1744 = vmul.f32 %v1720, 0.5
    %v1745 = vmul.f32 %v1721, 0.5
    %v1746 = vmul.f32 %v1722, 0.5
    %v1747 = vmul.f32 %v1723, 0.5
    %v1748 = vmul.f32 %v1724, 0.5
    %v1749 = vmul.f32 %v1725, 0.5
    %v1750 = vmul.f32 %v1726, 0.5
    %v1751 = vmul.f32 %v1727, 0.5
    %v1752 = vmul.f32 %v1704, 0.70710677
    %v1753 = vmul.f32 %v1705, 0.70710677
    %v1754 = vmul.f32 %v1706, 0.70710677
    %v1755 = vmul.f32 %v1707, 0.70710677
    %v1756 = vmul.f32 %v1708, 0.70710677
    %v1757 = vmul.f32 %v1709, 0.70710677
    %v1758 = vmul.f32 %v1710, 0.70710677
    %v1759 = vmul.f32 %v1711, 0.70710677
    %v1760 = vmul.f32 %v1712, 0.70710677
    %v1761 = vmul.f32 %v1713, 0.70710677
    %v1762 = vmul.f32 %v1714, 0.70710677
    %v1763 = vmul.f32 %v1715, 0.70710677
    %v1764 = vmul.f32 %v1716, 0.70710677
    %v1765 = vmul.f32 %v1717, 0.70710677
    %v1766 = vmul.f32 %v1718, 0.70710677
    %v1767 = vmul.f32 %v1719, 0.70710677
    %v1768 = vmul.f32 %v1720, 0.70710677
    %v1769 = vmul.f32 %v1721, 0.70710677
    %v1770 = vmul.f32 %v1722, 0.70710677
    %v1771 = vmul.f32 %v1723, 0.70710677
    %v1772 = vmul.f32 %v1724, 0.70710677
    %v1773 = vmul.f32 %v1725, 0.70710677
    %v1774 = vmul.f32 %v1726, 0.70710677
    %v1775 = vmul.f32 %v1727, 0.70710677
    %v1776 = verf.f32.pop %v1752
    %v1777 = verf.f32.pop %v1753
    %v1778 = verf.f32.pop %v1754
    %v1779 = verf.f32.pop %v1755
    %v1780 = verf.f32.pop %v1756
    %v1781 = verf.f32.pop %v1757
    %v1782 = verf.f32.pop %v1758
    %v1783 = verf.f32.pop %v1759
    %v1784 = verf.f32.pop %v1760
    %v1785 = verf.f32.pop %v1761
    %v1786 = verf.f32.pop %v1762
    %v1787 = verf.f32.pop %v1763
    %v1788 = verf.f32.pop %v1764
    %v1789 = verf.f32.pop %v1765
    %v1790 = verf.f32.pop %v1766
    %v1791 = verf.f32.pop %v1767
    %v1792 = verf.f32.pop %v1768
    %v1793 = verf.f32.pop %v1769
    %v1794 = verf.f32.pop %v1770
    %v1795 = verf.f32.pop %v1771
    %v1796 = verf.f32.pop %v1772
    %v1797 = verf.f32.pop %v1773
    %v1798 = verf.f32.pop %v1774
    %v1799 = verf.f32.pop %v1775
    %v1800 = vadd.f32 %v1776, 1.0
    %v1801 = vadd.f32 %v1777, 1.0
    %v1802 = vadd.f32 %v1778, 1.0
    %v1803 = vadd.f32 %v1779, 1.0
    %v1804 = vadd.f32 %v1780, 1.0
    %v1805 = vadd.f32 %v1781, 1.0
    %v1806 = vadd.f32 %v1782, 1.0
    %v1807 = vadd.f32 %v1783, 1.0
    %v1808 = vadd.f32 %v1784, 1.0
    %v1809 = vadd.f32 %v1785, 1.0
    %v1810 = vadd.f32 %v1786, 1.0
    %v1811 = vadd.f32 %v1787, 1.0
    %v1812 = vadd.f32 %v1788, 1.0
    %v1813 = vadd.f32 %v1789, 1.0
    %v1814 = vadd.f32 %v1790, 1.0
    %v1815 = vadd.f32 %v1791, 1.0
    %v1816 = vadd.f32 %v1792, 1.0
    %v1817 = vadd.f32 %v1793, 1.0
    %v1818 = vadd.f32 %v1794, 1.0
    %v1819 = vadd.f32 %v1795, 1.0
    %v1820 = vadd.f32 %v1796, 1.0
    %v1821 = vadd.f32 %v1797, 1.0
    %v1822 = vadd.f32 %v1798, 1.0
    %v1823 = vadd.f32 %v1799, 1.0
    %v1824 = vmul.f32 %v1728, %v1800
    %v1825 = vmul.f32 %v1729, %v1801
    %v1826 = vmul.f32 %v1730, %v1802
    %v1827 = vmul.f32 %v1731, %v1803
    %v1828 = vmul.f32 %v1732, %v1804
    %v1829 = vmul.f32 %v1733, %v1805
    %v1830 = vmul.f32 %v1734, %v1806
    %v1831 = vmul.f32 %v1735, %v1807
    %v1832 = vmul.f32 %v1736, %v1808
    %v1833 = vmul.f32 %v1737, %v1809
    %v1834 = vmul.f32 %v1738, %v1810
    %v1835 = vmul.f32 %v1739, %v1811
    %v1836 = vmul.f32 %v1740, %v1812
    %v1837 = vmul.f32 %v1741, %v1813
    %v1838 = vmul.f32 %v1742, %v1814
    %v1839 = vmul.f32 %v1743, %v1815
    %v1840 = vmul.f32 %v1744, %v1816
    %v1841 = vmul.f32 %v1745, %v1817
    %v1842 = vmul.f32 %v1746, %v1818
    %v1843 = vmul.f32 %v1747, %v1819
    %v1844 = vmul.f32 %v1748, %v1820
    %v1845 = vmul.f32 %v1749, %v1821
    %v1846 = vmul.f32 %v1750, %v1822
    %v1847 = vmul.f32 %v1751, %v1823
    %v1848 = vld [vmem:[#allocation2] sm:$0xff]
    %v1849 = vld [vmem:[#allocation2 + $0x8] sm:$0xff]
    %v1850 = vld [vmem:[#allocation2 + $0x10] sm:$0xff]
    %v1851 = vld [vmem:[#allocation2 + $0x18] sm:$0xff]
    %v1852 = vld [vmem:[#allocation2 + $0x20] sm:$0xff]
    %v1853 = vld [vmem:[#allocation2 + $0x28] sm:$0xff]
    %v1854 = vld [vmem:[#allocation2 + $0x30] sm:$0xff]
    %v1855 = vld [vmem:[#allocation2 + $0x38] sm:$0xff]
    %v1856 = vld [vmem:[#allocation2 + $0x40] sm:$0xff]
    %v1857 = vld [vmem:[#allocation2 + $0x48] sm:$0xff]
    %v1858 = vld [vmem:[#allocation2 + $0x50] sm:$0xff]
    %v1859 = vld [vmem:[#allocation2 + $0x58] sm:$0xff]
    %v1860 = vld [vmem:[#allocation2 + $0x60] sm:$0xff]
    %v1861 = vld [vmem:[#allocation2 + $0x68] sm:$0xff]
    %v1862 = vld [vmem:[#allocation2 + $0x70] sm:$0xff]
    %v1863 = vld [vmem:[#allocation2 + $0x78] sm:$0xff]
    %v1864 = vld [vmem:[#allocation2 + $0x80] sm:$0xff]
    %v1865 = vld [vmem:[#allocation2 + $0x88] sm:$0xff]
    %v1866 = vld [vmem:[#allocation2 + $0x90] sm:$0xff]
    %v1867 = vld [vmem:[#allocation2 + $0x98] sm:$0xff]
    %v1868 = vld [vmem:[#allocation2 + $0xa0] sm:$0xff]
    %v1869 = vld [vmem:[#allocation2 + $0xa8] sm:$0xff]
    %v1870 = vld [vmem:[#allocation2 + $0xb0] sm:$0xff]
    %v1871 = vld [vmem:[#allocation2 + $0xb8] sm:$0xff]
    %v1872 = vld [vmem:[#allocation2 + $0xc0] sm:$0xff]
    %v1873 = vld [vmem:[#allocation2 + $0xc8] sm:$0xff]
    %v1874 = vld [vmem:[#allocation2 + $0xd0] sm:$0xff]
    %v1875 = vld [vmem:[#allocation2 + $0xd8] sm:$0xff]
    %v1876 = vld [vmem:[#allocation2 + $0xe0] sm:$0xff]
    %v1877 = vld [vmem:[#allocation2 + $0xe8] sm:$0xff]
    %v1878 = vld [vmem:[#allocation2 + $0xf0] sm:$0xff]
    %v1879 = vld [vmem:[#allocation2 + $0xf8] sm:$0xff]
    %v1880 = vld [vmem:[%s7] sm:$0x3]
    %v1882 = vlaneseq
    %v1883 = vshrl.u32 %v1882, 7
    %v1884 = vsub.s32 0, %v1883
    %v1885 = vrot.slane %v1880, %v1884
    %v1886 = vlaneseq
    %v1887 = vshrl.u32 %v1886, 7
    %v1888 = vsub.s32 1, %v1887
    %v1889 = vrot.slane %v1880, %v1888
    %1892 = vmatprep.subr.mxu0 %v1849
    %1893 = vmatpush1.msra.mxu0 %v1848
    %1894 = vmatprep.subr.mxu0 %v1851
    %1895 = vmatpush1.msra.mxu0 %v1850
    %1896 = vmatprep.subr.mxu0 %v1853
    %1897 = vmatpush1.msra.mxu0 %v1852
    %1898 = vmatprep.subr.mxu0 %v1855
    %1899 = vmatpush1.msra.mxu0 %v1854
    %1900 = vmatprep.subr.mxu0 %v1857
    %1901 = vmatpush1.msra.mxu0 %v1856
    %1902 = vmatprep.subr.mxu0 %v1859
    %1903 = vmatpush1.msra.mxu0 %v1858
    %1904 = vmatprep.subr.mxu0 %v1861
    %1905 = vmatpush1.msra.mxu0 %v1860
    %1906 = vmatprep.subr.mxu0 %v1863
    %1907 = vmatpush1.msra.mxu0 %v1862
    %1908 = vmatprep.subr.mxu0 %v1865
    %1909 = vmatpush1.msra.mxu0 %v1864
    %1910 = vmatprep.subr.mxu0 %v1867
    %1911 = vmatpush1.msra.mxu0 %v1866
    %1912 = vmatprep.subr.mxu0 %v1869
    %1913 = vmatpush1.msra.mxu0 %v1868
    %1914 = vmatprep.subr.mxu0 %v1871
    %1915 = vmatpush1.msra.mxu0 %v1870
    %1916 = vmatprep.subr.mxu0 %v1873
    %1917 = vmatpush1.msra.mxu0 %v1872
    %1918 = vmatprep.subr.mxu0 %v1875
    %1919 = vmatpush1.msra.mxu0 %v1874
    %1920 = vmatprep.subr.mxu0 %v1877
    %1921 = vmatpush1.msra.mxu0 %v1876
    %1922 = vmatprep.subr.mxu0 %v1879
    %1923 = vmatpush1.msra.mxu0 %v1878
    %1924 = vmatprep.subr.mxu0 0.0
    %1925 = vmatpush1.msra.mxu0 0.0
    %1926 = vmatprep.subr.mxu0 0.0
    %1927 = vmatpush1.msra.mxu0 0.0
    %1928 = vmatprep.subr.mxu0 0.0
    %1929 = vmatpush1.msra.mxu0 0.0
    %1930 = vmatprep.subr.mxu0 0.0
    %1931 = vmatpush1.msra.mxu0 0.0
    %1932 = vmatprep.subr.mxu0 0.0
    %1933 = vmatpush1.msra.mxu0 0.0
    %1934 = vmatprep.subr.mxu0 0.0
    %1935 = vmatpush1.msra.mxu0 0.0
    %1936 = vmatprep.subr.mxu0 0.0
    %1937 = vmatpush1.msra.mxu0 0.0
    %1938 = vmatprep.subr.mxu0 0.0
    %1939 = vmatpush1.msra.mxu0 0.0
    %1940 = vmatprep.subr.mxu0 0.0
    %1941 = vmatpush1.msra.mxu0 0.0
    %1942 = vmatprep.subr.mxu0 0.0
    %1943 = vmatpush1.msra.mxu0 0.0
    %1944 = vmatprep.subr.mxu0 0.0
    %1945 = vmatpush1.msra.mxu0 0.0
    %1946 = vmatprep.subr.mxu0 0.0
    %1947 = vmatpush1.msra.mxu0 0.0
    %1948 = vmatprep.subr.mxu0 0.0
    %1949 = vmatpush1.msra.mxu0 0.0
    %1950 = vmatprep.subr.mxu0 0.0
    %1951 = vmatpush1.msra.mxu0 0.0
    %1952 = vmatprep.subr.mxu0 0.0
    %1953 = vmatpush1.msra.mxu0 0.0
    %1954 = vmatprep.subr.mxu0 0.0
    %1955 = vmatpush1.msra.mxu0 0.0
    %1956 = vmatprep.mubr.f32.mxu0 0.0
    %1957 = vmatmul.mubr.f32.gmra.mrb[0].mxu0 %v1824
    %v1958 = vpop.f32.mrb[0].mxu0
    %v1959 = vadd.f32 %v1885, %v1958
    %v1960 = vpop.f32.mrb[0].mxu0
    %v1961 = vadd.f32 %v1889, %v1960
    %1962 = vmatprep.mubr.f32.mxu0 0.0
    %1963 = vmatmul.mubr.f32.gmra.mrb[0].mxu0 %v1825
    %v1964 = vpop.f32.mrb[0].mxu0
    %v1965 = vadd.f32 %v1885, %v1964
    %v1966 = vpop.f32.mrb[0].mxu0
    %v1967 = vadd.f32 %v1889, %v1966
    %1968 = vmatprep.mubr.f32.mxu0 0.0
    %1969 = vmatmul.mubr.f32.gmra.mrb[0].mxu0 %v1826
    %v1970 = vpop.f32.mrb[0].mxu0
    %v1971 = vadd.f32 %v1885, %v1970
    %v1972 = vpop.f32.mrb[0].mxu0
    %v1973 = vadd.f32 %v1889, %v1972
    %1974 = vmatprep.mubr.f32.mxu0 0.0
    %1975 = vmatmul.mubr.f32.gmra.mrb[0].mxu0 %v1827
    %v1976 = vpop.f32.mrb[0].mxu0
    %v1977 = vadd.f32 %v1885, %v1976
    %v1978 = vpop.f32.mrb[0].mxu0
    %v1979 = vadd.f32 %v1889, %v1978
    %1980 = vmatprep.mubr.f32.mxu0 0.0
    %1981 = vmatmul.mubr.f32.gmra.mrb[0].mxu0 %v1828
    %v1982 = vpop.f32.mrb[0].mxu0
    %v1983 = vadd.f32 %v1885, %v1982
    %v1984 = vpop.f32.mrb[0].mxu0
    %v1985 = vadd.f32 %v1889, %v1984
    %1986 = vmatprep.mubr.f32.mxu0 0.0
    %1987 = vmatmul.mubr.f32.gmra.mrb[0].mxu0 %v1829
    %v1988 = vpop.f32.mrb[0].mxu0
    %v1989 = vadd.f32 %v1885, %v1988
    %v1990 = vpop.f32.mrb[0].mxu0
    %v1991 = vadd.f32 %v1889, %v1990
    %1992 = vmatprep.mubr.f32.mxu0 0.0
    %1993 = vmatmul.mubr.f32.gmra.mrb[0].mxu0 %v1830
    %v1994 = vpop.f32.mrb[0].mxu0
    %v1995 = vadd.f32 %v1885, %v1994
    %v1996 = vpop.f32.mrb[0].mxu0
    %v1997 = vadd.f32 %v1889, %v1996
    %1998 = vmatprep.mubr.f32.mxu0 0.0
    %1999 = vmatmul.mubr.f32.gmra.mrb[0].mxu0 %v1831
    %v2000 = vpop.f32.mrb[0].mxu0
    %v2001 = vadd.f32 %v1885, %v2000
    %v2002 = vpop.f32.mrb[0].mxu0
    %v2003 = vadd.f32 %v1889, %v2002
    %2004 = vmatprep.mubr.f32.mxu0 0.0
    %2005 = vmatmul.mubr.f32.gmra.mrb[0].mxu0 %v1832
    %v2006 = vpop.f32.mrb[0].mxu0
    %v2007 = vadd.f32 %v1885, %v2006
    %v2008 = vpop.f32.mrb[0].mxu0
    %v2009 = vadd.f32 %v1889, %v2008
    %2010 = vmatprep.mubr.f32.mxu0 0.0
    %2011 = vmatmul.mubr.f32.gmra.mrb[0].mxu0 %v1833
    %v2012 = vpop.f32.mrb[0].mxu0
    %v2013 = vadd.f32 %v1885, %v2012
    %v2014 = vpop.f32.mrb[0].mxu0
    %v2015 = vadd.f32 %v1889, %v2014
    %2016 = vmatprep.mubr.f32.mxu0 0.0
    %2017 = vmatmul.mubr.f32.gmra.mrb[0].mxu0 %v1834
    %v2018 = vpop.f32.mrb[0].mxu0
    %v2019 = vadd.f32 %v1885, %v2018
    %v2020 = vpop.f32.mrb[0].mxu0
    %v2021 = vadd.f32 %v1889, %v2020
    %2022 = vmatprep.mubr.f32.mxu0 0.0
    %2023 = vmatmul.mubr.f32.gmra.mrb[0].mxu0 %v1835
    %v2024 = vpop.f32.mrb[0].mxu0
    %v2025 = vadd.f32 %v1885, %v2024
    %v2026 = vpop.f32.mrb[0].mxu0
    %v2027 = vadd.f32 %v1889, %v2026
    %2028 = vmatprep.mubr.f32.mxu0 0.0
    %2029 = vmatmul.mubr.f32.gmra.mrb[0].mxu0 %v1836
    %v2030 = vpop.f32.mrb[0].mxu0
    %v2031 = vadd.f32 %v1885, %v2030
    %v2032 = vpop.f32.mrb[0].mxu0
    %v2033 = vadd.f32 %v1889, %v2032
    %2034 = vmatprep.mubr.f32.mxu0 0.0
    %2035 = vmatmul.mubr.f32.gmra.mrb[0].mxu0 %v1837
    %v2036 = vpop.f32.mrb[0].mxu0
    %v2037 = vadd.f32 %v1885, %v2036
    %v2038 = vpop.f32.mrb[0].mxu0
    %v2039 = vadd.f32 %v1889, %v2038
    %2040 = vmatprep.mubr.f32.mxu0 0.0
    %2041 = vmatmul.mubr.f32.gmra.mrb[0].mxu0 %v1838
    %v2042 = vpop.f32.mrb[0].mxu0
    %v2043 = vadd.f32 %v1885, %v2042
    %v2044 = vpop.f32.mrb[0].mxu0
    %v2045 = vadd.f32 %v1889, %v2044
    %2046 = vmatprep.mubr.f32.mxu0 0.0
    %2047 = vmatmul.mubr.f32.gmra.mrb[0].mxu0 %v1839
    %v2048 = vpop.f32.mrb[0].mxu0
    %v2049 = vadd.f32 %v1885, %v2048
    %v2050 = vpop.f32.mrb[0].mxu0
    %v2051 = vadd.f32 %v1889, %v2050
    %2052 = vmatprep.mubr.f32.mxu0 0.0
    %2053 = vmatmul.mubr.f32.gmra.mrb[0].mxu0 %v1840
    %v2054 = vpop.f32.mrb[0].mxu0
    %v2055 = vadd.f32 %v1885, %v2054
    %v2056 = vpop.f32.mrb[0].mxu0
    %v2057 = vadd.f32 %v1889, %v2056
    %2058 = vmatprep.mubr.f32.mxu0 0.0
    %2059 = vmatmul.mubr.f32.gmra.mrb[0].mxu0 %v1841
    %v2060 = vpop.f32.mrb[0].mxu0
    %v2061 = vadd.f32 %v1885, %v2060
    %v2062 = vpop.f32.mrb[0].mxu0
    %v2063 = vadd.f32 %v1889, %v2062
    %2064 = vmatprep.mubr.f32.mxu0 0.0
    %2065 = vmatmul.mubr.f32.gmra.mrb[0].mxu0 %v1842
    %v2066 = vpop.f32.mrb[0].mxu0
    %v2067 = vadd.f32 %v1885, %v2066
    %v2068 = vpop.f32.mrb[0].mxu0
    %v2069 = vadd.f32 %v1889, %v2068
    %2070 = vmatprep.mubr.f32.mxu0 0.0
    %2071 = vmatmul.mubr.f32.gmra.mrb[0].mxu0 %v1843
    %v2072 = vpop.f32.mrb[0].mxu0
    %v2073 = vadd.f32 %v1885, %v2072
    %v2074 = vpop.f32.mrb[0].mxu0
    %v2075 = vadd.f32 %v1889, %v2074
    %2076 = vmatprep.mubr.f32.mxu0 0.0
    %2077 = vmatmul.mubr.f32.gmra.mrb[0].mxu0 %v1844
    %v2078 = vpop.f32.mrb[0].mxu0
    %v2079 = vadd.f32 %v1885, %v2078
    %v2080 = vpop.f32.mrb[0].mxu0
    %v2081 = vadd.f32 %v1889, %v2080
    %2082 = vmatprep.mubr.f32.mxu0 0.0
    %2083 = vmatmul.mubr.f32.gmra.mrb[0].mxu0 %v1845
    %v2084 = vpop.f32.mrb[0].mxu0
    %v2085 = vadd.f32 %v1885, %v2084
    %v2086 = vpop.f32.mrb[0].mxu0
    %v2087 = vadd.f32 %v1889, %v2086
    %2088 = vmatprep.mubr.f32.mxu0 0.0
    %2089 = vmatmul.mubr.f32.gmra.mrb[0].mxu0 %v1846
    %v2090 = vpop.f32.mrb[0].mxu0
    %v2091 = vadd.f32 %v1885, %v2090
    %v2092 = vpop.f32.mrb[0].mxu0
    %v2093 = vadd.f32 %v1889, %v2092
    %2094 = vmatprep.mubr.f32.mxu0 0.0
    %2095 = vmatmul.mubr.f32.gmra.mrb[0].mxu0 %v1847
    %v2096 = vpop.f32.mrb[0].mxu0
    %v2097 = vadd.f32 %v1885, %v2096
    %v2098 = vpop.f32.mrb[0].mxu0
    %v2099 = vadd.f32 %v1889, %v2098
    %2100 = vdwg.mxu0
    %v2101 = vxor.u32 %v1961, 2147483648
    %v2102 = vxor.u32 %v1967, 2147483648
    %v2103 = vxor.u32 %v1973, 2147483648
    %v2104 = vxor.u32 %v1979, 2147483648
    %v2105 = vxor.u32 %v1985, 2147483648
    %v2106 = vxor.u32 %v1991, 2147483648
    %v2107 = vxor.u32 %v1997, 2147483648
    %v2108 = vxor.u32 %v2003, 2147483648
    %v2109 = vxor.u32 %v2009, 2147483648
    %v2110 = vxor.u32 %v2015, 2147483648
    %v2111 = vxor.u32 %v2021, 2147483648
    %v2112 = vxor.u32 %v2027, 2147483648
    %v2113 = vxor.u32 %v2033, 2147483648
    %v2114 = vxor.u32 %v2039, 2147483648
    %v2115 = vxor.u32 %v2045, 2147483648
    %v2116 = vxor.u32 %v2051, 2147483648
    %v2117 = vxor.u32 %v2057, 2147483648
    %v2118 = vxor.u32 %v2063, 2147483648
    %v2119 = vxor.u32 %v2069, 2147483648
    %v2120 = vxor.u32 %v2075, 2147483648
    %v2121 = vxor.u32 %v2081, 2147483648
    %v2122 = vxor.u32 %v2087, 2147483648
    %v2123 = vxor.u32 %v2093, 2147483648
    %v2124 = vxor.u32 %v2099, 2147483648
    %v2125 = vmul.f32 %v2101, 1.442695
    %v2126 = vpow.pop %v2125
    %v2127 = vmul.f32 %v2102, 1.442695
    %v2128 = vpow.pop %v2127
    %v2129 = vmul.f32 %v2103, 1.442695
    %v2130 = vpow.pop %v2129
    %v2131 = vmul.f32 %v2104, 1.442695
    %v2132 = vpow.pop %v2131
    %v2133 = vmul.f32 %v2105, 1.442695
    %v2134 = vpow.pop %v2133
    %v2135 = vmul.f32 %v2106, 1.442695
    %v2136 = vpow.pop %v2135
    %v2137 = vmul.f32 %v2107, 1.442695
    %v2138 = vpow.pop %v2137
    %v2139 = vmul.f32 %v2108, 1.442695
    %v2140 = vpow.pop %v2139
    %v2141 = vmul.f32 %v2109, 1.442695
    %v2142 = vpow.pop %v2141
    %v2143 = vmul.f32 %v2110, 1.442695
    %v2144 = vpow.pop %v2143
    %v2145 = vmul.f32 %v2111, 1.442695
    %v2146 = vpow.pop %v2145
    %v2147 = vmul.f32 %v2112, 1.442695
    %v2148 = vpow.pop %v2147
    %v2149 = vmul.f32 %v2113, 1.442695
    %v2150 = vpow.pop %v2149
    %v2151 = vmul.f32 %v2114, 1.442695
    %v2152 = vpow.pop %v2151
    %v2153 = vmul.f32 %v2115, 1.442695
    %v2154 = vpow.pop %v2153
    %v2155 = vmul.f32 %v2116, 1.442695
    %v2156 = vpow.pop %v2155
    %v2157 = vmul.f32 %v2117, 1.442695
    %v2158 = vpow.pop %v2157
    %v2159 = vmul.f32 %v2118, 1.442695
    %v2160 = vpow.pop %v2159
    %v2161 = vmul.f32 %v2119, 1.442695
    %v2162 = vpow.pop %v2161
    %v2163 = vmul.f32 %v2120, 1.442695
    %v2164 = vpow.pop %v2163
    %v2165 = vmul.f32 %v2121, 1.442695
    %v2166 = vpow.pop %v2165
    %v2167 = vmul.f32 %v2122, 1.442695
    %v2168 = vpow.pop %v2167
    %v2169 = vmul.f32 %v2123, 1.442695
    %v2170 = vpow.pop %v2169
    %v2171 = vmul.f32 %v2124, 1.442695
    %v2172 = vpow.pop %v2171
    %v2173 = vadd.f32 %v2126, 1.0
    %v2174 = vadd.f32 %v2128, 1.0
    %v2175 = vadd.f32 %v2130, 1.0
    %v2176 = vadd.f32 %v2132, 1.0
    %v2177 = vadd.f32 %v2134, 1.0
    %v2178 = vadd.f32 %v2136, 1.0
    %v2179 = vadd.f32 %v2138, 1.0
    %v2180 = vadd.f32 %v2140, 1.0
    %v2181 = vadd.f32 %v2142, 1.0
    %v2182 = vadd.f32 %v2144, 1.0
    %v2183 = vadd.f32 %v2146, 1.0
    %v2184 = vadd.f32 %v2148, 1.0
    %v2185 = vadd.f32 %v2150, 1.0
    %v2186 = vadd.f32 %v2152, 1.0
    %v2187 = vadd.f32 %v2154, 1.0
    %v2188 = vadd.f32 %v2156, 1.0
    %v2189 = vadd.f32 %v2158, 1.0
    %v2190 = vadd.f32 %v2160, 1.0
    %v2191 = vadd.f32 %v2162, 1.0
    %v2192 = vadd.f32 %v2164, 1.0
    %v2193 = vadd.f32 %v2166, 1.0
    %v2194 = vadd.f32 %v2168, 1.0
    %v2195 = vadd.f32 %v2170, 1.0
    %v2196 = vadd.f32 %v2172, 1.0
    %v2197 = vrcp.pop %v2173
    %v2198 = vmul.f32 1.0, %v2197
    %v2199 = vrcp.pop %v2174
    %v2200 = vmul.f32 1.0, %v2199
    %v2201 = vrcp.pop %v2175
    %v2202 = vmul.f32 1.0, %v2201
    %v2203 = vrcp.pop %v2176
    %v2204 = vmul.f32 1.0, %v2203
    %v2205 = vrcp.pop %v2177
    %v2206 = vmul.f32 1.0, %v2205
    %v2207 = vrcp.pop %v2178
    %v2208 = vmul.f32 1.0, %v2207
    %v2209 = vrcp.pop %v2179
    %v2210 = vmul.f32 1.0, %v2209
    %v2211 = vrcp.pop %v2180
    %v2212 = vmul.f32 1.0, %v2211
    %v2213 = vrcp.pop %v2181
    %v2214 = vmul.f32 1.0, %v2213
    %v2215 = vrcp.pop %v2182
    %v2216 = vmul.f32 1.0, %v2215
    %v2217 = vrcp.pop %v2183
    %v2218 = vmul.f32 1.0, %v2217
    %v2219 = vrcp.pop %v2184
    %v2220 = vmul.f32 1.0, %v2219
    %v2221 = vrcp.pop %v2185
    %v2222 = vmul.f32 1.0, %v2221
    %v2223 = vrcp.pop %v2186
    %v2224 = vmul.f32 1.0, %v2223
    %v2225 = vrcp.pop %v2187
    %v2226 = vmul.f32 1.0, %v2225
    %v2227 = vrcp.pop %v2188
    %v2228 = vmul.f32 1.0, %v2227
    %v2229 = vrcp.pop %v2189
    %v2230 = vmul.f32 1.0, %v2229
    %v2231 = vrcp.pop %v2190
    %v2232 = vmul.f32 1.0, %v2231
    %v2233 = vrcp.pop %v2191
    %v2234 = vmul.f32 1.0, %v2233
    %v2235 = vrcp.pop %v2192
    %v2236 = vmul.f32 1.0, %v2235
    %v2237 = vrcp.pop %v2193
    %v2238 = vmul.f32 1.0, %v2237
    %v2239 = vrcp.pop %v2194
    %v2240 = vmul.f32 1.0, %v2239
    %v2241 = vrcp.pop %v2195
    %v2242 = vmul.f32 1.0, %v2241
    %v2243 = vrcp.pop %v2196
    %v2244 = vmul.f32 1.0, %v2243
    %v2245 = vmul.f32 %v1959, %v2198
    %v2246 = vmul.f32 %v1965, %v2200
    %v2247 = vmul.f32 %v1971, %v2202
    %v2248 = vmul.f32 %v1977, %v2204
    %v2249 = vmul.f32 %v1983, %v2206
    %v2250 = vmul.f32 %v1989, %v2208
    %v2251 = vmul.f32 %v1995, %v2210
    %v2252 = vmul.f32 %v2001, %v2212
    %v2253 = vmul.f32 %v2007, %v2214
    %v2254 = vmul.f32 %v2013, %v2216
    %v2255 = vmul.f32 %v2019, %v2218
    %v2256 = vmul.f32 %v2025, %v2220
    %v2257 = vmul.f32 %v2031, %v2222
    %v2258 = vmul.f32 %v2037, %v2224
    %v2259 = vmul.f32 %v2043, %v2226
    %v2260 = vmul.f32 %v2049, %v2228
    %v2261 = vmul.f32 %v2055, %v2230
    %v2262 = vmul.f32 %v2061, %v2232
    %v2263 = vmul.f32 %v2067, %v2234
    %v2264 = vmul.f32 %v2073, %v2236
    %v2265 = vmul.f32 %v2079, %v2238
    %v2266 = vmul.f32 %v2085, %v2240
    %v2267 = vmul.f32 %v2091, %v2242
    %v2268 = vmul.f32 %v2097, %v2244
    %v2269 = vadd.f32 %v2245, %v235
    %v2270 = vadd.f32 %v2246, %v240
    %v2271 = vadd.f32 %v2247, %v245
    %v2272 = vadd.f32 %v2248, %v250
    %v2273 = vadd.f32 %v2249, %v255
    %v2274 = vadd.f32 %v2250, %v260
    %v2275 = vadd.f32 %v2251, %v265
    %v2276 = vadd.f32 %v2252, %v270
    %v2277 = vadd.f32 %v2253, %v275
    %v2278 = vadd.f32 %v2254, %v280
    %v2279 = vadd.f32 %v2255, %v285
    %v2280 = vadd.f32 %v2256, %v290
    %v2281 = vadd.f32 %v2257, %v295
    %v2282 = vadd.f32 %v2258, %v300
    %v2283 = vadd.f32 %v2259, %v305
    %v2284 = vadd.f32 %v2260, %v310
    %v2285 = vadd.f32 %v2261, %v315
    %v2286 = vadd.f32 %v2262, %v320
    %v2287 = vadd.f32 %v2263, %v325
    %v2288 = vadd.f32 %v2264, %v330
    %v2289 = vadd.f32 %v2265, %v335
    %v2290 = vadd.f32 %v2266, %v340
    %v2291 = vadd.f32 %v2267, %v345
    %v2292 = vadd.f32 %v2268, %v350
    %2293 = vadd.xlane.f32.xlu0 %v2269
    %v2294 = vpop.xlane.xlu0 %2293
    %2295 = vadd.xlane.f32.xlu0 %v2270
    %v2296 = vpop.xlane.xlu0 %2295
    %2297 = vadd.xlane.f32.xlu0 %v2271
    %v2298 = vpop.xlane.xlu0 %2297
    %2299 = vadd.xlane.f32.xlu0 %v2272
    %v2300 = vpop.xlane.xlu0 %2299
    %2301 = vadd.xlane.f32.xlu0 %v2273
    %v2302 = vpop.xlane.xlu0 %2301
    %2303 = vadd.xlane.f32.xlu0 %v2274
    %v2304 = vpop.xlane.xlu0 %2303
    %2305 = vadd.xlane.f32.xlu0 %v2275
    %v2306 = vpop.xlane.xlu0 %2305
    %2307 = vadd.xlane.f32.xlu0 %v2276
    %v2308 = vpop.xlane.xlu0 %2307
    %2309 = vadd.xlane.f32.xlu0 %v2277
    %v2310 = vpop.xlane.xlu0 %2309
    %2311 = vadd.xlane.f32.xlu0 %v2278
    %v2312 = vpop.xlane.xlu0 %2311
    %2313 = vadd.xlane.f32.xlu0 %v2279
    %v2314 = vpop.xlane.xlu0 %2313
    %2315 = vadd.xlane.f32.xlu0 %v2280
    %v2316 = vpop.xlane.xlu0 %2315
    %2317 = vadd.xlane.f32.xlu0 %v2281
    %v2318 = vpop.xlane.xlu0 %2317
    %2319 = vadd.xlane.f32.xlu0 %v2282
    %v2320 = vpop.xlane.xlu0 %2319
    %2321 = vadd.xlane.f32.xlu0 %v2283
    %v2322 = vpop.xlane.xlu0 %2321
    %2323 = vadd.xlane.f32.xlu0 %v2284
    %v2324 = vpop.xlane.xlu0 %2323
    %2325 = vadd.xlane.f32.xlu0 %v2285
    %v2326 = vpop.xlane.xlu0 %2325
    %2327 = vadd.xlane.f32.xlu0 %v2286
    %v2328 = vpop.xlane.xlu0 %2327
    %2329 = vadd.xlane.f32.xlu0 %v2287
    %v2330 = vpop.xlane.xlu0 %2329
    %2331 = vadd.xlane.f32.xlu0 %v2288
    %v2332 = vpop.xlane.xlu0 %2331
    %2333 = vadd.xlane.f32.xlu0 %v2289
    %v2334 = vpop.xlane.xlu0 %2333
    %2335 = vadd.xlane.f32.xlu0 %v2290
    %v2336 = vpop.xlane.xlu0 %2335
    %2337 = vadd.xlane.f32.xlu0 %v2291
    %v2338 = vpop.xlane.xlu0 %2337
    %2339 = vadd.xlane.f32.xlu0 %v2292
    %v2340 = vpop.xlane.xlu0 %2339
    %v2341 = vrcp.pop 128.0
    %v2342 = vmul.f32 %v2294, %v2341
    %v2343 = vmul.f32 %v2296, %v2341
    %v2344 = vmul.f32 %v2298, %v2341
    %v2345 = vmul.f32 %v2300, %v2341
    %v2346 = vmul.f32 %v2302, %v2341
    %v2347 = vmul.f32 %v2304, %v2341
    %v2348 = vmul.f32 %v2306, %v2341
    %v2349 = vmul.f32 %v2308, %v2341
    %v2350 = vmul.f32 %v2310, %v2341
    %v2351 = vmul.f32 %v2312, %v2341
    %v2352 = vmul.f32 %v2314, %v2341
    %v2353 = vmul.f32 %v2316, %v2341
    %v2354 = vmul.f32 %v2318, %v2341
    %v2355 = vmul.f32 %v2320, %v2341
    %v2356 = vmul.f32 %v2322, %v2341
    %v2357 = vmul.f32 %v2324, %v2341
    %v2358 = vmul.f32 %v2326, %v2341
    %v2359 = vmul.f32 %v2328, %v2341
    %v2360 = vmul.f32 %v2330, %v2341
    %v2361 = vmul.f32 %v2332, %v2341
    %v2362 = vmul.f32 %v2334, %v2341
    %v2363 = vmul.f32 %v2336, %v2341
    %v2364 = vmul.f32 %v2338, %v2341
    %v2365 = vmul.f32 %v2340, %v2341
    %v2366 = vsub.f32 %v2269, %v2342
    %v2367 = vsub.f32 %v2270, %v2343
    %v2368 = vsub.f32 %v2271, %v2344
    %v2369 = vsub.f32 %v2272, %v2345
    %v2370 = vsub.f32 %v2273, %v2346
    %v2371 = vsub.f32 %v2274, %v2347
    %v2372 = vsub.f32 %v2275, %v2348
    %v2373 = vsub.f32 %v2276, %v2349
    %v2374 = vsub.f32 %v2277, %v2350
    %v2375 = vsub.f32 %v2278, %v2351
    %v2376 = vsub.f32 %v2279, %v2352
    %v2377 = vsub.f32 %v2280, %v2353
    %v2378 = vsub.f32 %v2281, %v2354
    %v2379 = vsub.f32 %v2282, %v2355
    %v2380 = vsub.f32 %v2283, %v2356
    %v2381 = vsub.f32 %v2284, %v2357
    %v2382 = vsub.f32 %v2285, %v2358
    %v2383 = vsub.f32 %v2286, %v2359
    %v2384 = vsub.f32 %v2287, %v2360
    %v2385 = vsub.f32 %v2288, %v2361
    %v2386 = vsub.f32 %v2289, %v2362
    %v2387 = vsub.f32 %v2290, %v2363
    %v2388 = vsub.f32 %v2291, %v2364
    %v2389 = vsub.f32 %v2292, %v2365
    %v2390 = vmul.f32 %v2366, %v2366
    %v2391 = vmul.f32 %v2367, %v2367
    %v2392 = vmul.f32 %v2368, %v2368
    %v2393 = vmul.f32 %v2369, %v2369
    %v2394 = vmul.f32 %v2370, %v2370
    %v2395 = vmul.f32 %v2371, %v2371
    %v2396 = vmul.f32 %v2372, %v2372
    %v2397 = vmul.f32 %v2373, %v2373
    %v2398 = vmul.f32 %v2374, %v2374
    %v2399 = vmul.f32 %v2375, %v2375
    %v2400 = vmul.f32 %v2376, %v2376
    %v2401 = vmul.f32 %v2377, %v2377
    %v2402 = vmul.f32 %v2378, %v2378
    %v2403 = vmul.f32 %v2379, %v2379
    %v2404 = vmul.f32 %v2380, %v2380
    %v2405 = vmul.f32 %v2381, %v2381
    %v2406 = vmul.f32 %v2382, %v2382
    %v2407 = vmul.f32 %v2383, %v2383
    %v2408 = vmul.f32 %v2384, %v2384
    %v2409 = vmul.f32 %v2385, %v2385
    %v2410 = vmul.f32 %v2386, %v2386
    %v2411 = vmul.f32 %v2387, %v2387
    %v2412 = vmul.f32 %v2388, %v2388
    %v2413 = vmul.f32 %v2389, %v2389
    %2414 = vadd.xlane.f32.xlu0 %v2390
    %v2415 = vpop.xlane.xlu0 %2414
    %2416 = vadd.xlane.f32.xlu0 %v2391
    %v2417 = vpop.xlane.xlu0 %2416
    %2418 = vadd.xlane.f32.xlu0 %v2392
    %v2419 = vpop.xlane.xlu0 %2418
    %2420 = vadd.xlane.f32.xlu0 %v2393
    %v2421 = vpop.xlane.xlu0 %2420
    %2422 = vadd.xlane.f32.xlu0 %v2394
    %v2423 = vpop.xlane.xlu0 %2422
    %2424 = vadd.xlane.f32.xlu0 %v2395
    %v2425 = vpop.xlane.xlu0 %2424
    %2426 = vadd.xlane.f32.xlu0 %v2396
    %v2427 = vpop.xlane.xlu0 %2426
    %2428 = vadd.xlane.f32.xlu0 %v2397
    %v2429 = vpop.xlane.xlu0 %2428
    %2430 = vadd.xlane.f32.xlu0 %v2398
    %v2431 = vpop.xlane.xlu0 %2430
    %2432 = vadd.xlane.f32.xlu0 %v2399
    %v2433 = vpop.xlane.xlu0 %2432
    %2434 = vadd.xlane.f32.xlu0 %v2400
    %v2435 = vpop.xlane.xlu0 %2434
    %2436 = vadd.xlane.f32.xlu0 %v2401
    %v2437 = vpop.xlane.xlu0 %2436
    %2438 = vadd.xlane.f32.xlu0 %v2402
    %v2439 = vpop.xlane.xlu0 %2438
    %2440 = vadd.xlane.f32.xlu0 %v2403
    %v2441 = vpop.xlane.xlu0 %2440
    %2442 = vadd.xlane.f32.xlu0 %v2404
    %v2443 = vpop.xlane.xlu0 %2442
    %2444 = vadd.xlane.f32.xlu0 %v2405
    %v2445 = vpop.xlane.xlu0 %2444
    %2446 = vadd.xlane.f32.xlu0 %v2406
    %v2447 = vpop.xlane.xlu0 %2446
    %2448 = vadd.xlane.f32.xlu0 %v2407
    %v2449 = vpop.xlane.xlu0 %2448
    %2450 = vadd.xlane.f32.xlu0 %v2408
    %v2451 = vpop.xlane.xlu0 %2450
    %2452 = vadd.xlane.f32.xlu0 %v2409
    %v2453 = vpop.xlane.xlu0 %2452
    %2454 = vadd.xlane.f32.xlu0 %v2410
    %v2455 = vpop.xlane.xlu0 %2454
    %2456 = vadd.xlane.f32.xlu0 %v2411
    %v2457 = vpop.xlane.xlu0 %2456
    %2458 = vadd.xlane.f32.xlu0 %v2412
    %v2459 = vpop.xlane.xlu0 %2458
    %2460 = vadd.xlane.f32.xlu0 %v2413
    %v2461 = vpop.xlane.xlu0 %2460
    %v2462 = vmul.f32 %v2415, %v2341
    %v2463 = vmul.f32 %v2417, %v2341
    %v2464 = vmul.f32 %v2419, %v2341
    %v2465 = vmul.f32 %v2421, %v2341
    %v2466 = vmul.f32 %v2423, %v2341
    %v2467 = vmul.f32 %v2425, %v2341
    %v2468 = vmul.f32 %v2427, %v2341
    %v2469 = vmul.f32 %v2429, %v2341
    %v2470 = vmul.f32 %v2431, %v2341
    %v2471 = vmul.f32 %v2433, %v2341
    %v2472 = vmul.f32 %v2435, %v2341
    %v2473 = vmul.f32 %v2437, %v2341
    %v2474 = vmul.f32 %v2439, %v2341
    %v2475 = vmul.f32 %v2441, %v2341
    %v2476 = vmul.f32 %v2443, %v2341
    %v2477 = vmul.f32 %v2445, %v2341
    %v2478 = vmul.f32 %v2447, %v2341
    %v2479 = vmul.f32 %v2449, %v2341
    %v2480 = vmul.f32 %v2451, %v2341
    %v2481 = vmul.f32 %v2453, %v2341
    %v2482 = vmul.f32 %v2455, %v2341
    %v2483 = vmul.f32 %v2457, %v2341
    %v2484 = vmul.f32 %v2459, %v2341
    %v2485 = vmul.f32 %v2461, %v2341
    %v2486 = vadd.f32 %v2462, 1e-05
    %v2487 = vadd.f32 %v2463, 1e-05
    %v2488 = vadd.f32 %v2464, 1e-05
    %v2489 = vadd.f32 %v2465, 1e-05
    %v2490 = vadd.f32 %v2466, 1e-05
    %v2491 = vadd.f32 %v2467, 1e-05
    %v2492 = vadd.f32 %v2468, 1e-05
    %v2493 = vadd.f32 %v2469, 1e-05
    %v2494 = vadd.f32 %v2470, 1e-05
    %v2495 = vadd.f32 %v2471, 1e-05
    %v2496 = vadd.f32 %v2472, 1e-05
    %v2497 = vadd.f32 %v2473, 1e-05
    %v2498 = vadd.f32 %v2474, 1e-05
    %v2499 = vadd.f32 %v2475, 1e-05
    %v2500 = vadd.f32 %v2476, 1e-05
    %v2501 = vadd.f32 %v2477, 1e-05
    %v2502 = vadd.f32 %v2478, 1e-05
    %v2503 = vadd.f32 %v2479, 1e-05
    %v2504 = vadd.f32 %v2480, 1e-05
    %v2505 = vadd.f32 %v2481, 1e-05
    %v2506 = vadd.f32 %v2482, 1e-05
    %v2507 = vadd.f32 %v2483, 1e-05
    %v2508 = vadd.f32 %v2484, 1e-05
    %v2509 = vadd.f32 %v2485, 1e-05
    %v2510 = vrsqrt.pop %v2486
    %v2511 = vrsqrt.pop %v2487
    %v2512 = vrsqrt.pop %v2488
    %v2513 = vrsqrt.pop %v2489
    %v2514 = vrsqrt.pop %v2490
    %v2515 = vrsqrt.pop %v2491
    %v2516 = vrsqrt.pop %v2492
    %v2517 = vrsqrt.pop %v2493
    %v2518 = vrsqrt.pop %v2494
    %v2519 = vrsqrt.pop %v2495
    %v2520 = vrsqrt.pop %v2496
    %v2521 = vrsqrt.pop %v2497
    %v2522 = vrsqrt.pop %v2498
    %v2523 = vrsqrt.pop %v2499
    %v2524 = vrsqrt.pop %v2500
    %v2525 = vrsqrt.pop %v2501
    %v2526 = vrsqrt.pop %v2502
    %v2527 = vrsqrt.pop %v2503
    %v2528 = vrsqrt.pop %v2504
    %v2529 = vrsqrt.pop %v2505
    %v2530 = vrsqrt.pop %v2506
    %v2531 = vrsqrt.pop %v2507
    %v2532 = vrsqrt.pop %v2508
    %v2533 = vrsqrt.pop %v2509
    %v2534 = vld [vmem:[%s8] sm:$0x1]
    %v2536 = vlaneseq
    %v2537 = vshrl.u32 %v2536, 7
    %v2538 = vsub.s32 0, %v2537
    %v2539 = vrot.slane %v2534, %v2538
    %v2541 = vmul.f32 %v2510, %v2539
    %v2542 = vmul.f32 %v2511, %v2539
    %v2543 = vmul.f32 %v2512, %v2539
    %v2544 = vmul.f32 %v2513, %v2539
    %v2545 = vmul.f32 %v2514, %v2539
    %v2546 = vmul.f32 %v2515, %v2539
    %v2547 = vmul.f32 %v2516, %v2539
    %v2548 = vmul.f32 %v2517, %v2539
    %v2549 = vmul.f32 %v2518, %v2539
    %v2550 = vmul.f32 %v2519, %v2539
    %v2551 = vmul.f32 %v2520, %v2539
    %v2552 = vmul.f32 %v2521, %v2539
    %v2553 = vmul.f32 %v2522, %v2539
    %v2554 = vmul.f32 %v2523, %v2539
    %v2555 = vmul.f32 %v2524, %v2539
    %v2556 = vmul.f32 %v2525, %v2539
    %v2557 = vmul.f32 %v2526, %v2539
    %v2558 = vmul.f32 %v2527, %v2539
    %v2559 = vmul.f32 %v2528, %v2539
    %v2560 = vmul.f32 %v2529, %v2539
    %v2561 = vmul.f32 %v2530, %v2539
    %v2562 = vmul.f32 %v2531, %v2539
    %v2563 = vmul.f32 %v2532, %v2539
    %v2564 = vmul.f32 %v2533, %v2539
    %v2565 = vmul.f32 %v2366, %v2541
    %v2566 = vmul.f32 %v2367, %v2542
    %v2567 = vmul.f32 %v2368, %v2543
    %v2568 = vmul.f32 %v2369, %v2544
    %v2569 = vmul.f32 %v2370, %v2545
    %v2570 = vmul.f32 %v2371, %v2546
    %v2571 = vmul.f32 %v2372, %v2547
    %v2572 = vmul.f32 %v2373, %v2548
    %v2573 = vmul.f32 %v2374, %v2549
    %v2574 = vmul.f32 %v2375, %v2550
    %v2575 = vmul.f32 %v2376, %v2551
    %v2576 = vmul.f32 %v2377, %v2552
    %v2577 = vmul.f32 %v2378, %v2553
    %v2578 = vmul.f32 %v2379, %v2554
    %v2579 = vmul.f32 %v2380, %v2555
    %v2580 = vmul.f32 %v2381, %v2556
    %v2581 = vmul.f32 %v2382, %v2557
    %v2582 = vmul.f32 %v2383, %v2558
    %v2583 = vmul.f32 %v2384, %v2559
    %v2584 = vmul.f32 %v2385, %v2560
    %v2585 = vmul.f32 %v2386, %v2561
    %v2586 = vmul.f32 %v2387, %v2562
    %v2587 = vmul.f32 %v2388, %v2563
    %v2588 = vmul.f32 %v2389, %v2564
    %v2589 = vld [vmem:[%s9] sm:$0x1]
    %v2591 = vlaneseq
    %v2592 = vshrl.u32 %v2591, 7
    %v2593 = vsub.s32 0, %v2592
    %v2594 = vrot.slane %v2589, %v2593
    %v2596 = vadd.f32 %v2565, %v2594
    %v2597 = vadd.f32 %v2566, %v2594
    %v2598 = vadd.f32 %v2567, %v2594
    %v2599 = vadd.f32 %v2568, %v2594
    %v2600 = vadd.f32 %v2569, %v2594
    %v2601 = vadd.f32 %v2570, %v2594
    %v2602 = vadd.f32 %v2571, %v2594
    %v2603 = vadd.f32 %v2572, %v2594
    %v2604 = vadd.f32 %v2573, %v2594
    %v2605 = vadd.f32 %v2574, %v2594
    %v2606 = vadd.f32 %v2575, %v2594
    %v2607 = vadd.f32 %v2576, %v2594
    %v2608 = vadd.f32 %v2577, %v2594
    %v2609 = vadd.f32 %v2578, %v2594
    %v2610 = vadd.f32 %v2579, %v2594
    %v2611 = vadd.f32 %v2580, %v2594
    %v2612 = vadd.f32 %v2581, %v2594
    %v2613 = vadd.f32 %v2582, %v2594
    %v2614 = vadd.f32 %v2583, %v2594
    %v2615 = vadd.f32 %v2584, %v2594
    %v2616 = vadd.f32 %v2585, %v2594
    %v2617 = vadd.f32 %v2586, %v2594
    %v2618 = vadd.f32 %v2587, %v2594
    %v2619 = vadd.f32 %v2588, %v2594
    %s2620 = scalar_lea.vmem %s3, 2
    %v2621 = vld [vmem:[%s2620] sm:$0x3]
    %s2622 = scalar_lea.vmem %s4, 8
    %v2623 = vld [vmem:[%s2622] sm:$0xff]
    %s2624 = scalar_lea.vmem %s5, 2
    %v2625 = vld [vmem:[%s2624] sm:$0x3]
    %v2626 = vlaneseq
    %v2627 = vshrl.u32 %v2626, 7
    %v2628 = vsub.s32 0, %v2627
    %v2629 = vrot.slane %v2625, %v2628
    %v2630 = vmul.f32 %v2629, %v2596
    %v2631 = vmul.f32 %v2629, %v2597
    %v2632 = vmul.f32 %v2629, %v2598
    %v2633 = vmul.f32 %v2629, %v2599
    %v2634 = vmul.f32 %v2629, %v2600
    %v2635 = vmul.f32 %v2629, %v2601
    %v2636 = vmul.f32 %v2629, %v2602
    %v2637 = vmul.f32 %v2629, %v2603
    %v2638 = vmul.f32 %v2629, %v2604
    %v2639 = vmul.f32 %v2629, %v2605
    %v2640 = vmul.f32 %v2629, %v2606
    %v2641 = vmul.f32 %v2629, %v2607
    %v2642 = vmul.f32 %v2629, %v2608
    %v2643 = vmul.f32 %v2629, %v2609
    %v2644 = vmul.f32 %v2629, %v2610
    %v2645 = vmul.f32 %v2629, %v2611
    %v2646 = vmul.f32 %v2629, %v2612
    %v2647 = vmul.f32 %v2629, %v2613
    %v2648 = vmul.f32 %v2629, %v2614
    %v2649 = vmul.f32 %v2629, %v2615
    %v2650 = vmul.f32 %v2629, %v2616
    %v2651 = vmul.f32 %v2629, %v2617
    %v2652 = vmul.f32 %v2629, %v2618
    %v2653 = vmul.f32 %v2629, %v2619
    %v2654 = vrot.slane %v2596, 7
    %v2655 = vrot.slane %v2597, 7
    %v2656 = vrot.slane %v2598, 7
    %v2657 = vrot.slane %v2599, 7
    %v2658 = vrot.slane %v2600, 7
    %v2659 = vrot.slane %v2601, 7
    %v2660 = vrot.slane %v2602, 7
    %v2661 = vrot.slane %v2603, 7
    %v2662 = vrot.slane %v2604, 7
    %v2663 = vrot.slane %v2605, 7
    %v2664 = vrot.slane %v2606, 7
    %v2665 = vrot.slane %v2607, 7
    %v2666 = vrot.slane %v2608, 7
    %v2667 = vrot.slane %v2609, 7
    %v2668 = vrot.slane %v2610, 7
    %v2669 = vrot.slane %v2611, 7
    %v2670 = vrot.slane %v2612, 7
    %v2671 = vrot.slane %v2613, 7
    %v2672 = vrot.slane %v2614, 7
    %v2673 = vrot.slane %v2615, 7
    %v2674 = vrot.slane %v2616, 7
    %v2675 = vrot.slane %v2617, 7
    %v2676 = vrot.slane %v2618, 7
    %v2677 = vrot.slane %v2619, 7
    %v2678 = vsel %vm745, %v2676, %v2677
    %v2679 = vsel %vm745, %v2675, %v2676
    %v2680 = vsel %vm745, %v2674, %v2675
    %v2681 = vsel %vm745, %v2673, %v2674
    %v2682 = vsel %vm745, %v2672, %v2673
    %v2683 = vsel %vm745, %v2671, %v2672
    %v2684 = vsel %vm745, %v2670, %v2671
    %v2685 = vsel %vm745, %v2669, %v2670
    %v2686 = vsel %vm745, %v2668, %v2669
    %v2687 = vsel %vm745, %v2667, %v2668
    %v2688 = vsel %vm745, %v2666, %v2667
    %v2689 = vsel %vm745, %v2665, %v2666
    %v2690 = vsel %vm745, %v2664, %v2665
    %v2691 = vsel %vm745, %v2663, %v2664
    %v2692 = vsel %vm745, %v2662, %v2663
    %v2693 = vsel %vm745, %v2661, %v2662
    %v2694 = vsel %vm745, %v2660, %v2661
    %v2695 = vsel %vm745, %v2659, %v2660
    %v2696 = vsel %vm745, %v2658, %v2659
    %v2697 = vsel %vm745, %v2657, %v2658
    %v2698 = vsel %vm745, %v2656, %v2657
    %v2699 = vsel %vm745, %v2655, %v2656
    %v2700 = vsel %vm745, %v2654, %v2655
    %v2701 = vsel %vm745, %v2677, %v2654
    %v2702 = vsel %vm450, %v2701, 0.0
    %v2703 = vsel %vm451, %v2700, 0.0
    %v2704 = vsel %vm452, %v2699, 0.0
    %v2705 = vsel %vm453, %v2698, 0.0
    %v2706 = vsel %vm454, %v2697, 0.0
    %v2707 = vsel %vm455, %v2696, 0.0
    %v2708 = vsel %vm456, %v2695, 0.0
    %v2709 = vsel %vm457, %v2694, 0.0
    %v2710 = vsel %vm458, %v2693, 0.0
    %v2711 = vsel %vm459, %v2692, 0.0
    %v2712 = vsel %vm460, %v2691, 0.0
    %v2713 = vsel %vm461, %v2690, 0.0
    %v2714 = vsel %vm462, %v2689, 0.0
    %v2715 = vsel %vm463, %v2688, 0.0
    %v2716 = vsel %vm464, %v2687, 0.0
    %v2717 = vsel %vm465, %v2686, 0.0
    %v2718 = vsel %vm466, %v2685, 0.0
    %v2719 = vsel %vm467, %v2684, 0.0
    %v2720 = vsel %vm468, %v2683, 0.0
    %v2721 = vsel %vm469, %v2682, 0.0
    %v2722 = vsel %vm470, %v2681, 0.0
    %v2723 = vsel %vm471, %v2680, 0.0
    %v2724 = vsel %vm472, %v2679, 0.0
    %v2725 = vsel %vm473, %v2678, 0.0
    %v2726 = vlaneseq
    %v2727 = vshrl.u32 %v2726, 7
    %v2728 = vsub.s32 0, %v2727
    %v2729 = vrot.slane %v2623, %v2728
    %v2730 = vmul.f32 %v2729, %v2702
    %v2731 = vmul.f32 %v2729, %v2703
    %v2732 = vmul.f32 %v2729, %v2704
    %v2733 = vmul.f32 %v2729, %v2705
    %v2734 = vmul.f32 %v2729, %v2706
    %v2735 = vmul.f32 %v2729, %v2707
    %v2736 = vmul.f32 %v2729, %v2708
    %v2737 = vmul.f32 %v2729, %v2709
    %v2738 = vmul.f32 %v2729, %v2710
    %v2739 = vmul.f32 %v2729, %v2711
    %v2740 = vmul.f32 %v2729, %v2712
    %v2741 = vmul.f32 %v2729, %v2713
    %v2742 = vmul.f32 %v2729, %v2714
    %v2743 = vmul.f32 %v2729, %v2715
    %v2744 = vmul.f32 %v2729, %v2716
    %v2745 = vmul.f32 %v2729, %v2717
    %v2746 = vmul.f32 %v2729, %v2718
    %v2747 = vmul.f32 %v2729, %v2719
    %v2748 = vmul.f32 %v2729, %v2720
    %v2749 = vmul.f32 %v2729, %v2721
    %v2750 = vmul.f32 %v2729, %v2722
    %v2751 = vmul.f32 %v2729, %v2723
    %v2752 = vmul.f32 %v2729, %v2724
    %v2753 = vmul.f32 %v2729, %v2725
    %v2754 = vadd.f32 %v2630, %v2730
    %v2755 = vadd.f32 %v2631, %v2731
    %v2756 = vadd.f32 %v2632, %v2732
    %v2757 = vadd.f32 %v2633, %v2733
    %v2758 = vadd.f32 %v2634, %v2734
    %v2759 = vadd.f32 %v2635, %v2735
    %v2760 = vadd.f32 %v2636, %v2736
    %v2761 = vadd.f32 %v2637, %v2737
    %v2762 = vadd.f32 %v2638, %v2738
    %v2763 = vadd.f32 %v2639, %v2739
    %v2764 = vadd.f32 %v2640, %v2740
    %v2765 = vadd.f32 %v2641, %v2741
    %v2766 = vadd.f32 %v2642, %v2742
    %v2767 = vadd.f32 %v2643, %v2743
    %v2768 = vadd.f32 %v2644, %v2744
    %v2769 = vadd.f32 %v2645, %v2745
    %v2770 = vadd.f32 %v2646, %v2746
    %v2771 = vadd.f32 %v2647, %v2747
    %v2772 = vadd.f32 %v2648, %v2748
    %v2773 = vadd.f32 %v2649, %v2749
    %v2774 = vadd.f32 %v2650, %v2750
    %v2775 = vadd.f32 %v2651, %v2751
    %v2776 = vadd.f32 %v2652, %v2752
    %v2777 = vadd.f32 %v2653, %v2753
    %v2778 = vlaneseq
    %v2779 = vshrl.u32 %v2778, 7
    %v2780 = vsub.s32 1, %v2779
    %v2781 = vrot.slane %v2623, %v2780
    %v2782 = vmul.f32 %v2781, %v2596
    %v2783 = vmul.f32 %v2781, %v2597
    %v2784 = vmul.f32 %v2781, %v2598
    %v2785 = vmul.f32 %v2781, %v2599
    %v2786 = vmul.f32 %v2781, %v2600
    %v2787 = vmul.f32 %v2781, %v2601
    %v2788 = vmul.f32 %v2781, %v2602
    %v2789 = vmul.f32 %v2781, %v2603
    %v2790 = vmul.f32 %v2781, %v2604
    %v2791 = vmul.f32 %v2781, %v2605
    %v2792 = vmul.f32 %v2781, %v2606
    %v2793 = vmul.f32 %v2781, %v2607
    %v2794 = vmul.f32 %v2781, %v2608
    %v2795 = vmul.f32 %v2781, %v2609
    %v2796 = vmul.f32 %v2781, %v2610
    %v2797 = vmul.f32 %v2781, %v2611
    %v2798 = vmul.f32 %v2781, %v2612
    %v2799 = vmul.f32 %v2781, %v2613
    %v2800 = vmul.f32 %v2781, %v2614
    %v2801 = vmul.f32 %v2781, %v2615
    %v2802 = vmul.f32 %v2781, %v2616
    %v2803 = vmul.f32 %v2781, %v2617
    %v2804 = vmul.f32 %v2781, %v2618
    %v2805 = vmul.f32 %v2781, %v2619
    %v2806 = vadd.f32 %v2754, %v2782
    %v2807 = vadd.f32 %v2755, %v2783
    %v2808 = vadd.f32 %v2756, %v2784
    %v2809 = vadd.f32 %v2757, %v2785
    %v2810 = vadd.f32 %v2758, %v2786
    %v2811 = vadd.f32 %v2759, %v2787
    %v2812 = vadd.f32 %v2760, %v2788
    %v2813 = vadd.f32 %v2761, %v2789
    %v2814 = vadd.f32 %v2762, %v2790
    %v2815 = vadd.f32 %v2763, %v2791
    %v2816 = vadd.f32 %v2764, %v2792
    %v2817 = vadd.f32 %v2765, %v2793
    %v2818 = vadd.f32 %v2766, %v2794
    %v2819 = vadd.f32 %v2767, %v2795
    %v2820 = vadd.f32 %v2768, %v2796
    %v2821 = vadd.f32 %v2769, %v2797
    %v2822 = vadd.f32 %v2770, %v2798
    %v2823 = vadd.f32 %v2771, %v2799
    %v2824 = vadd.f32 %v2772, %v2800
    %v2825 = vadd.f32 %v2773, %v2801
    %v2826 = vadd.f32 %v2774, %v2802
    %v2827 = vadd.f32 %v2775, %v2803
    %v2828 = vadd.f32 %v2776, %v2804
    %v2829 = vadd.f32 %v2777, %v2805
    %v2830 = vlaneseq
    %v2831 = vshrl.u32 %v2830, 7
    %v2832 = vsub.s32 0, %v2831
    %v2833 = vrot.slane %v2621, %v2832
    %v2834 = vmul.f32 %v2833, %v2702
    %v2835 = vmul.f32 %v2833, %v2703
    %v2836 = vmul.f32 %v2833, %v2704
    %v2837 = vmul.f32 %v2833, %v2705
    %v2838 = vmul.f32 %v2833, %v2706
    %v2839 = vmul.f32 %v2833, %v2707
    %v2840 = vmul.f32 %v2833, %v2708
    %v2841 = vmul.f32 %v2833, %v2709
    %v2842 = vmul.f32 %v2833, %v2710
    %v2843 = vmul.f32 %v2833, %v2711
    %v2844 = vmul.f32 %v2833, %v2712
    %v2845 = vmul.f32 %v2833, %v2713
    %v2846 = vmul.f32 %v2833, %v2714
    %v2847 = vmul.f32 %v2833, %v2715
    %v2848 = vmul.f32 %v2833, %v2716
    %v2849 = vmul.f32 %v2833, %v2717
    %v2850 = vmul.f32 %v2833, %v2718
    %v2851 = vmul.f32 %v2833, %v2719
    %v2852 = vmul.f32 %v2833, %v2720
    %v2853 = vmul.f32 %v2833, %v2721
    %v2854 = vmul.f32 %v2833, %v2722
    %v2855 = vmul.f32 %v2833, %v2723
    %v2856 = vmul.f32 %v2833, %v2724
    %v2857 = vmul.f32 %v2833, %v2725
    %v2858 = vlaneseq
    %v2859 = vshrl.u32 %v2858, 7
    %v2860 = vsub.s32 1, %v2859
    %v2861 = vrot.slane %v2621, %v2860
    %v2862 = vmul.f32 %v2861, %v2596
    %v2863 = vmul.f32 %v2861, %v2597
    %v2864 = vmul.f32 %v2861, %v2598
    %v2865 = vmul.f32 %v2861, %v2599
    %v2866 = vmul.f32 %v2861, %v2600
    %v2867 = vmul.f32 %v2861, %v2601
    %v2868 = vmul.f32 %v2861, %v2602
    %v2869 = vmul.f32 %v2861, %v2603
    %v2870 = vmul.f32 %v2861, %v2604
    %v2871 = vmul.f32 %v2861, %v2605
    %v2872 = vmul.f32 %v2861, %v2606
    %v2873 = vmul.f32 %v2861, %v2607
    %v2874 = vmul.f32 %v2861, %v2608
    %v2875 = vmul.f32 %v2861, %v2609
    %v2876 = vmul.f32 %v2861, %v2610
    %v2877 = vmul.f32 %v2861, %v2611
    %v2878 = vmul.f32 %v2861, %v2612
    %v2879 = vmul.f32 %v2861, %v2613
    %v2880 = vmul.f32 %v2861, %v2614
    %v2881 = vmul.f32 %v2861, %v2615
    %v2882 = vmul.f32 %v2861, %v2616
    %v2883 = vmul.f32 %v2861, %v2617
    %v2884 = vmul.f32 %v2861, %v2618
    %v2885 = vmul.f32 %v2861, %v2619
    %v2886 = vadd.f32 %v2834, %v2862
    %v2887 = vadd.f32 %v2835, %v2863
    %v2888 = vadd.f32 %v2836, %v2864
    %v2889 = vadd.f32 %v2837, %v2865
    %v2890 = vadd.f32 %v2838, %v2866
    %v2891 = vadd.f32 %v2839, %v2867
    %v2892 = vadd.f32 %v2840, %v2868
    %v2893 = vadd.f32 %v2841, %v2869
    %v2894 = vadd.f32 %v2842, %v2870
    %v2895 = vadd.f32 %v2843, %v2871
    %v2896 = vadd.f32 %v2844, %v2872
    %v2897 = vadd.f32 %v2845, %v2873
    %v2898 = vadd.f32 %v2846, %v2874
    %v2899 = vadd.f32 %v2847, %v2875
    %v2900 = vadd.f32 %v2848, %v2876
    %v2901 = vadd.f32 %v2849, %v2877
    %v2902 = vadd.f32 %v2850, %v2878
    %v2903 = vadd.f32 %v2851, %v2879
    %v2904 = vadd.f32 %v2852, %v2880
    %v2905 = vadd.f32 %v2853, %v2881
    %v2906 = vadd.f32 %v2854, %v2882
    %v2907 = vadd.f32 %v2855, %v2883
    %v2908 = vadd.f32 %v2856, %v2884
    %v2909 = vadd.f32 %v2857, %v2885
    %v2910 = vrot.slane %v2886, 6
    %v2911 = vrot.slane %v2887, 6
    %v2912 = vrot.slane %v2888, 6
    %v2913 = vrot.slane %v2889, 6
    %v2914 = vrot.slane %v2890, 6
    %v2915 = vrot.slane %v2891, 6
    %v2916 = vrot.slane %v2892, 6
    %v2917 = vrot.slane %v2893, 6
    %v2918 = vrot.slane %v2894, 6
    %v2919 = vrot.slane %v2895, 6
    %v2920 = vrot.slane %v2896, 6
    %v2921 = vrot.slane %v2897, 6
    %v2922 = vrot.slane %v2898, 6
    %v2923 = vrot.slane %v2899, 6
    %v2924 = vrot.slane %v2900, 6
    %v2925 = vrot.slane %v2901, 6
    %v2926 = vrot.slane %v2902, 6
    %v2927 = vrot.slane %v2903, 6
    %v2928 = vrot.slane %v2904, 6
    %v2929 = vrot.slane %v2905, 6
    %v2930 = vrot.slane %v2906, 6
    %v2931 = vrot.slane %v2907, 6
    %v2932 = vrot.slane %v2908, 6
    %v2933 = vrot.slane %v2909, 6
    %v2934 = vsel %vm1002, %v2932, %v2933
    %v2935 = vsel %vm1002, %v2931, %v2932
    %v2936 = vsel %vm1002, %v2930, %v2931
    %v2937 = vsel %vm1002, %v2929, %v2930
    %v2938 = vsel %vm1002, %v2928, %v2929
    %v2939 = vsel %vm1002, %v2927, %v2928
    %v2940 = vsel %vm1002, %v2926, %v2927
    %v2941 = vsel %vm1002, %v2925, %v2926
    %v2942 = vsel %vm1002, %v2924, %v2925
    %v2943 = vsel %vm1002, %v2923, %v2924
    %v2944 = vsel %vm1002, %v2922, %v2923
    %v2945 = vsel %vm1002, %v2921, %v2922
    %v2946 = vsel %vm1002, %v2920, %v2921
    %v2947 = vsel %vm1002, %v2919, %v2920
    %v2948 = vsel %vm1002, %v2918, %v2919
    %v2949 = vsel %vm1002, %v2917, %v2918
    %v2950 = vsel %vm1002, %v2916, %v2917
    %v2951 = vsel %vm1002, %v2915, %v2916
    %v2952 = vsel %vm1002, %v2914, %v2915
    %v2953 = vsel %vm1002, %v2913, %v2914
    %v2954 = vsel %vm1002, %v2912, %v2913
    %v2955 = vsel %vm1002, %v2911, %v2912
    %v2956 = vsel %vm1002, %v2910, %v2911
    %v2957 = vsel %vm1002, %v2933, %v2910
    %v2958 = vsel %vm522, %v2957, 0.0
    %v2959 = vsel %vm523, %v2956, 0.0
    %v2960 = vsel %vm524, %v2955, 0.0
    %v2961 = vsel %vm525, %v2954, 0.0
    %v2962 = vsel %vm526, %v2953, 0.0
    %v2963 = vsel %vm527, %v2952, 0.0
    %v2964 = vsel %vm528, %v2951, 0.0
    %v2965 = vsel %vm529, %v2950, 0.0
    %v2966 = vsel %vm530, %v2949, 0.0
    %v2967 = vsel %vm531, %v2948, 0.0
    %v2968 = vsel %vm532, %v2947, 0.0
    %v2969 = vsel %vm533, %v2946, 0.0
    %v2970 = vsel %vm534, %v2945, 0.0
    %v2971 = vsel %vm535, %v2944, 0.0
    %v2972 = vsel %vm536, %v2943, 0.0
    %v2973 = vsel %vm537, %v2942, 0.0
    %v2974 = vsel %vm538, %v2941, 0.0
    %v2975 = vsel %vm539, %v2940, 0.0
    %v2976 = vsel %vm540, %v2939, 0.0
    %v2977 = vsel %vm541, %v2938, 0.0
    %v2978 = vsel %vm542, %v2937, 0.0
    %v2979 = vsel %vm543, %v2936, 0.0
    %v2980 = vsel %vm544, %v2935, 0.0
    %v2981 = vsel %vm545, %v2934, 0.0
    %v2982 = vlaneseq
    %v2983 = vshrl.u32 %v2982, 7
    %v2984 = vsub.s32 2, %v2983
    %v2985 = vrot.slane %v2623, %v2984
    %v2986 = vmul.f32 %v2985, %v2958
    %v2987 = vmul.f32 %v2985, %v2959
    %v2988 = vmul.f32 %v2985, %v2960
    %v2989 = vmul.f32 %v2985, %v2961
    %v2990 = vmul.f32 %v2985, %v2962
    %v2991 = vmul.f32 %v2985, %v2963
    %v2992 = vmul.f32 %v2985, %v2964
    %v2993 = vmul.f32 %v2985, %v2965
    %v2994 = vmul.f32 %v2985, %v2966
    %v2995 = vmul.f32 %v2985, %v2967
    %v2996 = vmul.f32 %v2985, %v2968
    %v2997 = vmul.f32 %v2985, %v2969
    %v2998 = vmul.f32 %v2985, %v2970
    %v2999 = vmul.f32 %v2985, %v2971
    %v3000 = vmul.f32 %v2985, %v2972
    %v3001 = vmul.f32 %v2985, %v2973
    %v3002 = vmul.f32 %v2985, %v2974
    %v3003 = vmul.f32 %v2985, %v2975
    %v3004 = vmul.f32 %v2985, %v2976
    %v3005 = vmul.f32 %v2985, %v2977
    %v3006 = vmul.f32 %v2985, %v2978
    %v3007 = vmul.f32 %v2985, %v2979
    %v3008 = vmul.f32 %v2985, %v2980
    %v3009 = vmul.f32 %v2985, %v2981
    %v3010 = vadd.f32 %v2806, %v2986
    %v3011 = vadd.f32 %v2807, %v2987
    %v3012 = vadd.f32 %v2808, %v2988
    %v3013 = vadd.f32 %v2809, %v2989
    %v3014 = vadd.f32 %v2810, %v2990
    %v3015 = vadd.f32 %v2811, %v2991
    %v3016 = vadd.f32 %v2812, %v2992
    %v3017 = vadd.f32 %v2813, %v2993
    %v3018 = vadd.f32 %v2814, %v2994
    %v3019 = vadd.f32 %v2815, %v2995
    %v3020 = vadd.f32 %v2816, %v2996
    %v3021 = vadd.f32 %v2817, %v2997
    %v3022 = vadd.f32 %v2818, %v2998
    %v3023 = vadd.f32 %v2819, %v2999
    %v3024 = vadd.f32 %v2820, %v3000
    %v3025 = vadd.f32 %v2821, %v3001
    %v3026 = vadd.f32 %v2822, %v3002
    %v3027 = vadd.f32 %v2823, %v3003
    %v3028 = vadd.f32 %v2824, %v3004
    %v3029 = vadd.f32 %v2825, %v3005
    %v3030 = vadd.f32 %v2826, %v3006
    %v3031 = vadd.f32 %v2827, %v3007
    %v3032 = vadd.f32 %v2828, %v3008
    %v3033 = vadd.f32 %v2829, %v3009
    %v3034 = vlaneseq
    %v3035 = vshrl.u32 %v3034, 7
    %v3036 = vsub.s32 3, %v3035
    %v3037 = vrot.slane %v2623, %v3036
    %v3038 = vmul.f32 %v3037, %v2886
    %v3039 = vmul.f32 %v3037, %v2887
    %v3040 = vmul.f32 %v3037, %v2888
    %v3041 = vmul.f32 %v3037, %v2889
    %v3042 = vmul.f32 %v3037, %v2890
    %v3043 = vmul.f32 %v3037, %v2891
    %v3044 = vmul.f32 %v3037, %v2892
    %v3045 = vmul.f32 %v3037, %v2893
    %v3046 = vmul.f32 %v3037, %v2894
    %v3047 = vmul.f32 %v3037, %v2895
    %v3048 = vmul.f32 %v3037, %v2896
    %v3049 = vmul.f32 %v3037, %v2897
    %v3050 = vmul.f32 %v3037, %v2898
    %v3051 = vmul.f32 %v3037, %v2899
    %v3052 = vmul.f32 %v3037, %v2900
    %v3053 = vmul.f32 %v3037, %v2901
    %v3054 = vmul.f32 %v3037, %v2902
    %v3055 = vmul.f32 %v3037, %v2903
    %v3056 = vmul.f32 %v3037, %v2904
    %v3057 = vmul.f32 %v3037, %v2905
    %v3058 = vmul.f32 %v3037, %v2906
    %v3059 = vmul.f32 %v3037, %v2907
    %v3060 = vmul.f32 %v3037, %v2908
    %v3061 = vmul.f32 %v3037, %v2909
    %v3062 = vadd.f32 %v3010, %v3038
    %v3063 = vadd.f32 %v3011, %v3039
    %v3064 = vadd.f32 %v3012, %v3040
    %v3065 = vadd.f32 %v3013, %v3041
    %v3066 = vadd.f32 %v3014, %v3042
    %v3067 = vadd.f32 %v3015, %v3043
    %v3068 = vadd.f32 %v3016, %v3044
    %v3069 = vadd.f32 %v3017, %v3045
    %v3070 = vadd.f32 %v3018, %v3046
    %v3071 = vadd.f32 %v3019, %v3047
    %v3072 = vadd.f32 %v3020, %v3048
    %v3073 = vadd.f32 %v3021, %v3049
    %v3074 = vadd.f32 %v3022, %v3050
    %v3075 = vadd.f32 %v3023, %v3051
    %v3076 = vadd.f32 %v3024, %v3052
    %v3077 = vadd.f32 %v3025, %v3053
    %v3078 = vadd.f32 %v3026, %v3054
    %v3079 = vadd.f32 %v3027, %v3055
    %v3080 = vadd.f32 %v3028, %v3056
    %v3081 = vadd.f32 %v3029, %v3057
    %v3082 = vadd.f32 %v3030, %v3058
    %v3083 = vadd.f32 %v3031, %v3059
    %v3084 = vadd.f32 %v3032, %v3060
    %v3085 = vadd.f32 %v3033, %v3061
    %v3086 = vmul.f32 %v2833, %v2958
    %v3087 = vmul.f32 %v2833, %v2959
    %v3088 = vmul.f32 %v2833, %v2960
    %v3089 = vmul.f32 %v2833, %v2961
    %v3090 = vmul.f32 %v2833, %v2962
    %v3091 = vmul.f32 %v2833, %v2963
    %v3092 = vmul.f32 %v2833, %v2964
    %v3093 = vmul.f32 %v2833, %v2965
    %v3094 = vmul.f32 %v2833, %v2966
    %v3095 = vmul.f32 %v2833, %v2967
    %v3096 = vmul.f32 %v2833, %v2968
    %v3097 = vmul.f32 %v2833, %v2969
    %v3098 = vmul.f32 %v2833, %v2970
    %v3099 = vmul.f32 %v2833, %v2971
    %v3100 = vmul.f32 %v2833, %v2972
    %v3101 = vmul.f32 %v2833, %v2973
    %v3102 = vmul.f32 %v2833, %v2974
    %v3103 = vmul.f32 %v2833, %v2975
    %v3104 = vmul.f32 %v2833, %v2976
    %v3105 = vmul.f32 %v2833, %v2977
    %v3106 = vmul.f32 %v2833, %v2978
    %v3107 = vmul.f32 %v2833, %v2979
    %v3108 = vmul.f32 %v2833, %v2980
    %v3109 = vmul.f32 %v2833, %v2981
    %v3110 = vmul.f32 %v2861, %v2886
    %v3111 = vmul.f32 %v2861, %v2887
    %v3112 = vmul.f32 %v2861, %v2888
    %v3113 = vmul.f32 %v2861, %v2889
    %v3114 = vmul.f32 %v2861, %v2890
    %v3115 = vmul.f32 %v2861, %v2891
    %v3116 = vmul.f32 %v2861, %v2892
    %v3117 = vmul.f32 %v2861, %v2893
    %v3118 = vmul.f32 %v2861, %v2894
    %v3119 = vmul.f32 %v2861, %v2895
    %v3120 = vmul.f32 %v2861, %v2896
    %v3121 = vmul.f32 %v2861, %v2897
    %v3122 = vmul.f32 %v2861, %v2898
    %v3123 = vmul.f32 %v2861, %v2899
    %v3124 = vmul.f32 %v2861, %v2900
    %v3125 = vmul.f32 %v2861, %v2901
    %v3126 = vmul.f32 %v2861, %v2902
    %v3127 = vmul.f32 %v2861, %v2903
    %v3128 = vmul.f32 %v2861, %v2904
    %v3129 = vmul.f32 %v2861, %v2905
    %v3130 = vmul.f32 %v2861, %v2906
    %v3131 = vmul.f32 %v2861, %v2907
    %v3132 = vmul.f32 %v2861, %v2908
    %v3133 = vmul.f32 %v2861, %v2909
    %v3134 = vadd.f32 %v3086, %v3110
    %v3135 = vadd.f32 %v3087, %v3111
    %v3136 = vadd.f32 %v3088, %v3112
    %v3137 = vadd.f32 %v3089, %v3113
    %v3138 = vadd.f32 %v3090, %v3114
    %v3139 = vadd.f32 %v3091, %v3115
    %v3140 = vadd.f32 %v3092, %v3116
    %v3141 = vadd.f32 %v3093, %v3117
    %v3142 = vadd.f32 %v3094, %v3118
    %v3143 = vadd.f32 %v3095, %v3119
    %v3144 = vadd.f32 %v3096, %v3120
    %v3145 = vadd.f32 %v3097, %v3121
    %v3146 = vadd.f32 %v3098, %v3122
    %v3147 = vadd.f32 %v3099, %v3123
    %v3148 = vadd.f32 %v3100, %v3124
    %v3149 = vadd.f32 %v3101, %v3125
    %v3150 = vadd.f32 %v3102, %v3126
    %v3151 = vadd.f32 %v3103, %v3127
    %v3152 = vadd.f32 %v3104, %v3128
    %v3153 = vadd.f32 %v3105, %v3129
    %v3154 = vadd.f32 %v3106, %v3130
    %v3155 = vadd.f32 %v3107, %v3131
    %v3156 = vadd.f32 %v3108, %v3132
    %v3157 = vadd.f32 %v3109, %v3133
    %v3158 = vrot.slane %v3134, 4
    %v3159 = vrot.slane %v3135, 4
    %v3160 = vrot.slane %v3136, 4
    %v3161 = vrot.slane %v3137, 4
    %v3162 = vrot.slane %v3138, 4
    %v3163 = vrot.slane %v3139, 4
    %v3164 = vrot.slane %v3140, 4
    %v3165 = vrot.slane %v3141, 4
    %v3166 = vrot.slane %v3142, 4
    %v3167 = vrot.slane %v3143, 4
    %v3168 = vrot.slane %v3144, 4
    %v3169 = vrot.slane %v3145, 4
    %v3170 = vrot.slane %v3146, 4
    %v3171 = vrot.slane %v3147, 4
    %v3172 = vrot.slane %v3148, 4
    %v3173 = vrot.slane %v3149, 4
    %v3174 = vrot.slane %v3150, 4
    %v3175 = vrot.slane %v3151, 4
    %v3176 = vrot.slane %v3152, 4
    %v3177 = vrot.slane %v3153, 4
    %v3178 = vrot.slane %v3154, 4
    %v3179 = vrot.slane %v3155, 4
    %v3180 = vrot.slane %v3156, 4
    %v3181 = vrot.slane %v3157, 4
    %v3182 = vsel %vm1251, %v3180, %v3181
    %v3183 = vsel %vm1251, %v3179, %v3180
    %v3184 = vsel %vm1251, %v3178, %v3179
    %v3185 = vsel %vm1251, %v3177, %v3178
    %v3186 = vsel %vm1251, %v3176, %v3177
    %v3187 = vsel %vm1251, %v3175, %v3176
    %v3188 = vsel %vm1251, %v3174, %v3175
    %v3189 = vsel %vm1251, %v3173, %v3174
    %v3190 = vsel %vm1251, %v3172, %v3173
    %v3191 = vsel %vm1251, %v3171, %v3172
    %v3192 = vsel %vm1251, %v3170, %v3171
    %v3193 = vsel %vm1251, %v3169, %v3170
    %v3194 = vsel %vm1251, %v3168, %v3169
    %v3195 = vsel %vm1251, %v3167, %v3168
    %v3196 = vsel %vm1251, %v3166, %v3167
    %v3197 = vsel %vm1251, %v3165, %v3166
    %v3198 = vsel %vm1251, %v3164, %v3165
    %v3199 = vsel %vm1251, %v3163, %v3164
    %v3200 = vsel %vm1251, %v3162, %v3163
    %v3201 = vsel %vm1251, %v3161, %v3162
    %v3202 = vsel %vm1251, %v3160, %v3161
    %v3203 = vsel %vm1251, %v3159, %v3160
    %v3204 = vsel %vm1251, %v3158, %v3159
    %v3205 = vsel %vm1251, %v3181, %v3158
    %v3206 = vsel %vm594, %v3205, 0.0
    %v3207 = vsel %vm595, %v3204, 0.0
    %v3208 = vsel %vm596, %v3203, 0.0
    %v3209 = vsel %vm597, %v3202, 0.0
    %v3210 = vsel %vm598, %v3201, 0.0
    %v3211 = vsel %vm599, %v3200, 0.0
    %v3212 = vsel %vm600, %v3199, 0.0
    %v3213 = vsel %vm601, %v3198, 0.0
    %v3214 = vsel %vm602, %v3197, 0.0
    %v3215 = vsel %vm603, %v3196, 0.0
    %v3216 = vsel %vm604, %v3195, 0.0
    %v3217 = vsel %vm605, %v3194, 0.0
    %v3218 = vsel %vm606, %v3193, 0.0
    %v3219 = vsel %vm607, %v3192, 0.0
    %v3220 = vsel %vm608, %v3191, 0.0
    %v3221 = vsel %vm609, %v3190, 0.0
    %v3222 = vsel %vm610, %v3189, 0.0
    %v3223 = vsel %vm611, %v3188, 0.0
    %v3224 = vsel %vm612, %v3187, 0.0
    %v3225 = vsel %vm613, %v3186, 0.0
    %v3226 = vsel %vm614, %v3185, 0.0
    %v3227 = vsel %vm615, %v3184, 0.0
    %v3228 = vsel %vm616, %v3183, 0.0
    %v3229 = vsel %vm617, %v3182, 0.0
    %v3230 = vlaneseq
    %v3231 = vshrl.u32 %v3230, 7
    %v3232 = vsub.s32 4, %v3231
    %v3233 = vrot.slane %v2623, %v3232
    %v3234 = vmul.f32 %v3233, %v3206
    %v3235 = vmul.f32 %v3233, %v3207
    %v3236 = vmul.f32 %v3233, %v3208
    %v3237 = vmul.f32 %v3233, %v3209
    %v3238 = vmul.f32 %v3233, %v3210
    %v3239 = vmul.f32 %v3233, %v3211
    %v3240 = vmul.f32 %v3233, %v3212
    %v3241 = vmul.f32 %v3233, %v3213
    %v3242 = vmul.f32 %v3233, %v3214
    %v3243 = vmul.f32 %v3233, %v3215
    %v3244 = vmul.f32 %v3233, %v3216
    %v3245 = vmul.f32 %v3233, %v3217
    %v3246 = vmul.f32 %v3233, %v3218
    %v3247 = vmul.f32 %v3233, %v3219
    %v3248 = vmul.f32 %v3233, %v3220
    %v3249 = vmul.f32 %v3233, %v3221
    %v3250 = vmul.f32 %v3233, %v3222
    %v3251 = vmul.f32 %v3233, %v3223
    %v3252 = vmul.f32 %v3233, %v3224
    %v3253 = vmul.f32 %v3233, %v3225
    %v3254 = vmul.f32 %v3233, %v3226
    %v3255 = vmul.f32 %v3233, %v3227
    %v3256 = vmul.f32 %v3233, %v3228
    %v3257 = vmul.f32 %v3233, %v3229
    %v3258 = vadd.f32 %v3062, %v3234
    %v3259 = vadd.f32 %v3063, %v3235
    %v3260 = vadd.f32 %v3064, %v3236
    %v3261 = vadd.f32 %v3065, %v3237
    %v3262 = vadd.f32 %v3066, %v3238
    %v3263 = vadd.f32 %v3067, %v3239
    %v3264 = vadd.f32 %v3068, %v3240
    %v3265 = vadd.f32 %v3069, %v3241
    %v3266 = vadd.f32 %v3070, %v3242
    %v3267 = vadd.f32 %v3071, %v3243
    %v3268 = vadd.f32 %v3072, %v3244
    %v3269 = vadd.f32 %v3073, %v3245
    %v3270 = vadd.f32 %v3074, %v3246
    %v3271 = vadd.f32 %v3075, %v3247
    %v3272 = vadd.f32 %v3076, %v3248
    %v3273 = vadd.f32 %v3077, %v3249
    %v3274 = vadd.f32 %v3078, %v3250
    %v3275 = vadd.f32 %v3079, %v3251
    %v3276 = vadd.f32 %v3080, %v3252
    %v3277 = vadd.f32 %v3081, %v3253
    %v3278 = vadd.f32 %v3082, %v3254
    %v3279 = vadd.f32 %v3083, %v3255
    %v3280 = vadd.f32 %v3084, %v3256
    %v3281 = vadd.f32 %v3085, %v3257
    %v3282 = vlaneseq
    %v3283 = vshrl.u32 %v3282, 7
    %v3284 = vsub.s32 5, %v3283
    %v3285 = vrot.slane %v2623, %v3284
    %v3286 = vmul.f32 %v3285, %v3134
    %v3287 = vmul.f32 %v3285, %v3135
    %v3288 = vmul.f32 %v3285, %v3136
    %v3289 = vmul.f32 %v3285, %v3137
    %v3290 = vmul.f32 %v3285, %v3138
    %v3291 = vmul.f32 %v3285, %v3139
    %v3292 = vmul.f32 %v3285, %v3140
    %v3293 = vmul.f32 %v3285, %v3141
    %v3294 = vmul.f32 %v3285, %v3142
    %v3295 = vmul.f32 %v3285, %v3143
    %v3296 = vmul.f32 %v3285, %v3144
    %v3297 = vmul.f32 %v3285, %v3145
    %v3298 = vmul.f32 %v3285, %v3146
    %v3299 = vmul.f32 %v3285, %v3147
    %v3300 = vmul.f32 %v3285, %v3148
    %v3301 = vmul.f32 %v3285, %v3149
    %v3302 = vmul.f32 %v3285, %v3150
    %v3303 = vmul.f32 %v3285, %v3151
    %v3304 = vmul.f32 %v3285, %v3152
    %v3305 = vmul.f32 %v3285, %v3153
    %v3306 = vmul.f32 %v3285, %v3154
    %v3307 = vmul.f32 %v3285, %v3155
    %v3308 = vmul.f32 %v3285, %v3156
    %v3309 = vmul.f32 %v3285, %v3157
    %v3310 = vadd.f32 %v3258, %v3286
    %v3311 = vadd.f32 %v3259, %v3287
    %v3312 = vadd.f32 %v3260, %v3288
    %v3313 = vadd.f32 %v3261, %v3289
    %v3314 = vadd.f32 %v3262, %v3290
    %v3315 = vadd.f32 %v3263, %v3291
    %v3316 = vadd.f32 %v3264, %v3292
    %v3317 = vadd.f32 %v3265, %v3293
    %v3318 = vadd.f32 %v3266, %v3294
    %v3319 = vadd.f32 %v3267, %v3295
    %v3320 = vadd.f32 %v3268, %v3296
    %v3321 = vadd.f32 %v3269, %v3297
    %v3322 = vadd.f32 %v3270, %v3298
    %v3323 = vadd.f32 %v3271, %v3299
    %v3324 = vadd.f32 %v3272, %v3300
    %v3325 = vadd.f32 %v3273, %v3301
    %v3326 = vadd.f32 %v3274, %v3302
    %v3327 = vadd.f32 %v3275, %v3303
    %v3328 = vadd.f32 %v3276, %v3304
    %v3329 = vadd.f32 %v3277, %v3305
    %v3330 = vadd.f32 %v3278, %v3306
    %v3331 = vadd.f32 %v3279, %v3307
    %v3332 = vadd.f32 %v3280, %v3308
    %v3333 = vadd.f32 %v3281, %v3309
    %v3334 = vmul.f32 %v2833, %v3206
    %v3335 = vmul.f32 %v2833, %v3207
    %v3336 = vmul.f32 %v2833, %v3208
    %v3337 = vmul.f32 %v2833, %v3209
    %v3338 = vmul.f32 %v2833, %v3210
    %v3339 = vmul.f32 %v2833, %v3211
    %v3340 = vmul.f32 %v2833, %v3212
    %v3341 = vmul.f32 %v2833, %v3213
    %v3342 = vmul.f32 %v2833, %v3214
    %v3343 = vmul.f32 %v2833, %v3215
    %v3344 = vmul.f32 %v2833, %v3216
    %v3345 = vmul.f32 %v2833, %v3217
    %v3346 = vmul.f32 %v2833, %v3218
    %v3347 = vmul.f32 %v2833, %v3219
    %v3348 = vmul.f32 %v2833, %v3220
    %v3349 = vmul.f32 %v2833, %v3221
    %v3350 = vmul.f32 %v2833, %v3222
    %v3351 = vmul.f32 %v2833, %v3223
    %v3352 = vmul.f32 %v2833, %v3224
    %v3353 = vmul.f32 %v2833, %v3225
    %v3354 = vmul.f32 %v2833, %v3226
    %v3355 = vmul.f32 %v2833, %v3227
    %v3356 = vmul.f32 %v2833, %v3228
    %v3357 = vmul.f32 %v2833, %v3229
    %v3358 = vmul.f32 %v2861, %v3134
    %v3359 = vmul.f32 %v2861, %v3135
    %v3360 = vmul.f32 %v2861, %v3136
    %v3361 = vmul.f32 %v2861, %v3137
    %v3362 = vmul.f32 %v2861, %v3138
    %v3363 = vmul.f32 %v2861, %v3139
    %v3364 = vmul.f32 %v2861, %v3140
    %v3365 = vmul.f32 %v2861, %v3141
    %v3366 = vmul.f32 %v2861, %v3142
    %v3367 = vmul.f32 %v2861, %v3143
    %v3368 = vmul.f32 %v2861, %v3144
    %v3369 = vmul.f32 %v2861, %v3145
    %v3370 = vmul.f32 %v2861, %v3146
    %v3371 = vmul.f32 %v2861, %v3147
    %v3372 = vmul.f32 %v2861, %v3148
    %v3373 = vmul.f32 %v2861, %v3149
    %v3374 = vmul.f32 %v2861, %v3150
    %v3375 = vmul.f32 %v2861, %v3151
    %v3376 = vmul.f32 %v2861, %v3152
    %v3377 = vmul.f32 %v2861, %v3153
    %v3378 = vmul.f32 %v2861, %v3154
    %v3379 = vmul.f32 %v2861, %v3155
    %v3380 = vmul.f32 %v2861, %v3156
    %v3381 = vmul.f32 %v2861, %v3157
    %v3382 = vadd.f32 %v3334, %v3358
    %v3383 = vadd.f32 %v3335, %v3359
    %v3384 = vadd.f32 %v3336, %v3360
    %v3385 = vadd.f32 %v3337, %v3361
    %v3386 = vadd.f32 %v3338, %v3362
    %v3387 = vadd.f32 %v3339, %v3363
    %v3388 = vadd.f32 %v3340, %v3364
    %v3389 = vadd.f32 %v3341, %v3365
    %v3390 = vadd.f32 %v3342, %v3366
    %v3391 = vadd.f32 %v3343, %v3367
    %v3392 = vadd.f32 %v3344, %v3368
    %v3393 = vadd.f32 %v3345, %v3369
    %v3394 = vadd.f32 %v3346, %v3370
    %v3395 = vadd.f32 %v3347, %v3371
    %v3396 = vadd.f32 %v3348, %v3372
    %v3397 = vadd.f32 %v3349, %v3373
    %v3398 = vadd.f32 %v3350, %v3374
    %v3399 = vadd.f32 %v3351, %v3375
    %v3400 = vadd.f32 %v3352, %v3376
    %v3401 = vadd.f32 %v3353, %v3377
    %v3402 = vadd.f32 %v3354, %v3378
    %v3403 = vadd.f32 %v3355, %v3379
    %v3404 = vadd.f32 %v3356, %v3380
    %v3405 = vadd.f32 %v3357, %v3381
    %v3406 = vsel %vm666, %v3405, 0.0
    %v3407 = vsel %vm667, %v3382, 0.0
    %v3408 = vsel %vm668, %v3383, 0.0
    %v3409 = vsel %vm669, %v3384, 0.0
    %v3410 = vsel %vm670, %v3385, 0.0
    %v3411 = vsel %vm671, %v3386, 0.0
    %v3412 = vsel %vm672, %v3387, 0.0
    %v3413 = vsel %vm673, %v3388, 0.0
    %v3414 = vsel %vm674, %v3389, 0.0
    %v3415 = vsel %vm675, %v3390, 0.0
    %v3416 = vsel %vm676, %v3391, 0.0
    %v3417 = vsel %vm677, %v3392, 0.0
    %v3418 = vsel %vm678, %v3393, 0.0
    %v3419 = vsel %vm679, %v3394, 0.0
    %v3420 = vsel %vm680, %v3395, 0.0
    %v3421 = vsel %vm681, %v3396, 0.0
    %v3422 = vsel %vm682, %v3397, 0.0
    %v3423 = vsel %vm683, %v3398, 0.0
    %v3424 = vsel %vm684, %v3399, 0.0
    %v3425 = vsel %vm685, %v3400, 0.0
    %v3426 = vsel %vm686, %v3401, 0.0
    %v3427 = vsel %vm687, %v3402, 0.0
    %v3428 = vsel %vm688, %v3403, 0.0
    %v3429 = vsel %vm689, %v3404, 0.0
    %v3430 = vlaneseq
    %v3431 = vshrl.u32 %v3430, 7
    %v3432 = vsub.s32 6, %v3431
    %v3433 = vrot.slane %v2623, %v3432
    %v3434 = vmul.f32 %v3433, %v3406
    %v3435 = vmul.f32 %v3433, %v3407
    %v3436 = vmul.f32 %v3433, %v3408
    %v3437 = vmul.f32 %v3433, %v3409
    %v3438 = vmul.f32 %v3433, %v3410
    %v3439 = vmul.f32 %v3433, %v3411
    %v3440 = vmul.f32 %v3433, %v3412
    %v3441 = vmul.f32 %v3433, %v3413
    %v3442 = vmul.f32 %v3433, %v3414
    %v3443 = vmul.f32 %v3433, %v3415
    %v3444 = vmul.f32 %v3433, %v3416
    %v3445 = vmul.f32 %v3433, %v3417
    %v3446 = vmul.f32 %v3433, %v3418
    %v3447 = vmul.f32 %v3433, %v3419
    %v3448 = vmul.f32 %v3433, %v3420
    %v3449 = vmul.f32 %v3433, %v3421
    %v3450 = vmul.f32 %v3433, %v3422
    %v3451 = vmul.f32 %v3433, %v3423
    %v3452 = vmul.f32 %v3433, %v3424
    %v3453 = vmul.f32 %v3433, %v3425
    %v3454 = vmul.f32 %v3433, %v3426
    %v3455 = vmul.f32 %v3433, %v3427
    %v3456 = vmul.f32 %v3433, %v3428
    %v3457 = vmul.f32 %v3433, %v3429
    %v3458 = vadd.f32 %v3310, %v3434
    %v3459 = vadd.f32 %v3311, %v3435
    %v3460 = vadd.f32 %v3312, %v3436
    %v3461 = vadd.f32 %v3313, %v3437
    %v3462 = vadd.f32 %v3314, %v3438
    %v3463 = vadd.f32 %v3315, %v3439
    %v3464 = vadd.f32 %v3316, %v3440
    %v3465 = vadd.f32 %v3317, %v3441
    %v3466 = vadd.f32 %v3318, %v3442
    %v3467 = vadd.f32 %v3319, %v3443
    %v3468 = vadd.f32 %v3320, %v3444
    %v3469 = vadd.f32 %v3321, %v3445
    %v3470 = vadd.f32 %v3322, %v3446
    %v3471 = vadd.f32 %v3323, %v3447
    %v3472 = vadd.f32 %v3324, %v3448
    %v3473 = vadd.f32 %v3325, %v3449
    %v3474 = vadd.f32 %v3326, %v3450
    %v3475 = vadd.f32 %v3327, %v3451
    %v3476 = vadd.f32 %v3328, %v3452
    %v3477 = vadd.f32 %v3329, %v3453
    %v3478 = vadd.f32 %v3330, %v3454
    %v3479 = vadd.f32 %v3331, %v3455
    %v3480 = vadd.f32 %v3332, %v3456
    %v3481 = vadd.f32 %v3333, %v3457
    %v3482 = vlaneseq
    %v3483 = vshrl.u32 %v3482, 7
    %v3484 = vsub.s32 7, %v3483
    %v3485 = vrot.slane %v2623, %v3484
    %v3486 = vmul.f32 %v3485, %v3382
    %v3487 = vmul.f32 %v3485, %v3383
    %v3488 = vmul.f32 %v3485, %v3384
    %v3489 = vmul.f32 %v3485, %v3385
    %v3490 = vmul.f32 %v3485, %v3386
    %v3491 = vmul.f32 %v3485, %v3387
    %v3492 = vmul.f32 %v3485, %v3388
    %v3493 = vmul.f32 %v3485, %v3389
    %v3494 = vmul.f32 %v3485, %v3390
    %v3495 = vmul.f32 %v3485, %v3391
    %v3496 = vmul.f32 %v3485, %v3392
    %v3497 = vmul.f32 %v3485, %v3393
    %v3498 = vmul.f32 %v3485, %v3394
    %v3499 = vmul.f32 %v3485, %v3395
    %v3500 = vmul.f32 %v3485, %v3396
    %v3501 = vmul.f32 %v3485, %v3397
    %v3502 = vmul.f32 %v3485, %v3398
    %v3503 = vmul.f32 %v3485, %v3399
    %v3504 = vmul.f32 %v3485, %v3400
    %v3505 = vmul.f32 %v3485, %v3401
    %v3506 = vmul.f32 %v3485, %v3402
    %v3507 = vmul.f32 %v3485, %v3403
    %v3508 = vmul.f32 %v3485, %v3404
    %v3509 = vmul.f32 %v3485, %v3405
    %v3510 = vadd.f32 %v3458, %v3486
    %v3511 = vadd.f32 %v3459, %v3487
    %v3512 = vadd.f32 %v3460, %v3488
    %v3513 = vadd.f32 %v3461, %v3489
    %v3514 = vadd.f32 %v3462, %v3490
    %v3515 = vadd.f32 %v3463, %v3491
    %v3516 = vadd.f32 %v3464, %v3492
    %v3517 = vadd.f32 %v3465, %v3493
    %v3518 = vadd.f32 %v3466, %v3494
    %v3519 = vadd.f32 %v3467, %v3495
    %v3520 = vadd.f32 %v3468, %v3496
    %v3521 = vadd.f32 %v3469, %v3497
    %v3522 = vadd.f32 %v3470, %v3498
    %v3523 = vadd.f32 %v3471, %v3499
    %v3524 = vadd.f32 %v3472, %v3500
    %v3525 = vadd.f32 %v3473, %v3501
    %v3526 = vadd.f32 %v3474, %v3502
    %v3527 = vadd.f32 %v3475, %v3503
    %v3528 = vadd.f32 %v3476, %v3504
    %v3529 = vadd.f32 %v3477, %v3505
    %v3530 = vadd.f32 %v3478, %v3506
    %v3531 = vadd.f32 %v3479, %v3507
    %v3532 = vadd.f32 %v3480, %v3508
    %v3533 = vadd.f32 %v3481, %v3509
    %v3534 = vmul.f32 %v2833, %v3406
    %v3535 = vmul.f32 %v2833, %v3407
    %v3536 = vmul.f32 %v2833, %v3408
    %v3537 = vmul.f32 %v2833, %v3409
    %v3538 = vmul.f32 %v2833, %v3410
    %v3539 = vmul.f32 %v2833, %v3411
    %v3540 = vmul.f32 %v2833, %v3412
    %v3541 = vmul.f32 %v2833, %v3413
    %v3542 = vmul.f32 %v2833, %v3414
    %v3543 = vmul.f32 %v2833, %v3415
    %v3544 = vmul.f32 %v2833, %v3416
    %v3545 = vmul.f32 %v2833, %v3417
    %v3546 = vmul.f32 %v2833, %v3418
    %v3547 = vmul.f32 %v2833, %v3419
    %v3548 = vmul.f32 %v2833, %v3420
    %v3549 = vmul.f32 %v2833, %v3421
    %v3550 = vmul.f32 %v2833, %v3422
    %v3551 = vmul.f32 %v2833, %v3423
    %v3552 = vmul.f32 %v2833, %v3424
    %v3553 = vmul.f32 %v2833, %v3425
    %v3554 = vmul.f32 %v2833, %v3426
    %v3555 = vmul.f32 %v2833, %v3427
    %v3556 = vmul.f32 %v2833, %v3428
    %v3557 = vmul.f32 %v2833, %v3429
    %v3558 = vmul.f32 %v2861, %v3382
    %v3559 = vmul.f32 %v2861, %v3383
    %v3560 = vmul.f32 %v2861, %v3384
    %v3561 = vmul.f32 %v2861, %v3385
    %v3562 = vmul.f32 %v2861, %v3386
    %v3563 = vmul.f32 %v2861, %v3387
    %v3564 = vmul.f32 %v2861, %v3388
    %v3565 = vmul.f32 %v2861, %v3389
    %v3566 = vmul.f32 %v2861, %v3390
    %v3567 = vmul.f32 %v2861, %v3391
    %v3568 = vmul.f32 %v2861, %v3392
    %v3569 = vmul.f32 %v2861, %v3393
    %v3570 = vmul.f32 %v2861, %v3394
    %v3571 = vmul.f32 %v2861, %v3395
    %v3572 = vmul.f32 %v2861, %v3396
    %v3573 = vmul.f32 %v2861, %v3397
    %v3574 = vmul.f32 %v2861, %v3398
    %v3575 = vmul.f32 %v2861, %v3399
    %v3576 = vmul.f32 %v2861, %v3400
    %v3577 = vmul.f32 %v2861, %v3401
    %v3578 = vmul.f32 %v2861, %v3402
    %v3579 = vmul.f32 %v2861, %v3403
    %v3580 = vmul.f32 %v2861, %v3404
    %v3581 = vmul.f32 %v2861, %v3405
    %v3582 = vadd.f32 %v3534, %v3558
    %v3583 = vadd.f32 %v3535, %v3559
    %v3584 = vadd.f32 %v3536, %v3560
    %v3585 = vadd.f32 %v3537, %v3561
    %v3586 = vadd.f32 %v3538, %v3562
    %v3587 = vadd.f32 %v3539, %v3563
    %v3588 = vadd.f32 %v3540, %v3564
    %v3589 = vadd.f32 %v3541, %v3565
    %v3590 = vadd.f32 %v3542, %v3566
    %v3591 = vadd.f32 %v3543, %v3567
    %v3592 = vadd.f32 %v3544, %v3568
    %v3593 = vadd.f32 %v3545, %v3569
    %v3594 = vadd.f32 %v3546, %v3570
    %v3595 = vadd.f32 %v3547, %v3571
    %v3596 = vadd.f32 %v3548, %v3572
    %v3597 = vadd.f32 %v3549, %v3573
    %v3598 = vadd.f32 %v3550, %v3574
    %v3599 = vadd.f32 %v3551, %v3575
    %v3600 = vadd.f32 %v3552, %v3576
    %v3601 = vadd.f32 %v3553, %v3577
    %v3602 = vadd.f32 %v3554, %v3578
    %v3603 = vadd.f32 %v3555, %v3579
    %v3604 = vadd.f32 %v3556, %v3580
    %v3605 = vadd.f32 %v3557, %v3581
    %v3606 = vlaneseq
    %v3607 = vshrl.u32 %v3606, 7
    %v3608 = vsub.s32 1, %v3607
    %v3609 = vrot.slane %v2625, %v3608
    %v3610 = vmul.f32 %v3609, %v3582
    %v3611 = vmul.f32 %v3609, %v3583
    %v3612 = vmul.f32 %v3609, %v3584
    %v3613 = vmul.f32 %v3609, %v3585
    %v3614 = vmul.f32 %v3609, %v3586
    %v3615 = vmul.f32 %v3609, %v3587
    %v3616 = vmul.f32 %v3609, %v3588
    %v3617 = vmul.f32 %v3609, %v3589
    %v3618 = vmul.f32 %v3609, %v3590
    %v3619 = vmul.f32 %v3609, %v3591
    %v3620 = vmul.f32 %v3609, %v3592
    %v3621 = vmul.f32 %v3609, %v3593
    %v3622 = vmul.f32 %v3609, %v3594
    %v3623 = vmul.f32 %v3609, %v3595
    %v3624 = vmul.f32 %v3609, %v3596
    %v3625 = vmul.f32 %v3609, %v3597
    %v3626 = vmul.f32 %v3609, %v3598
    %v3627 = vmul.f32 %v3609, %v3599
    %v3628 = vmul.f32 %v3609, %v3600
    %v3629 = vmul.f32 %v3609, %v3601
    %v3630 = vmul.f32 %v3609, %v3602
    %v3631 = vmul.f32 %v3609, %v3603
    %v3632 = vmul.f32 %v3609, %v3604
    %v3633 = vmul.f32 %v3609, %v3605
    %v3634 = vadd.f32 %v3510, %v3610
    %v3635 = vadd.f32 %v3511, %v3611
    %v3636 = vadd.f32 %v3512, %v3612
    %v3637 = vadd.f32 %v3513, %v3613
    %v3638 = vadd.f32 %v3514, %v3614
    %v3639 = vadd.f32 %v3515, %v3615
    %v3640 = vadd.f32 %v3516, %v3616
    %v3641 = vadd.f32 %v3517, %v3617
    %v3642 = vadd.f32 %v3518, %v3618
    %v3643 = vadd.f32 %v3519, %v3619
    %v3644 = vadd.f32 %v3520, %v3620
    %v3645 = vadd.f32 %v3521, %v3621
    %v3646 = vadd.f32 %v3522, %v3622
    %v3647 = vadd.f32 %v3523, %v3623
    %v3648 = vadd.f32 %v3524, %v3624
    %v3649 = vadd.f32 %v3525, %v3625
    %v3650 = vadd.f32 %v3526, %v3626
    %v3651 = vadd.f32 %v3527, %v3627
    %v3652 = vadd.f32 %v3528, %v3628
    %v3653 = vadd.f32 %v3529, %v3629
    %v3654 = vadd.f32 %v3530, %v3630
    %v3655 = vadd.f32 %v3531, %v3631
    %v3656 = vadd.f32 %v3532, %v3632
    %v3657 = vadd.f32 %v3533, %v3633
    %v3658 = vmul.f32 %v3634, 0.5
    %v3659 = vmul.f32 %v3635, 0.5
    %v3660 = vmul.f32 %v3636, 0.5
    %v3661 = vmul.f32 %v3637, 0.5
    %v3662 = vmul.f32 %v3638, 0.5
    %v3663 = vmul.f32 %v3639, 0.5
    %v3664 = vmul.f32 %v3640, 0.5
    %v3665 = vmul.f32 %v3641, 0.5
    %v3666 = vmul.f32 %v3642, 0.5
    %v3667 = vmul.f32 %v3643, 0.5
    %v3668 = vmul.f32 %v3644, 0.5
    %v3669 = vmul.f32 %v3645, 0.5
    %v3670 = vmul.f32 %v3646, 0.5
    %v3671 = vmul.f32 %v3647, 0.5
    %v3672 = vmul.f32 %v3648, 0.5
    %v3673 = vmul.f32 %v3649, 0.5
    %v3674 = vmul.f32 %v3650, 0.5
    %v3675 = vmul.f32 %v3651, 0.5
    %v3676 = vmul.f32 %v3652, 0.5
    %v3677 = vmul.f32 %v3653, 0.5
    %v3678 = vmul.f32 %v3654, 0.5
    %v3679 = vmul.f32 %v3655, 0.5
    %v3680 = vmul.f32 %v3656, 0.5
    %v3681 = vmul.f32 %v3657, 0.5
    %v3682 = vmul.f32 %v3634, 0.70710677
    %v3683 = vmul.f32 %v3635, 0.70710677
    %v3684 = vmul.f32 %v3636, 0.70710677
    %v3685 = vmul.f32 %v3637, 0.70710677
    %v3686 = vmul.f32 %v3638, 0.70710677
    %v3687 = vmul.f32 %v3639, 0.70710677
    %v3688 = vmul.f32 %v3640, 0.70710677
    %v3689 = vmul.f32 %v3641, 0.70710677
    %v3690 = vmul.f32 %v3642, 0.70710677
    %v3691 = vmul.f32 %v3643, 0.70710677
    %v3692 = vmul.f32 %v3644, 0.70710677
    %v3693 = vmul.f32 %v3645, 0.70710677
    %v3694 = vmul.f32 %v3646, 0.70710677
    %v3695 = vmul.f32 %v3647, 0.70710677
    %v3696 = vmul.f32 %v3648, 0.70710677
    %v3697 = vmul.f32 %v3649, 0.70710677
    %v3698 = vmul.f32 %v3650, 0.70710677
    %v3699 = vmul.f32 %v3651, 0.70710677
    %v3700 = vmul.f32 %v3652, 0.70710677
    %v3701 = vmul.f32 %v3653, 0.70710677
    %v3702 = vmul.f32 %v3654, 0.70710677
    %v3703 = vmul.f32 %v3655, 0.70710677
    %v3704 = vmul.f32 %v3656, 0.70710677
    %v3705 = vmul.f32 %v3657, 0.70710677
    %v3706 = verf.f32.pop %v3682
    %v3707 = verf.f32.pop %v3683
    %v3708 = verf.f32.pop %v3684
    %v3709 = verf.f32.pop %v3685
    %v3710 = verf.f32.pop %v3686
    %v3711 = verf.f32.pop %v3687
    %v3712 = verf.f32.pop %v3688
    %v3713 = verf.f32.pop %v3689
    %v3714 = verf.f32.pop %v3690
    %v3715 = verf.f32.pop %v3691
    %v3716 = verf.f32.pop %v3692
    %v3717 = verf.f32.pop %v3693
    %v3718 = verf.f32.pop %v3694
    %v3719 = verf.f32.pop %v3695
    %v3720 = verf.f32.pop %v3696
    %v3721 = verf.f32.pop %v3697
    %v3722 = verf.f32.pop %v3698
    %v3723 = verf.f32.pop %v3699
    %v3724 = verf.f32.pop %v3700
    %v3725 = verf.f32.pop %v3701
    %v3726 = verf.f32.pop %v3702
    %v3727 = verf.f32.pop %v3703
    %v3728 = verf.f32.pop %v3704
    %v3729 = verf.f32.pop %v3705
    %v3730 = vadd.f32 %v3706, 1.0
    %v3731 = vadd.f32 %v3707, 1.0
    %v3732 = vadd.f32 %v3708, 1.0
    %v3733 = vadd.f32 %v3709, 1.0
    %v3734 = vadd.f32 %v3710, 1.0
    %v3735 = vadd.f32 %v3711, 1.0
    %v3736 = vadd.f32 %v3712, 1.0
    %v3737 = vadd.f32 %v3713, 1.0
    %v3738 = vadd.f32 %v3714, 1.0
    %v3739 = vadd.f32 %v3715, 1.0
    %v3740 = vadd.f32 %v3716, 1.0
    %v3741 = vadd.f32 %v3717, 1.0
    %v3742 = vadd.f32 %v3718, 1.0
    %v3743 = vadd.f32 %v3719, 1.0
    %v3744 = vadd.f32 %v3720, 1.0
    %v3745 = vadd.f32 %v3721, 1.0
    %v3746 = vadd.f32 %v3722, 1.0
    %v3747 = vadd.f32 %v3723, 1.0
    %v3748 = vadd.f32 %v3724, 1.0
    %v3749 = vadd.f32 %v3725, 1.0
    %v3750 = vadd.f32 %v3726, 1.0
    %v3751 = vadd.f32 %v3727, 1.0
    %v3752 = vadd.f32 %v3728, 1.0
    %v3753 = vadd.f32 %v3729, 1.0
    %v3754 = vmul.f32 %v3658, %v3730
    %v3755 = vmul.f32 %v3659, %v3731
    %v3756 = vmul.f32 %v3660, %v3732
    %v3757 = vmul.f32 %v3661, %v3733
    %v3758 = vmul.f32 %v3662, %v3734
    %v3759 = vmul.f32 %v3663, %v3735
    %v3760 = vmul.f32 %v3664, %v3736
    %v3761 = vmul.f32 %v3665, %v3737
    %v3762 = vmul.f32 %v3666, %v3738
    %v3763 = vmul.f32 %v3667, %v3739
    %v3764 = vmul.f32 %v3668, %v3740
    %v3765 = vmul.f32 %v3669, %v3741
    %v3766 = vmul.f32 %v3670, %v3742
    %v3767 = vmul.f32 %v3671, %v3743
    %v3768 = vmul.f32 %v3672, %v3744
    %v3769 = vmul.f32 %v3673, %v3745
    %v3770 = vmul.f32 %v3674, %v3746
    %v3771 = vmul.f32 %v3675, %v3747
    %v3772 = vmul.f32 %v3676, %v3748
    %v3773 = vmul.f32 %v3677, %v3749
    %v3774 = vmul.f32 %v3678, %v3750
    %v3775 = vmul.f32 %v3679, %v3751
    %v3776 = vmul.f32 %v3680, %v3752
    %v3777 = vmul.f32 %v3681, %v3753
    %s3778 = scalar_lea.vmem [#allocation2], 256
    %v3779 = vld [vmem:[%s3778] sm:$0xff]
    %v3780 = vld [vmem:[%s3778 + $0x8] sm:$0xff]
    %v3781 = vld [vmem:[%s3778 + $0x10] sm:$0xff]
    %v3782 = vld [vmem:[%s3778 + $0x18] sm:$0xff]
    %v3783 = vld [vmem:[%s3778 + $0x20] sm:$0xff]
    %v3784 = vld [vmem:[%s3778 + $0x28] sm:$0xff]
    %v3785 = vld [vmem:[%s3778 + $0x30] sm:$0xff]
    %v3786 = vld [vmem:[%s3778 + $0x38] sm:$0xff]
    %v3787 = vld [vmem:[%s3778 + $0x40] sm:$0xff]
    %v3788 = vld [vmem:[%s3778 + $0x48] sm:$0xff]
    %v3789 = vld [vmem:[%s3778 + $0x50] sm:$0xff]
    %v3790 = vld [vmem:[%s3778 + $0x58] sm:$0xff]
    %v3791 = vld [vmem:[%s3778 + $0x60] sm:$0xff]
    %v3792 = vld [vmem:[%s3778 + $0x68] sm:$0xff]
    %v3793 = vld [vmem:[%s3778 + $0x70] sm:$0xff]
    %v3794 = vld [vmem:[%s3778 + $0x78] sm:$0xff]
    %v3795 = vld [vmem:[%s3778 + $0x80] sm:$0xff]
    %v3796 = vld [vmem:[%s3778 + $0x88] sm:$0xff]
    %v3797 = vld [vmem:[%s3778 + $0x90] sm:$0xff]
    %v3798 = vld [vmem:[%s3778 + $0x98] sm:$0xff]
    %v3799 = vld [vmem:[%s3778 + $0xa0] sm:$0xff]
    %v3800 = vld [vmem:[%s3778 + $0xa8] sm:$0xff]
    %v3801 = vld [vmem:[%s3778 + $0xb0] sm:$0xff]
    %v3802 = vld [vmem:[%s3778 + $0xb8] sm:$0xff]
    %v3803 = vld [vmem:[%s3778 + $0xc0] sm:$0xff]
    %v3804 = vld [vmem:[%s3778 + $0xc8] sm:$0xff]
    %v3805 = vld [vmem:[%s3778 + $0xd0] sm:$0xff]
    %v3806 = vld [vmem:[%s3778 + $0xd8] sm:$0xff]
    %v3807 = vld [vmem:[%s3778 + $0xe0] sm:$0xff]
    %v3808 = vld [vmem:[%s3778 + $0xe8] sm:$0xff]
    %v3809 = vld [vmem:[%s3778 + $0xf0] sm:$0xff]
    %v3810 = vld [vmem:[%s3778 + $0xf8] sm:$0xff]
    %s3811 = scalar_lea.vmem %s7, 2
    %v3812 = vld [vmem:[%s3811] sm:$0x3]
    %v3814 = vlaneseq
    %v3815 = vshrl.u32 %v3814, 7
    %v3816 = vsub.s32 0, %v3815
    %v3817 = vrot.slane %v3812, %v3816
    %v3818 = vlaneseq
    %v3819 = vshrl.u32 %v3818, 7
    %v3820 = vsub.s32 1, %v3819
    %v3821 = vrot.slane %v3812, %v3820
    %3824 = vmatprep.subr.mxu0 %v3780
    %3825 = vmatpush1.msra.mxu0 %v3779
    %3826 = vmatprep.subr.mxu0 %v3782
    %3827 = vmatpush1.msra.mxu0 %v3781
    %3828 = vmatprep.subr.mxu0 %v3784
    %3829 = vmatpush1.msra.mxu0 %v3783
    %3830 = vmatprep.subr.mxu0 %v3786
    %3831 = vmatpush1.msra.mxu0 %v3785
    %3832 = vmatprep.subr.mxu0 %v3788
    %3833 = vmatpush1.msra.mxu0 %v3787
    %3834 = vmatprep.subr.mxu0 %v3790
    %3835 = vmatpush1.msra.mxu0 %v3789
    %3836 = vmatprep.subr.mxu0 %v3792
    %3837 = vmatpush1.msra.mxu0 %v3791
    %3838 = vmatprep.subr.mxu0 %v3794
    %3839 = vmatpush1.msra.mxu0 %v3793
    %3840 = vmatprep.subr.mxu0 %v3796
    %3841 = vmatpush1.msra.mxu0 %v3795
    %3842 = vmatprep.subr.mxu0 %v3798
    %3843 = vmatpush1.msra.mxu0 %v3797
    %3844 = vmatprep.subr.mxu0 %v3800
    %3845 = vmatpush1.msra.mxu0 %v3799
    %3846 = vmatprep.subr.mxu0 %v3802
    %3847 = vmatpush1.msra.mxu0 %v3801
    %3848 = vmatprep.subr.mxu0 %v3804
    %3849 = vmatpush1.msra.mxu0 %v3803
    %3850 = vmatprep.subr.mxu0 %v3806
    %3851 = vmatpush1.msra.mxu0 %v3805
    %3852 = vmatprep.subr.mxu0 %v3808
    %3853 = vmatpush1.msra.mxu0 %v3807
    %3854 = vmatprep.subr.mxu0 %v3810
    %3855 = vmatpush1.msra.mxu0 %v3809
    %3856 = vmatprep.subr.mxu0 0.0
    %3857 = vmatpush1.msra.mxu0 0.0
    %3858 = vmatprep.subr.mxu0 0.0
    %3859 = vmatpush1.msra.mxu0 0.0
    %3860 = vmatprep.subr.mxu0 0.0
    %3861 = vmatpush1.msra.mxu0 0.0
    %3862 = vmatprep.subr.mxu0 0.0
    %3863 = vmatpush1.msra.mxu0 0.0
    %3864 = vmatprep.subr.mxu0 0.0
    %3865 = vmatpush1.msra.mxu0 0.0
    %3866 = vmatprep.subr.mxu0 0.0
    %3867 = vmatpush1.msra.mxu0 0.0
    %3868 = vmatprep.subr.mxu0 0.0
    %3869 = vmatpush1.msra.mxu0 0.0
    %3870 = vmatprep.subr.mxu0 0.0
    %3871 = vmatpush1.msra.mxu0 0.0
    %3872 = vmatprep.subr.mxu0 0.0
    %3873 = vmatpush1.msra.mxu0 0.0
    %3874 = vmatprep.subr.mxu0 0.0
    %3875 = vmatpush1.msra.mxu0 0.0
    %3876 = vmatprep.subr.mxu0 0.0
    %3877 = vmatpush1.msra.mxu0 0.0
    %3878 = vmatprep.subr.mxu0 0.0
    %3879 = vmatpush1.msra.mxu0 0.0
    %3880 = vmatprep.subr.mxu0 0.0
    %3881 = vmatpush1.msra.mxu0 0.0
    %3882 = vmatprep.subr.mxu0 0.0
    %3883 = vmatpush1.msra.mxu0 0.0
    %3884 = vmatprep.subr.mxu0 0.0
    %3885 = vmatpush1.msra.mxu0 0.0
    %3886 = vmatprep.subr.mxu0 0.0
    %3887 = vmatpush1.msra.mxu0 0.0
    %3888 = vmatprep.mubr.f32.mxu0 0.0
    %3889 = vmatmul.mubr.f32.gmra.mrb[0].mxu0 %v3754
    %v3890 = vpop.f32.mrb[0].mxu0
    %v3891 = vadd.f32 %v3817, %v3890
    %v3892 = vpop.f32.mrb[0].mxu0
    %v3893 = vadd.f32 %v3821, %v3892
    %3894 = vmatprep.mubr.f32.mxu0 0.0
    %3895 = vmatmul.mubr.f32.gmra.mrb[0].mxu0 %v3755
    %v3896 = vpop.f32.mrb[0].mxu0
    %v3897 = vadd.f32 %v3817, %v3896
    %v3898 = vpop.f32.mrb[0].mxu0
    %v3899 = vadd.f32 %v3821, %v3898
    %3900 = vmatprep.mubr.f32.mxu0 0.0
    %3901 = vmatmul.mubr.f32.gmra.mrb[0].mxu0 %v3756
    %v3902 = vpop.f32.mrb[0].mxu0
    %v3903 = vadd.f32 %v3817, %v3902
    %v3904 = vpop.f32.mrb[0].mxu0
    %v3905 = vadd.f32 %v3821, %v3904
    %3906 = vmatprep.mubr.f32.mxu0 0.0
    %3907 = vmatmul.mubr.f32.gmra.mrb[0].mxu0 %v3757
    %v3908 = vpop.f32.mrb[0].mxu0
    %v3909 = vadd.f32 %v3817, %v3908
    %v3910 = vpop.f32.mrb[0].mxu0
    %v3911 = vadd.f32 %v3821, %v3910
    %3912 = vmatprep.mubr.f32.mxu0 0.0
    %3913 = vmatmul.mubr.f32.gmra.mrb[0].mxu0 %v3758
    %v3914 = vpop.f32.mrb[0].mxu0
    %v3915 = vadd.f32 %v3817, %v3914
    %v3916 = vpop.f32.mrb[0].mxu0
    %v3917 = vadd.f32 %v3821, %v3916
    %3918 = vmatprep.mubr.f32.mxu0 0.0
    %3919 = vmatmul.mubr.f32.gmra.mrb[0].mxu0 %v3759
    %v3920 = vpop.f32.mrb[0].mxu0
    %v3921 = vadd.f32 %v3817, %v3920
    %v3922 = vpop.f32.mrb[0].mxu0
    %v3923 = vadd.f32 %v3821, %v3922
    %3924 = vmatprep.mubr.f32.mxu0 0.0
    %3925 = vmatmul.mubr.f32.gmra.mrb[0].mxu0 %v3760
    %v3926 = vpop.f32.mrb[0].mxu0
    %v3927 = vadd.f32 %v3817, %v3926
    %v3928 = vpop.f32.mrb[0].mxu0
    %v3929 = vadd.f32 %v3821, %v3928
    %3930 = vmatprep.mubr.f32.mxu0 0.0
    %3931 = vmatmul.mubr.f32.gmra.mrb[0].mxu0 %v3761
    %v3932 = vpop.f32.mrb[0].mxu0
    %v3933 = vadd.f32 %v3817, %v3932
    %v3934 = vpop.f32.mrb[0].mxu0
    %v3935 = vadd.f32 %v3821, %v3934
    %3936 = vmatprep.mubr.f32.mxu0 0.0
    %3937 = vmatmul.mubr.f32.gmra.mrb[0].mxu0 %v3762
    %v3938 = vpop.f32.mrb[0].mxu0
    %v3939 = vadd.f32 %v3817, %v3938
    %v3940 = vpop.f32.mrb[0].mxu0
    %v3941 = vadd.f32 %v3821, %v3940
    %3942 = vmatprep.mubr.f32.mxu0 0.0
    %3943 = vmatmul.mubr.f32.gmra.mrb[0].mxu0 %v3763
    %v3944 = vpop.f32.mrb[0].mxu0
    %v3945 = vadd.f32 %v3817, %v3944
    %v3946 = vpop.f32.mrb[0].mxu0
    %v3947 = vadd.f32 %v3821, %v3946
    %3948 = vmatprep.mubr.f32.mxu0 0.0
    %3949 = vmatmul.mubr.f32.gmra.mrb[0].mxu0 %v3764
    %v3950 = vpop.f32.mrb[0].mxu0
    %v3951 = vadd.f32 %v3817, %v3950
    %v3952 = vpop.f32.mrb[0].mxu0
    %v3953 = vadd.f32 %v3821, %v3952
    %3954 = vmatprep.mubr.f32.mxu0 0.0
    %3955 = vmatmul.mubr.f32.gmra.mrb[0].mxu0 %v3765
    %v3956 = vpop.f32.mrb[0].mxu0
    %v3957 = vadd.f32 %v3817, %v3956
    %v3958 = vpop.f32.mrb[0].mxu0
    %v3959 = vadd.f32 %v3821, %v3958
    %3960 = vmatprep.mubr.f32.mxu0 0.0
    %3961 = vmatmul.mubr.f32.gmra.mrb[0].mxu0 %v3766
    %v3962 = vpop.f32.mrb[0].mxu0
    %v3963 = vadd.f32 %v3817, %v3962
    %v3964 = vpop.f32.mrb[0].mxu0
    %v3965 = vadd.f32 %v3821, %v3964
    %3966 = vmatprep.mubr.f32.mxu0 0.0
    %3967 = vmatmul.mubr.f32.gmra.mrb[0].mxu0 %v3767
    %v3968 = vpop.f32.mrb[0].mxu0
    %v3969 = vadd.f32 %v3817, %v3968
    %v3970 = vpop.f32.mrb[0].mxu0
    %v3971 = vadd.f32 %v3821, %v3970
    %3972 = vmatprep.mubr.f32.mxu0 0.0
    %3973 = vmatmul.mubr.f32.gmra.mrb[0].mxu0 %v3768
    %v3974 = vpop.f32.mrb[0].mxu0
    %v3975 = vadd.f32 %v3817, %v3974
    %v3976 = vpop.f32.mrb[0].mxu0
    %v3977 = vadd.f32 %v3821, %v3976
    %3978 = vmatprep.mubr.f32.mxu0 0.0
    %3979 = vmatmul.mubr.f32.gmra.mrb[0].mxu0 %v3769
    %v3980 = vpop.f32.mrb[0].mxu0
    %v3981 = vadd.f32 %v3817, %v3980
    %v3982 = vpop.f32.mrb[0].mxu0
    %v3983 = vadd.f32 %v3821, %v3982
    %3984 = vmatprep.mubr.f32.mxu0 0.0
    %3985 = vmatmul.mubr.f32.gmra.mrb[0].mxu0 %v3770
    %v3986 = vpop.f32.mrb[0].mxu0
    %v3987 = vadd.f32 %v3817, %v3986
    %v3988 = vpop.f32.mrb[0].mxu0
    %v3989 = vadd.f32 %v3821, %v3988
    %3990 = vmatprep.mubr.f32.mxu0 0.0
    %3991 = vmatmul.mubr.f32.gmra.mrb[0].mxu0 %v3771
    %v3992 = vpop.f32.mrb[0].mxu0
    %v3993 = vadd.f32 %v3817, %v3992
    %v3994 = vpop.f32.mrb[0].mxu0
    %v3995 = vadd.f32 %v3821, %v3994
    %3996 = vmatprep.mubr.f32.mxu0 0.0
    %3997 = vmatmul.mubr.f32.gmra.mrb[0].mxu0 %v3772
    %v3998 = vpop.f32.mrb[0].mxu0
    %v3999 = vadd.f32 %v3817, %v3998
    %v4000 = vpop.f32.mrb[0].mxu0
    %v4001 = vadd.f32 %v3821, %v4000
    %4002 = vmatprep.mubr.f32.mxu0 0.0
    %4003 = vmatmul.mubr.f32.gmra.mrb[0].mxu0 %v3773
    %v4004 = vpop.f32.mrb[0].mxu0
    %v4005 = vadd.f32 %v3817, %v4004
    %v4006 = vpop.f32.mrb[0].mxu0
    %v4007 = vadd.f32 %v3821, %v4006
    %4008 = vmatprep.mubr.f32.mxu0 0.0
    %4009 = vmatmul.mubr.f32.gmra.mrb[0].mxu0 %v3774
    %v4010 = vpop.f32.mrb[0].mxu0
    %v4011 = vadd.f32 %v3817, %v4010
    %v4012 = vpop.f32.mrb[0].mxu0
    %v4013 = vadd.f32 %v3821, %v4012
    %4014 = vmatprep.mubr.f32.mxu0 0.0
    %4015 = vmatmul.mubr.f32.gmra.mrb[0].mxu0 %v3775
    %v4016 = vpop.f32.mrb[0].mxu0
    %v4017 = vadd.f32 %v3817, %v4016
    %v4018 = vpop.f32.mrb[0].mxu0
    %v4019 = vadd.f32 %v3821, %v4018
    %4020 = vmatprep.mubr.f32.mxu0 0.0
    %4021 = vmatmul.mubr.f32.gmra.mrb[0].mxu0 %v3776
    %v4022 = vpop.f32.mrb[0].mxu0
    %v4023 = vadd.f32 %v3817, %v4022
    %v4024 = vpop.f32.mrb[0].mxu0
    %v4025 = vadd.f32 %v3821, %v4024
    %4026 = vmatprep.mubr.f32.mxu0 0.0
    %4027 = vmatmul.mubr.f32.gmra.mrb[0].mxu0 %v3777
    %v4028 = vpop.f32.mrb[0].mxu0
    %v4029 = vadd.f32 %v3817, %v4028
    %v4030 = vpop.f32.mrb[0].mxu0
    %v4031 = vadd.f32 %v3821, %v4030
    %4032 = vdwg.mxu0
    %v4033 = vxor.u32 %v3893, 2147483648
    %v4034 = vxor.u32 %v3899, 2147483648
    %v4035 = vxor.u32 %v3905, 2147483648
    %v4036 = vxor.u32 %v3911, 2147483648
    %v4037 = vxor.u32 %v3917, 2147483648
    %v4038 = vxor.u32 %v3923, 2147483648
    %v4039 = vxor.u32 %v3929, 2147483648
    %v4040 = vxor.u32 %v3935, 2147483648
    %v4041 = vxor.u32 %v3941, 2147483648
    %v4042 = vxor.u32 %v3947, 2147483648
    %v4043 = vxor.u32 %v3953, 2147483648
    %v4044 = vxor.u32 %v3959, 2147483648
    %v4045 = vxor.u32 %v3965, 2147483648
    %v4046 = vxor.u32 %v3971, 2147483648
    %v4047 = vxor.u32 %v3977, 2147483648
    %v4048 = vxor.u32 %v3983, 2147483648
    %v4049 = vxor.u32 %v3989, 2147483648
    %v4050 = vxor.u32 %v3995, 2147483648
    %v4051 = vxor.u32 %v4001, 2147483648
    %v4052 = vxor.u32 %v4007, 2147483648
    %v4053 = vxor.u32 %v4013, 2147483648
    %v4054 = vxor.u32 %v4019, 2147483648
    %v4055 = vxor.u32 %v4025, 2147483648
    %v4056 = vxor.u32 %v4031, 2147483648
    %v4057 = vmul.f32 %v4033, 1.442695
    %v4058 = vpow.pop %v4057
    %v4059 = vmul.f32 %v4034, 1.442695
    %v4060 = vpow.pop %v4059
    %v4061 = vmul.f32 %v4035, 1.442695
    %v4062 = vpow.pop %v4061
    %v4063 = vmul.f32 %v4036, 1.442695
    %v4064 = vpow.pop %v4063
    %v4065 = vmul.f32 %v4037, 1.442695
    %v4066 = vpow.pop %v4065
    %v4067 = vmul.f32 %v4038, 1.442695
    %v4068 = vpow.pop %v4067
    %v4069 = vmul.f32 %v4039, 1.442695
    %v4070 = vpow.pop %v4069
    %v4071 = vmul.f32 %v4040, 1.442695
    %v4072 = vpow.pop %v4071
    %v4073 = vmul.f32 %v4041, 1.442695
    %v4074 = vpow.pop %v4073
    %v4075 = vmul.f32 %v4042, 1.442695
    %v4076 = vpow.pop %v4075
    %v4077 = vmul.f32 %v4043, 1.442695
    %v4078 = vpow.pop %v4077
    %v4079 = vmul.f32 %v4044, 1.442695
    %v4080 = vpow.pop %v4079
    %v4081 = vmul.f32 %v4045, 1.442695
    %v4082 = vpow.pop %v4081
    %v4083 = vmul.f32 %v4046, 1.442695
    %v4084 = vpow.pop %v4083
    %v4085 = vmul.f32 %v4047, 1.442695
    %v4086 = vpow.pop %v4085
    %v4087 = vmul.f32 %v4048, 1.442695
    %v4088 = vpow.pop %v4087
    %v4089 = vmul.f32 %v4049, 1.442695
    %v4090 = vpow.pop %v4089
    %v4091 = vmul.f32 %v4050, 1.442695
    %v4092 = vpow.pop %v4091
    %v4093 = vmul.f32 %v4051, 1.442695
    %v4094 = vpow.pop %v4093
    %v4095 = vmul.f32 %v4052, 1.442695
    %v4096 = vpow.pop %v4095
    %v4097 = vmul.f32 %v4053, 1.442695
    %v4098 = vpow.pop %v4097
    %v4099 = vmul.f32 %v4054, 1.442695
    %v4100 = vpow.pop %v4099
    %v4101 = vmul.f32 %v4055, 1.442695
    %v4102 = vpow.pop %v4101
    %v4103 = vmul.f32 %v4056, 1.442695
    %v4104 = vpow.pop %v4103
    %v4105 = vadd.f32 %v4058, 1.0
    %v4106 = vadd.f32 %v4060, 1.0
    %v4107 = vadd.f32 %v4062, 1.0
    %v4108 = vadd.f32 %v4064, 1.0
    %v4109 = vadd.f32 %v4066, 1.0
    %v4110 = vadd.f32 %v4068, 1.0
    %v4111 = vadd.f32 %v4070, 1.0
    %v4112 = vadd.f32 %v4072, 1.0
    %v4113 = vadd.f32 %v4074, 1.0
    %v4114 = vadd.f32 %v4076, 1.0
    %v4115 = vadd.f32 %v4078, 1.0
    %v4116 = vadd.f32 %v4080, 1.0
    %v4117 = vadd.f32 %v4082, 1.0
    %v4118 = vadd.f32 %v4084, 1.0
    %v4119 = vadd.f32 %v4086, 1.0
    %v4120 = vadd.f32 %v4088, 1.0
    %v4121 = vadd.f32 %v4090, 1.0
    %v4122 = vadd.f32 %v4092, 1.0
    %v4123 = vadd.f32 %v4094, 1.0
    %v4124 = vadd.f32 %v4096, 1.0
    %v4125 = vadd.f32 %v4098, 1.0
    %v4126 = vadd.f32 %v4100, 1.0
    %v4127 = vadd.f32 %v4102, 1.0
    %v4128 = vadd.f32 %v4104, 1.0
    %v4129 = vrcp.pop %v4105
    %v4130 = vmul.f32 1.0, %v4129
    %v4131 = vrcp.pop %v4106
    %v4132 = vmul.f32 1.0, %v4131
    %v4133 = vrcp.pop %v4107
    %v4134 = vmul.f32 1.0, %v4133
    %v4135 = vrcp.pop %v4108
    %v4136 = vmul.f32 1.0, %v4135
    %v4137 = vrcp.pop %v4109
    %v4138 = vmul.f32 1.0, %v4137
    %v4139 = vrcp.pop %v4110
    %v4140 = vmul.f32 1.0, %v4139
    %v4141 = vrcp.pop %v4111
    %v4142 = vmul.f32 1.0, %v4141
    %v4143 = vrcp.pop %v4112
    %v4144 = vmul.f32 1.0, %v4143
    %v4145 = vrcp.pop %v4113
    %v4146 = vmul.f32 1.0, %v4145
    %v4147 = vrcp.pop %v4114
    %v4148 = vmul.f32 1.0, %v4147
    %v4149 = vrcp.pop %v4115
    %v4150 = vmul.f32 1.0, %v4149
    %v4151 = vrcp.pop %v4116
    %v4152 = vmul.f32 1.0, %v4151
    %v4153 = vrcp.pop %v4117
    %v4154 = vmul.f32 1.0, %v4153
    %v4155 = vrcp.pop %v4118
    %v4156 = vmul.f32 1.0, %v4155
    %v4157 = vrcp.pop %v4119
    %v4158 = vmul.f32 1.0, %v4157
    %v4159 = vrcp.pop %v4120
    %v4160 = vmul.f32 1.0, %v4159
    %v4161 = vrcp.pop %v4121
    %v4162 = vmul.f32 1.0, %v4161
    %v4163 = vrcp.pop %v4122
    %v4164 = vmul.f32 1.0, %v4163
    %v4165 = vrcp.pop %v4123
    %v4166 = vmul.f32 1.0, %v4165
    %v4167 = vrcp.pop %v4124
    %v4168 = vmul.f32 1.0, %v4167
    %v4169 = vrcp.pop %v4125
    %v4170 = vmul.f32 1.0, %v4169
    %v4171 = vrcp.pop %v4126
    %v4172 = vmul.f32 1.0, %v4171
    %v4173 = vrcp.pop %v4127
    %v4174 = vmul.f32 1.0, %v4173
    %v4175 = vrcp.pop %v4128
    %v4176 = vmul.f32 1.0, %v4175
    %v4177 = vmul.f32 %v3891, %v4130
    %v4178 = vmul.f32 %v3897, %v4132
    %v4179 = vmul.f32 %v3903, %v4134
    %v4180 = vmul.f32 %v3909, %v4136
    %v4181 = vmul.f32 %v3915, %v4138
    %v4182 = vmul.f32 %v3921, %v4140
    %v4183 = vmul.f32 %v3927, %v4142
    %v4184 = vmul.f32 %v3933, %v4144
    %v4185 = vmul.f32 %v3939, %v4146
    %v4186 = vmul.f32 %v3945, %v4148
    %v4187 = vmul.f32 %v3951, %v4150
    %v4188 = vmul.f32 %v3957, %v4152
    %v4189 = vmul.f32 %v3963, %v4154
    %v4190 = vmul.f32 %v3969, %v4156
    %v4191 = vmul.f32 %v3975, %v4158
    %v4192 = vmul.f32 %v3981, %v4160
    %v4193 = vmul.f32 %v3987, %v4162
    %v4194 = vmul.f32 %v3993, %v4164
    %v4195 = vmul.f32 %v3999, %v4166
    %v4196 = vmul.f32 %v4005, %v4168
    %v4197 = vmul.f32 %v4011, %v4170
    %v4198 = vmul.f32 %v4017, %v4172
    %v4199 = vmul.f32 %v4023, %v4174
    %v4200 = vmul.f32 %v4029, %v4176
    %v4201 = vadd.f32 %v4177, %v2596
    %v4202 = vadd.f32 %v4178, %v2597
    %v4203 = vadd.f32 %v4179, %v2598
    %v4204 = vadd.f32 %v4180, %v2599
    %v4205 = vadd.f32 %v4181, %v2600
    %v4206 = vadd.f32 %v4182, %v2601
    %v4207 = vadd.f32 %v4183, %v2602
    %v4208 = vadd.f32 %v4184, %v2603
    %v4209 = vadd.f32 %v4185, %v2604
    %v4210 = vadd.f32 %v4186, %v2605
    %v4211 = vadd.f32 %v4187, %v2606
    %v4212 = vadd.f32 %v4188, %v2607
    %v4213 = vadd.f32 %v4189, %v2608
    %v4214 = vadd.f32 %v4190, %v2609
    %v4215 = vadd.f32 %v4191, %v2610
    %v4216 = vadd.f32 %v4192, %v2611
    %v4217 = vadd.f32 %v4193, %v2612
    %v4218 = vadd.f32 %v4194, %v2613
    %v4219 = vadd.f32 %v4195, %v2614
    %v4220 = vadd.f32 %v4196, %v2615
    %v4221 = vadd.f32 %v4197, %v2616
    %v4222 = vadd.f32 %v4198, %v2617
    %v4223 = vadd.f32 %v4199, %v2618
    %v4224 = vadd.f32 %v4200, %v2619
    %4225 = vadd.xlane.f32.xlu0 %v4201
    %v4226 = vpop.xlane.xlu0 %4225
    %4227 = vadd.xlane.f32.xlu0 %v4202
    %v4228 = vpop.xlane.xlu0 %4227
    %4229 = vadd.xlane.f32.xlu0 %v4203
    %v4230 = vpop.xlane.xlu0 %4229
    %4231 = vadd.xlane.f32.xlu0 %v4204
    %v4232 = vpop.xlane.xlu0 %4231
    %4233 = vadd.xlane.f32.xlu0 %v4205
    %v4234 = vpop.xlane.xlu0 %4233
    %4235 = vadd.xlane.f32.xlu0 %v4206
    %v4236 = vpop.xlane.xlu0 %4235
    %4237 = vadd.xlane.f32.xlu0 %v4207
    %v4238 = vpop.xlane.xlu0 %4237
    %4239 = vadd.xlane.f32.xlu0 %v4208
    %v4240 = vpop.xlane.xlu0 %4239
    %4241 = vadd.xlane.f32.xlu0 %v4209
    %v4242 = vpop.xlane.xlu0 %4241
    %4243 = vadd.xlane.f32.xlu0 %v4210
    %v4244 = vpop.xlane.xlu0 %4243
    %4245 = vadd.xlane.f32.xlu0 %v4211
    %v4246 = vpop.xlane.xlu0 %4245
    %4247 = vadd.xlane.f32.xlu0 %v4212
    %v4248 = vpop.xlane.xlu0 %4247
    %4249 = vadd.xlane.f32.xlu0 %v4213
    %v4250 = vpop.xlane.xlu0 %4249
    %4251 = vadd.xlane.f32.xlu0 %v4214
    %v4252 = vpop.xlane.xlu0 %4251
    %4253 = vadd.xlane.f32.xlu0 %v4215
    %v4254 = vpop.xlane.xlu0 %4253
    %4255 = vadd.xlane.f32.xlu0 %v4216
    %v4256 = vpop.xlane.xlu0 %4255
    %4257 = vadd.xlane.f32.xlu0 %v4217
    %v4258 = vpop.xlane.xlu0 %4257
    %4259 = vadd.xlane.f32.xlu0 %v4218
    %v4260 = vpop.xlane.xlu0 %4259
    %4261 = vadd.xlane.f32.xlu0 %v4219
    %v4262 = vpop.xlane.xlu0 %4261
    %4263 = vadd.xlane.f32.xlu0 %v4220
    %v4264 = vpop.xlane.xlu0 %4263
    %4265 = vadd.xlane.f32.xlu0 %v4221
    %v4266 = vpop.xlane.xlu0 %4265
    %4267 = vadd.xlane.f32.xlu0 %v4222
    %v4268 = vpop.xlane.xlu0 %4267
    %4269 = vadd.xlane.f32.xlu0 %v4223
    %v4270 = vpop.xlane.xlu0 %4269
    %4271 = vadd.xlane.f32.xlu0 %v4224
    %v4272 = vpop.xlane.xlu0 %4271
    %v4273 = vmul.f32 %v4226, %v2341
    %v4274 = vmul.f32 %v4228, %v2341
    %v4275 = vmul.f32 %v4230, %v2341
    %v4276 = vmul.f32 %v4232, %v2341
    %v4277 = vmul.f32 %v4234, %v2341
    %v4278 = vmul.f32 %v4236, %v2341
    %v4279 = vmul.f32 %v4238, %v2341
    %v4280 = vmul.f32 %v4240, %v2341
    %v4281 = vmul.f32 %v4242, %v2341
    %v4282 = vmul.f32 %v4244, %v2341
    %v4283 = vmul.f32 %v4246, %v2341
    %v4284 = vmul.f32 %v4248, %v2341
    %v4285 = vmul.f32 %v4250, %v2341
    %v4286 = vmul.f32 %v4252, %v2341
    %v4287 = vmul.f32 %v4254, %v2341
    %v4288 = vmul.f32 %v4256, %v2341
    %v4289 = vmul.f32 %v4258, %v2341
    %v4290 = vmul.f32 %v4260, %v2341
    %v4291 = vmul.f32 %v4262, %v2341
    %v4292 = vmul.f32 %v4264, %v2341
    %v4293 = vmul.f32 %v4266, %v2341
    %v4294 = vmul.f32 %v4268, %v2341
    %v4295 = vmul.f32 %v4270, %v2341
    %v4296 = vmul.f32 %v4272, %v2341
    %v4297 = vsub.f32 %v4201, %v4273
    %v4298 = vsub.f32 %v4202, %v4274
    %v4299 = vsub.f32 %v4203, %v4275
    %v4300 = vsub.f32 %v4204, %v4276
    %v4301 = vsub.f32 %v4205, %v4277
    %v4302 = vsub.f32 %v4206, %v4278
    %v4303 = vsub.f32 %v4207, %v4279
    %v4304 = vsub.f32 %v4208, %v4280
    %v4305 = vsub.f32 %v4209, %v4281
    %v4306 = vsub.f32 %v4210, %v4282
    %v4307 = vsub.f32 %v4211, %v4283
    %v4308 = vsub.f32 %v4212, %v4284
    %v4309 = vsub.f32 %v4213, %v4285
    %v4310 = vsub.f32 %v4214, %v4286
    %v4311 = vsub.f32 %v4215, %v4287
    %v4312 = vsub.f32 %v4216, %v4288
    %v4313 = vsub.f32 %v4217, %v4289
    %v4314 = vsub.f32 %v4218, %v4290
    %v4315 = vsub.f32 %v4219, %v4291
    %v4316 = vsub.f32 %v4220, %v4292
    %v4317 = vsub.f32 %v4221, %v4293
    %v4318 = vsub.f32 %v4222, %v4294
    %v4319 = vsub.f32 %v4223, %v4295
    %v4320 = vsub.f32 %v4224, %v4296
    %v4321 = vmul.f32 %v4297, %v4297
    %v4322 = vmul.f32 %v4298, %v4298
    %v4323 = vmul.f32 %v4299, %v4299
    %v4324 = vmul.f32 %v4300, %v4300
    %v4325 = vmul.f32 %v4301, %v4301
    %v4326 = vmul.f32 %v4302, %v4302
    %v4327 = vmul.f32 %v4303, %v4303
    %v4328 = vmul.f32 %v4304, %v4304
    %v4329 = vmul.f32 %v4305, %v4305
    %v4330 = vmul.f32 %v4306, %v4306
    %v4331 = vmul.f32 %v4307, %v4307
    %v4332 = vmul.f32 %v4308, %v4308
    %v4333 = vmul.f32 %v4309, %v4309
    %v4334 = vmul.f32 %v4310, %v4310
    %v4335 = vmul.f32 %v4311, %v4311
    %v4336 = vmul.f32 %v4312, %v4312
    %v4337 = vmul.f32 %v4313, %v4313
    %v4338 = vmul.f32 %v4314, %v4314
    %v4339 = vmul.f32 %v4315, %v4315
    %v4340 = vmul.f32 %v4316, %v4316
    %v4341 = vmul.f32 %v4317, %v4317
    %v4342 = vmul.f32 %v4318, %v4318
    %v4343 = vmul.f32 %v4319, %v4319
    %v4344 = vmul.f32 %v4320, %v4320
    %4345 = vadd.xlane.f32.xlu0 %v4321
    %v4346 = vpop.xlane.xlu0 %4345
    %4347 = vadd.xlane.f32.xlu0 %v4322
    %v4348 = vpop.xlane.xlu0 %4347
    %4349 = vadd.xlane.f32.xlu0 %v4323
    %v4350 = vpop.xlane.xlu0 %4349
    %4351 = vadd.xlane.f32.xlu0 %v4324
    %v4352 = vpop.xlane.xlu0 %4351
    %4353 = vadd.xlane.f32.xlu0 %v4325
    %v4354 = vpop.xlane.xlu0 %4353
    %4355 = vadd.xlane.f32.xlu0 %v4326
    %v4356 = vpop.xlane.xlu0 %4355
    %4357 = vadd.xlane.f32.xlu0 %v4327
    %v4358 = vpop.xlane.xlu0 %4357
    %4359 = vadd.xlane.f32.xlu0 %v4328
    %v4360 = vpop.xlane.xlu0 %4359
    %4361 = vadd.xlane.f32.xlu0 %v4329
    %v4362 = vpop.xlane.xlu0 %4361
    %4363 = vadd.xlane.f32.xlu0 %v4330
    %v4364 = vpop.xlane.xlu0 %4363
    %4365 = vadd.xlane.f32.xlu0 %v4331
    %v4366 = vpop.xlane.xlu0 %4365
    %4367 = vadd.xlane.f32.xlu0 %v4332
    %v4368 = vpop.xlane.xlu0 %4367
    %4369 = vadd.xlane.f32.xlu0 %v4333
    %v4370 = vpop.xlane.xlu0 %4369
    %4371 = vadd.xlane.f32.xlu0 %v4334
    %v4372 = vpop.xlane.xlu0 %4371
    %4373 = vadd.xlane.f32.xlu0 %v4335
    %v4374 = vpop.xlane.xlu0 %4373
    %4375 = vadd.xlane.f32.xlu0 %v4336
    %v4376 = vpop.xlane.xlu0 %4375
    %4377 = vadd.xlane.f32.xlu0 %v4337
    %v4378 = vpop.xlane.xlu0 %4377
    %4379 = vadd.xlane.f32.xlu0 %v4338
    %v4380 = vpop.xlane.xlu0 %4379
    %4381 = vadd.xlane.f32.xlu0 %v4339
    %v4382 = vpop.xlane.xlu0 %4381
    %4383 = vadd.xlane.f32.xlu0 %v4340
    %v4384 = vpop.xlane.xlu0 %4383
    %4385 = vadd.xlane.f32.xlu0 %v4341
    %v4386 = vpop.xlane.xlu0 %4385
    %4387 = vadd.xlane.f32.xlu0 %v4342
    %v4388 = vpop.xlane.xlu0 %4387
    %4389 = vadd.xlane.f32.xlu0 %v4343
    %v4390 = vpop.xlane.xlu0 %4389
    %4391 = vadd.xlane.f32.xlu0 %v4344
    %v4392 = vpop.xlane.xlu0 %4391
    %v4393 = vmul.f32 %v4346, %v2341
    %v4394 = vmul.f32 %v4348, %v2341
    %v4395 = vmul.f32 %v4350, %v2341
    %v4396 = vmul.f32 %v4352, %v2341
    %v4397 = vmul.f32 %v4354, %v2341
    %v4398 = vmul.f32 %v4356, %v2341
    %v4399 = vmul.f32 %v4358, %v2341
    %v4400 = vmul.f32 %v4360, %v2341
    %v4401 = vmul.f32 %v4362, %v2341
    %v4402 = vmul.f32 %v4364, %v2341
    %v4403 = vmul.f32 %v4366, %v2341
    %v4404 = vmul.f32 %v4368, %v2341
    %v4405 = vmul.f32 %v4370, %v2341
    %v4406 = vmul.f32 %v4372, %v2341
    %v4407 = vmul.f32 %v4374, %v2341
    %v4408 = vmul.f32 %v4376, %v2341
    %v4409 = vmul.f32 %v4378, %v2341
    %v4410 = vmul.f32 %v4380, %v2341
    %v4411 = vmul.f32 %v4382, %v2341
    %v4412 = vmul.f32 %v4384, %v2341
    %v4413 = vmul.f32 %v4386, %v2341
    %v4414 = vmul.f32 %v4388, %v2341
    %v4415 = vmul.f32 %v4390, %v2341
    %v4416 = vmul.f32 %v4392, %v2341
    %v4417 = vadd.f32 %v4393, 1e-05
    %v4418 = vadd.f32 %v4394, 1e-05
    %v4419 = vadd.f32 %v4395, 1e-05
    %v4420 = vadd.f32 %v4396, 1e-05
    %v4421 = vadd.f32 %v4397, 1e-05
    %v4422 = vadd.f32 %v4398, 1e-05
    %v4423 = vadd.f32 %v4399, 1e-05
    %v4424 = vadd.f32 %v4400, 1e-05
    %v4425 = vadd.f32 %v4401, 1e-05
    %v4426 = vadd.f32 %v4402, 1e-05
    %v4427 = vadd.f32 %v4403, 1e-05
    %v4428 = vadd.f32 %v4404, 1e-05
    %v4429 = vadd.f32 %v4405, 1e-05
    %v4430 = vadd.f32 %v4406, 1e-05
    %v4431 = vadd.f32 %v4407, 1e-05
    %v4432 = vadd.f32 %v4408, 1e-05
    %v4433 = vadd.f32 %v4409, 1e-05
    %v4434 = vadd.f32 %v4410, 1e-05
    %v4435 = vadd.f32 %v4411, 1e-05
    %v4436 = vadd.f32 %v4412, 1e-05
    %v4437 = vadd.f32 %v4413, 1e-05
    %v4438 = vadd.f32 %v4414, 1e-05
    %v4439 = vadd.f32 %v4415, 1e-05
    %v4440 = vadd.f32 %v4416, 1e-05
    %v4441 = vrsqrt.pop %v4417
    %v4442 = vrsqrt.pop %v4418
    %v4443 = vrsqrt.pop %v4419
    %v4444 = vrsqrt.pop %v4420
    %v4445 = vrsqrt.pop %v4421
    %v4446 = vrsqrt.pop %v4422
    %v4447 = vrsqrt.pop %v4423
    %v4448 = vrsqrt.pop %v4424
    %v4449 = vrsqrt.pop %v4425
    %v4450 = vrsqrt.pop %v4426
    %v4451 = vrsqrt.pop %v4427
    %v4452 = vrsqrt.pop %v4428
    %v4453 = vrsqrt.pop %v4429
    %v4454 = vrsqrt.pop %v4430
    %v4455 = vrsqrt.pop %v4431
    %v4456 = vrsqrt.pop %v4432
    %v4457 = vrsqrt.pop %v4433
    %v4458 = vrsqrt.pop %v4434
    %v4459 = vrsqrt.pop %v4435
    %v4460 = vrsqrt.pop %v4436
    %v4461 = vrsqrt.pop %v4437
    %v4462 = vrsqrt.pop %v4438
    %v4463 = vrsqrt.pop %v4439
    %v4464 = vrsqrt.pop %v4440
    %s4465 = scalar_lea.vmem %s8, 1
    %v4466 = vld [vmem:[%s4465] sm:$0x1]
    %v4468 = vlaneseq
    %v4469 = vshrl.u32 %v4468, 7
    %v4470 = vsub.s32 0, %v4469
    %v4471 = vrot.slane %v4466, %v4470
    %v4473 = vmul.f32 %v4441, %v4471
    %v4474 = vmul.f32 %v4442, %v4471
    %v4475 = vmul.f32 %v4443, %v4471
    %v4476 = vmul.f32 %v4444, %v4471
    %v4477 = vmul.f32 %v4445, %v4471
    %v4478 = vmul.f32 %v4446, %v4471
    %v4479 = vmul.f32 %v4447, %v4471
    %v4480 = vmul.f32 %v4448, %v4471
    %v4481 = vmul.f32 %v4449, %v4471
    %v4482 = vmul.f32 %v4450, %v4471
    %v4483 = vmul.f32 %v4451, %v4471
    %v4484 = vmul.f32 %v4452, %v4471
    %v4485 = vmul.f32 %v4453, %v4471
    %v4486 = vmul.f32 %v4454, %v4471
    %v4487 = vmul.f32 %v4455, %v4471
    %v4488 = vmul.f32 %v4456, %v4471
    %v4489 = vmul.f32 %v4457, %v4471
    %v4490 = vmul.f32 %v4458, %v4471
    %v4491 = vmul.f32 %v4459, %v4471
    %v4492 = vmul.f32 %v4460, %v4471
    %v4493 = vmul.f32 %v4461, %v4471
    %v4494 = vmul.f32 %v4462, %v4471
    %v4495 = vmul.f32 %v4463, %v4471
    %v4496 = vmul.f32 %v4464, %v4471
    %v4497 = vmul.f32 %v4297, %v4473
    %v4498 = vmul.f32 %v4298, %v4474
    %v4499 = vmul.f32 %v4299, %v4475
    %v4500 = vmul.f32 %v4300, %v4476
    %v4501 = vmul.f32 %v4301, %v4477
    %v4502 = vmul.f32 %v4302, %v4478
    %v4503 = vmul.f32 %v4303, %v4479
    %v4504 = vmul.f32 %v4304, %v4480
    %v4505 = vmul.f32 %v4305, %v4481
    %v4506 = vmul.f32 %v4306, %v4482
    %v4507 = vmul.f32 %v4307, %v4483
    %v4508 = vmul.f32 %v4308, %v4484
    %v4509 = vmul.f32 %v4309, %v4485
    %v4510 = vmul.f32 %v4310, %v4486
    %v4511 = vmul.f32 %v4311, %v4487
    %v4512 = vmul.f32 %v4312, %v4488
    %v4513 = vmul.f32 %v4313, %v4489
    %v4514 = vmul.f32 %v4314, %v4490
    %v4515 = vmul.f32 %v4315, %v4491
    %v4516 = vmul.f32 %v4316, %v4492
    %v4517 = vmul.f32 %v4317, %v4493
    %v4518 = vmul.f32 %v4318, %v4494
    %v4519 = vmul.f32 %v4319, %v4495
    %v4520 = vmul.f32 %v4320, %v4496
    %s4521 = scalar_lea.vmem %s9, 1
    %v4522 = vld [vmem:[%s4521] sm:$0x1]
    %v4524 = vlaneseq
    %v4525 = vshrl.u32 %v4524, 7
    %v4526 = vsub.s32 0, %v4525
    %v4527 = vrot.slane %v4522, %v4526
    %v4529 = vadd.f32 %v4497, %v4527
    %v4530 = vadd.f32 %v4498, %v4527
    %v4531 = vadd.f32 %v4499, %v4527
    %v4532 = vadd.f32 %v4500, %v4527
    %v4533 = vadd.f32 %v4501, %v4527
    %v4534 = vadd.f32 %v4502, %v4527
    %v4535 = vadd.f32 %v4503, %v4527
    %v4536 = vadd.f32 %v4504, %v4527
    %v4537 = vadd.f32 %v4505, %v4527
    %v4538 = vadd.f32 %v4506, %v4527
    %v4539 = vadd.f32 %v4507, %v4527
    %v4540 = vadd.f32 %v4508, %v4527
    %v4541 = vadd.f32 %v4509, %v4527
    %v4542 = vadd.f32 %v4510, %v4527
    %v4543 = vadd.f32 %v4511, %v4527
    %v4544 = vadd.f32 %v4512, %v4527
    %v4545 = vadd.f32 %v4513, %v4527
    %v4546 = vadd.f32 %v4514, %v4527
    %v4547 = vadd.f32 %v4515, %v4527
    %v4548 = vadd.f32 %v4516, %v4527
    %v4549 = vadd.f32 %v4517, %v4527
    %v4550 = vadd.f32 %v4518, %v4527
    %v4551 = vadd.f32 %v4519, %v4527
    %v4552 = vadd.f32 %v4520, %v4527
    %v4553 = vld [vmem:[%s10] sm:$0xff]
    %v4554 = vld [vmem:[%s10 + $0x8] sm:$0xff]
    %v4555 = vld [vmem:[%s10 + $0x10] sm:$0xff]
    %v4556 = vld [vmem:[%s10 + $0x18] sm:$0xff]
    %v4557 = vld [vmem:[%s10 + $0x20] sm:$0xff]
    %v4558 = vld [vmem:[%s10 + $0x28] sm:$0xff]
    %v4559 = vld [vmem:[%s10 + $0x30] sm:$0xff]
    %v4560 = vld [vmem:[%s10 + $0x38] sm:$0xff]
    %v4561 = vld [vmem:[%s10 + $0x40] sm:$0xff]
    %v4562 = vld [vmem:[%s10 + $0x48] sm:$0xff]
    %v4563 = vld [vmem:[%s10 + $0x50] sm:$0xff]
    %v4564 = vld [vmem:[%s10 + $0x58] sm:$0xff]
    %v4565 = vld [vmem:[%s10 + $0x60] sm:$0xff]
    %v4566 = vld [vmem:[%s10 + $0x68] sm:$0xff]
    %v4567 = vld [vmem:[%s10 + $0x70] sm:$0xff]
    %v4568 = vld [vmem:[%s10 + $0x78] sm:$0xff]
    %4569 = vmatprep.subr.mxu0 0.0
    %4570 = vmatpush1.msra.mxu0 %v4553
    %4571 = vmatprep.subr.mxu0 0.0
    %4572 = vmatpush1.msra.mxu0 %v4554
    %4573 = vmatprep.subr.mxu0 0.0
    %4574 = vmatpush1.msra.mxu0 %v4555
    %4575 = vmatprep.subr.mxu0 0.0
    %4576 = vmatpush1.msra.mxu0 %v4556
    %4577 = vmatprep.subr.mxu0 0.0
    %4578 = vmatpush1.msra.mxu0 %v4557
    %4579 = vmatprep.subr.mxu0 0.0
    %4580 = vmatpush1.msra.mxu0 %v4558
    %4581 = vmatprep.subr.mxu0 0.0
    %4582 = vmatpush1.msra.mxu0 %v4559
    %4583 = vmatprep.subr.mxu0 0.0
    %4584 = vmatpush1.msra.mxu0 %v4560
    %4585 = vmatprep.subr.mxu0 0.0
    %4586 = vmatpush1.msra.mxu0 %v4561
    %4587 = vmatprep.subr.mxu0 0.0
    %4588 = vmatpush1.msra.mxu0 %v4562
    %4589 = vmatprep.subr.mxu0 0.0
    %4590 = vmatpush1.msra.mxu0 %v4563
    %4591 = vmatprep.subr.mxu0 0.0
    %4592 = vmatpush1.msra.mxu0 %v4564
    %4593 = vmatprep.subr.mxu0 0.0
    %4594 = vmatpush1.msra.mxu0 %v4565
    %4595 = vmatprep.subr.mxu0 0.0
    %4596 = vmatpush1.msra.mxu0 %v4566
    %4597 = vmatprep.subr.mxu0 0.0
    %4598 = vmatpush1.msra.mxu0 %v4567
    %4599 = vmatprep.subr.mxu0 0.0
    %4600 = vmatpush1.msra.mxu0 %v4568
    %4601 = vmatprep.subr.mxu0 0.0
    %4602 = vmatpush1.msra.mxu0 0.0
    %4603 = vmatprep.subr.mxu0 0.0
    %4604 = vmatpush1.msra.mxu0 0.0
    %4605 = vmatprep.subr.mxu0 0.0
    %4606 = vmatpush1.msra.mxu0 0.0
    %4607 = vmatprep.subr.mxu0 0.0
    %4608 = vmatpush1.msra.mxu0 0.0
    %4609 = vmatprep.subr.mxu0 0.0
    %4610 = vmatpush1.msra.mxu0 0.0
    %4611 = vmatprep.subr.mxu0 0.0
    %4612 = vmatpush1.msra.mxu0 0.0
    %4613 = vmatprep.subr.mxu0 0.0
    %4614 = vmatpush1.msra.mxu0 0.0
    %4615 = vmatprep.subr.mxu0 0.0
    %4616 = vmatpush1.msra.mxu0 0.0
    %4617 = vmatprep.subr.mxu0 0.0
    %4618 = vmatpush1.msra.mxu0 0.0
    %4619 = vmatprep.subr.mxu0 0.0
    %4620 = vmatpush1.msra.mxu0 0.0
    %4621 = vmatprep.subr.mxu0 0.0
    %4622 = vmatpush1.msra.mxu0 0.0
    %4623 = vmatprep.subr.mxu0 0.0
    %4624 = vmatpush1.msra.mxu0 0.0
    %4625 = vmatprep.subr.mxu0 0.0
    %4626 = vmatpush1.msra.mxu0 0.0
    %4627 = vmatprep.subr.mxu0 0.0
    %4628 = vmatpush1.msra.mxu0 0.0
    %4629 = vmatprep.subr.mxu0 0.0
    %4630 = vmatpush1.msra.mxu0 0.0
    %4631 = vmatprep.subr.mxu0 0.0
    %4632 = vmatpush1.msra.mxu0 0.0
    %4633 = vmatprep.mubr.f32.mxu0 0.0
    %4634 = vmatmul.mubr.f32.gmra.mrb[0].mxu0 %v4529
    %v4635 = vpop.f32.mrb[0].mxu0
    %v4636 = vadd.f32 0.0, %v4635
    %v4637 = vpop.f32.mrb[0].mxu0
    %4638 = vmatprep.mubr.f32.mxu0 0.0
    %4639 = vmatmul.mubr.f32.gmra.mrb[0].mxu0 %v4530
    %v4640 = vpop.f32.mrb[0].mxu0
    %v4641 = vadd.f32 0.0, %v4640
    %v4642 = vpop.f32.mrb[0].mxu0
    %4643 = vmatprep.mubr.f32.mxu0 0.0
    %4644 = vmatmul.mubr.f32.gmra.mrb[0].mxu0 %v4531
    %v4645 = vpop.f32.mrb[0].mxu0
    %v4646 = vadd.f32 0.0, %v4645
    %v4647 = vpop.f32.mrb[0].mxu0
    %4648 = vmatprep.mubr.f32.mxu0 0.0
    %4649 = vmatmul.mubr.f32.gmra.mrb[0].mxu0 %v4532
    %v4650 = vpop.f32.mrb[0].mxu0
    %v4651 = vadd.f32 0.0, %v4650
    %v4652 = vpop.f32.mrb[0].mxu0
    %4653 = vmatprep.mubr.f32.mxu0 0.0
    %4654 = vmatmul.mubr.f32.gmra.mrb[0].mxu0 %v4533
    %v4655 = vpop.f32.mrb[0].mxu0
    %v4656 = vadd.f32 0.0, %v4655
    %v4657 = vpop.f32.mrb[0].mxu0
    %4658 = vmatprep.mubr.f32.mxu0 0.0
    %4659 = vmatmul.mubr.f32.gmra.mrb[0].mxu0 %v4534
    %v4660 = vpop.f32.mrb[0].mxu0
    %v4661 = vadd.f32 0.0, %v4660
    %v4662 = vpop.f32.mrb[0].mxu0
    %4663 = vmatprep.mubr.f32.mxu0 0.0
    %4664 = vmatmul.mubr.f32.gmra.mrb[0].mxu0 %v4535
    %v4665 = vpop.f32.mrb[0].mxu0
    %v4666 = vadd.f32 0.0, %v4665
    %v4667 = vpop.f32.mrb[0].mxu0
    %4668 = vmatprep.mubr.f32.mxu0 0.0
    %4669 = vmatmul.mubr.f32.gmra.mrb[0].mxu0 %v4536
    %v4670 = vpop.f32.mrb[0].mxu0
    %v4671 = vadd.f32 0.0, %v4670
    %v4672 = vpop.f32.mrb[0].mxu0
    %4673 = vmatprep.mubr.f32.mxu0 0.0
    %4674 = vmatmul.mubr.f32.gmra.mrb[0].mxu0 %v4537
    %v4675 = vpop.f32.mrb[0].mxu0
    %v4676 = vadd.f32 0.0, %v4675
    %v4677 = vpop.f32.mrb[0].mxu0
    %4678 = vmatprep.mubr.f32.mxu0 0.0
    %4679 = vmatmul.mubr.f32.gmra.mrb[0].mxu0 %v4538
    %v4680 = vpop.f32.mrb[0].mxu0
    %v4681 = vadd.f32 0.0, %v4680
    %v4682 = vpop.f32.mrb[0].mxu0
    %4683 = vmatprep.mubr.f32.mxu0 0.0
    %4684 = vmatmul.mubr.f32.gmra.mrb[0].mxu0 %v4539
    %v4685 = vpop.f32.mrb[0].mxu0
    %v4686 = vadd.f32 0.0, %v4685
    %v4687 = vpop.f32.mrb[0].mxu0
    %4688 = vmatprep.mubr.f32.mxu0 0.0
    %4689 = vmatmul.mubr.f32.gmra.mrb[0].mxu0 %v4540
    %v4690 = vpop.f32.mrb[0].mxu0
    %v4691 = vadd.f32 0.0, %v4690
    %v4692 = vpop.f32.mrb[0].mxu0
    %4693 = vmatprep.mubr.f32.mxu0 0.0
    %4694 = vmatmul.mubr.f32.gmra.mrb[0].mxu0 %v4541
    %v4695 = vpop.f32.mrb[0].mxu0
    %v4696 = vadd.f32 0.0, %v4695
    %v4697 = vpop.f32.mrb[0].mxu0
    %4698 = vmatprep.mubr.f32.mxu0 0.0
    %4699 = vmatmul.mubr.f32.gmra.mrb[0].mxu0 %v4542
    %v4700 = vpop.f32.mrb[0].mxu0
    %v4701 = vadd.f32 0.0, %v4700
    %v4702 = vpop.f32.mrb[0].mxu0
    %4703 = vmatprep.mubr.f32.mxu0 0.0
    %4704 = vmatmul.mubr.f32.gmra.mrb[0].mxu0 %v4543
    %v4705 = vpop.f32.mrb[0].mxu0
    %v4706 = vadd.f32 0.0, %v4705
    %v4707 = vpop.f32.mrb[0].mxu0
    %4708 = vmatprep.mubr.f32.mxu0 0.0
    %4709 = vmatmul.mubr.f32.gmra.mrb[0].mxu0 %v4544
    %v4710 = vpop.f32.mrb[0].mxu0
    %v4711 = vadd.f32 0.0, %v4710
    %v4712 = vpop.f32.mrb[0].mxu0
    %4713 = vmatprep.mubr.f32.mxu0 0.0
    %4714 = vmatmul.mubr.f32.gmra.mrb[0].mxu0 %v4545
    %v4715 = vpop.f32.mrb[0].mxu0
    %v4716 = vadd.f32 0.0, %v4715
    %v4717 = vpop.f32.mrb[0].mxu0
    %4718 = vmatprep.mubr.f32.mxu0 0.0
    %4719 = vmatmul.mubr.f32.gmra.mrb[0].mxu0 %v4546
    %v4720 = vpop.f32.mrb[0].mxu0
    %v4721 = vadd.f32 0.0, %v4720
    %v4722 = vpop.f32.mrb[0].mxu0
    %4723 = vmatprep.mubr.f32.mxu0 0.0
    %4724 = vmatmul.mubr.f32.gmra.mrb[0].mxu0 %v4547
    %v4725 = vpop.f32.mrb[0].mxu0
    %v4726 = vadd.f32 0.0, %v4725
    %v4727 = vpop.f32.mrb[0].mxu0
    %4728 = vmatprep.mubr.f32.mxu0 0.0
    %4729 = vmatmul.mubr.f32.gmra.mrb[0].mxu0 %v4548
    %v4730 = vpop.f32.mrb[0].mxu0
    %v4731 = vadd.f32 0.0, %v4730
    %v4732 = vpop.f32.mrb[0].mxu0
    %4733 = vmatprep.mubr.f32.mxu0 0.0
    %4734 = vmatmul.mubr.f32.gmra.mrb[0].mxu0 %v4549
    %v4735 = vpop.f32.mrb[0].mxu0
    %v4736 = vadd.f32 0.0, %v4735
    %v4737 = vpop.f32.mrb[0].mxu0
    %4738 = vmatprep.mubr.f32.mxu0 0.0
    %4739 = vmatmul.mubr.f32.gmra.mrb[0].mxu0 %v4550
    %v4740 = vpop.f32.mrb[0].mxu0
    %v4741 = vadd.f32 0.0, %v4740
    %v4742 = vpop.f32.mrb[0].mxu0
    %4743 = vmatprep.mubr.f32.mxu0 0.0
    %4744 = vmatmul.mubr.f32.gmra.mrb[0].mxu0 %v4551
    %v4745 = vpop.f32.mrb[0].mxu0
    %v4746 = vadd.f32 0.0, %v4745
    %v4747 = vpop.f32.mrb[0].mxu0
    %4748 = vmatprep.mubr.f32.mxu0 0.0
    %4749 = vmatmul.mubr.f32.gmra.mrb[0].mxu0 %v4552
    %v4750 = vpop.f32.mrb[0].mxu0
    %v4751 = vadd.f32 0.0, %v4750
    %v4752 = vpop.f32.mrb[0].mxu0
    %4753 = vdwg.mxu0
    %v4754 = vld [vmem:[%s12] sm:$0xff]
    %v4755 = vld [vmem:[%s12 + $0x8] sm:$0xff]
    %v4756 = vld [vmem:[%s12 + $0x10] sm:$0xf]
    %v4757 = vld [vmem:[%s12 + $0x18] sm:$0xf]
    %v4758 = vld [vmem:[%s11] sm:$0x1]
    %v4760 = vlaneseq
    %v4761 = vshrl.u32 %v4760, 7
    %v4762 = vsub.s32 0, %v4761
    %v4763 = vrot.slane %v4758, %v4762
    %vm4765 = vcmask 523264
    %v4767 = vsel %vm4765, %v4755, 0
    %v4770 = vsel %vm4765, %v4757, 0
    %4772 = vmatprep.subr.mxu0 0.0
    %4773 = vmatpush1.msra.mxu0 %v4636
    %4774 = vmatprep.subr.mxu0 0.0
    %4775 = vmatpush1.msra.mxu0 %v4641
    %4776 = vmatprep.subr.mxu0 0.0
    %4777 = vmatpush1.msra.mxu0 %v4646
    %4778 = vmatprep.subr.mxu0 0.0
    %4779 = vmatpush1.msra.mxu0 %v4651
    %4780 = vmatprep.subr.mxu0 0.0
    %4781 = vmatpush1.msra.mxu0 %v4656
    %4782 = vmatprep.subr.mxu0 0.0
    %4783 = vmatpush1.msra.mxu0 %v4661
    %4784 = vmatprep.subr.mxu0 0.0
    %4785 = vmatpush1.msra.mxu0 %v4666
    %4786 = vmatprep.subr.mxu0 0.0
    %4787 = vmatpush1.msra.mxu0 %v4671
    %4788 = vmatprep.subr.mxu0 0.0
    %4789 = vmatpush1.msra.mxu0 %v4676
    %4790 = vmatprep.subr.mxu0 0.0
    %4791 = vmatpush1.msra.mxu0 %v4681
    %4792 = vmatprep.subr.mxu0 0.0
    %4793 = vmatpush1.msra.mxu0 %v4686
    %4794 = vmatprep.subr.mxu0 0.0
    %4795 = vmatpush1.msra.mxu0 %v4691
    %4796 = vmatprep.subr.mxu0 0.0
    %4797 = vmatpush1.msra.mxu0 %v4696
    %4798 = vmatprep.subr.mxu0 0.0
    %4799 = vmatpush1.msra.mxu0 %v4701
    %4800 = vmatprep.subr.mxu0 0.0
    %4801 = vmatpush1.msra.mxu0 %v4706
    %4802 = vmatprep.subr.mxu0 0.0
    %4803 = vmatpush1.msra.mxu0 %v4711
    %4804 = vmatprep.subr.mxu0 0.0
    %4805 = vmatpush1.msra.mxu0 %v4716
    %4806 = vmatprep.subr.mxu0 0.0
    %4807 = vmatpush1.msra.mxu0 %v4721
    %4808 = vmatprep.subr.mxu0 0.0
    %4809 = vmatpush1.msra.mxu0 %v4726
    %4810 = vmatprep.subr.mxu0 0.0
    %4811 = vmatpush1.msra.mxu0 %v4731
    %4812 = vmatprep.subr.mxu0 0.0
    %4813 = vmatpush1.msra.mxu0 %v4736
    %4814 = vmatprep.subr.mxu0 0.0
    %4815 = vmatpush1.msra.mxu0 %v4741
    %4816 = vmatprep.subr.mxu0 0.0
    %4817 = vmatpush1.msra.mxu0 %v4746
    %4818 = vmatprep.subr.mxu0 0.0
    %4819 = vmatpush1.msra.mxu0 %v4751
    %4820 = vmatprep.subr.mxu0 0.0
    %4821 = vmatpush1.msra.mxu0 0.0
    %4822 = vmatprep.subr.mxu0 0.0
    %4823 = vmatpush1.msra.mxu0 0.0
    %4824 = vmatprep.subr.mxu0 0.0
    %4825 = vmatpush1.msra.mxu0 0.0
    %4826 = vmatprep.subr.mxu0 0.0
    %4827 = vmatpush1.msra.mxu0 0.0
    %4828 = vmatprep.subr.mxu0 0.0
    %4829 = vmatpush1.msra.mxu0 0.0
    %4830 = vmatprep.subr.mxu0 0.0
    %4831 = vmatpush1.msra.mxu0 0.0
    %4832 = vmatprep.subr.mxu0 0.0
    %4833 = vmatpush1.msra.mxu0 0.0
    %4834 = vmatprep.subr.mxu0 0.0
    %4835 = vmatpush1.msra.mxu0 0.0
    %4836 = vmatprep.mubr.f32.mxu0 %v4767
    %4837 = vmatmul.mubr.f32.gmra.mrb[0].mxu0 %v4754
    %v4838 = vpop.f32.mrb[0].mxu0
    %v4839 = vadd.f32 %v4763, %v4838
    %v4840 = vpop.f32.mrb[0].mxu0
    %4841 = vmatprep.mubr.f32.mxu0 %v4770
    %4842 = vmatmul.mubr.f32.gmra.mrb[0].mxu0 %v4756
    %v4843 = vpop.f32.mrb[0].mxu0
    %v4844 = vadd.f32 %v4763, %v4843
    %v4845 = vpop.f32.mrb[0].mxu0
    %4846 = vdwg.mxu0
    %4847 = vst [vmem:[#allocation5] sm:$0xff] %v4839
    %4848 = vst [vmem:[#allocation5 + $0x8] sm:$0xf] %v4844
    // Predicated region
    $region58: #{tpu_custom_call.1} parent=1 // pred_check
      _
    $region59: #{tpu_custom_call.1} parent=1 // pred_check_branch
      %4850 = sbr.rel (0) target = $region61
    $region60: #{tpu_custom_call.1} parent=1 // pred_region
      %s4852 = ssub.s32 256, 256
      %4853 = vsyncadd [#allocation4], %s4852
      %s4854 = sshll.u32 [#allocation5], 4
      %s4855 = int_to_ptr.vmem [resolvable:$true] %s4854
      %4860 = dma.vmem_to_hbm [thread:$0]  %s4855, 256, %s13, [#allocation4], 128, 128, 8
    $region61: #{tpu_custom_call.1} parent=1 // pred_fallthru
      _
    // Predicated region
    $region62: #{tpu_custom_call.1} parent=1 // pred_check
      _
    $region63: #{tpu_custom_call.1} parent=1 // pred_check_branch
      %4862 = sbr.rel (0) target = $region65
    $region64: #{tpu_custom_call.1} parent=1 // pred_region
      %4863 = dma.done [#allocation4], 256
    $region65: #{tpu_custom_call.1} parent=1 // pred_fallthru
      _
    %4864 = vsyncpa [#allocation3], 1
    %4865 = vsyncpa [#allocation4], 1

</llo_original>
